<compile_context>
chip_gen: v7x
topology: tpu7x:2x2x1
jax: 0.10.0
libtpu: 0.0.40
codegen_flags: <defaults>
</compile_context>

<pallas_src>
import functools

import jax
import jax.numpy as jnp
from jax.experimental import pallas as pl
from jax.experimental.pallas import tpu as pltpu

# ---- cfg-derived sizes (shrunk, but structurally identical to the module) ----
NUM_FEATURES_IN = 4      # input channels
NUM_ANCHORS     = 3
MID_CHANNEL     = 32     # cfg mid_channel (default 256) shrunk
REG_OUT_CHANNEL = 4      # cfg reg out_channel
CLS_OUT_CHANNEL = 8      # cfg cls out_channel
STACK_LAYERS    = 2      # cfg stack_layers (default 4) shrunk
BN_EPS          = 1e-5


def _round_up(x, m):
    return (x + m - 1) // m * m


# --------------------------- Pallas kernel -----------------------------------
def _fused_head_kernel(*refs, H, W, B, n_stack, mid):
    """Whole head (both branches), single invocation.

    refs = (x, masks, w0, b0, [w_reg_i, b_reg_i, w_cls_i, b_cls_i]*,
            w_reg_head, b_reg_head, w_cls_head, b_cls_head,
            reg_out, cls_out)
      x      : (Cin0p, N) f32        lane-dense input, N = B*H*W
      masks  : (8, N) f32            boundary masks for the 8 non-center taps
      w*     : (Cout, 9*Cin) bf16    lane-dense, BN scale folded in
      b*     : (Cout, 1) f32
      outs   : (Coutp, N) f32
    """
    x_ref, masks_ref = refs[0], refs[1]
    reg_o_ref, cls_o_ref = refs[-2], refs[-1]
    wrefs = refs[2:-2]
    HW = H * W
    N = B * HW

    def im2col(act):
        """(Cin, N) f32 -> (9*Cin, N) bf16 stacked-tap buffer (vregs)."""
        taps = []
        for kh in range(3):
            for kw in range(3):
                if kh == 1 and kw == 1:
                    taps.append(act)                     # center tap: no shift
                else:
                    d = (kh - 1) * W + (kw - 1)          # lane offset of tap
                    t = pltpu.roll(act, shift=(-d) % N, axis=1)
                    k = kh * 3 + kw
                    mi = k if k < 4 else k - 1           # mask table skips center
                    t = t * masks_ref[mi:mi + 1, :]      # zero-pad + anti-wrap
                    taps.append(t)
        return jnp.concatenate(taps, axis=0).astype(jnp.bfloat16)

    def conv(w_ref, b_ref, col):
        # one MXU GEMM per conv layer, f32 accumulation
        return (jnp.dot(w_ref[...], col, preferred_element_type=jnp.float32)
                + b_ref[...])

    # Layer 0: reg and cls branches share x -> one fused (2*mid, 9*Cin0) GEMM.
    z = jnp.maximum(conv(wrefs[0], wrefs[1], im2col(x_ref[...])), 0.0)
    reg_act, cls_act = z[:mid], z[mid:]

    idx = 2
    for _ in range(1, n_stack):
        new_reg = jnp.maximum(
            conv(wrefs[idx], wrefs[idx + 1], im2col(reg_act)), 0.0)
        new_cls = jnp.maximum(
            conv(wrefs[idx + 2], wrefs[idx + 3], im2col(cls_act)), 0.0)
        reg_act, cls_act = new_reg, new_cls
        idx += 4

    # Head convs: reg = conv+bias (identity), cls = conv+bias+sigmoid.
    reg_o_ref[...] = conv(wrefs[idx], wrefs[idx + 1], im2col(reg_act))
    cls_o_ref[...] = jax.nn.sigmoid(
        conv(wrefs[idx + 2], wrefs[idx + 3], im2col(cls_act)))


# --------------------------- weight packing ----------------------------------
def _pack_conv(w, scale, bias, cin_pad, cout_pad):
    """HWIO (3,3,Cin,Cout) -> lane-dense (cout_pad, 9*cin_pad) bf16 weight and
    (cout_pad, 1) f32 bias.  BN scale is folded into the weight.  K axis is
    tap-major / channel-minor, matching the kernel's im2col stacking order."""
    cin, cout = w.shape[2], w.shape[3]
    wk = jnp.transpose(w, (0, 1, 3, 2)).reshape(9, cout, cin)       # (9,Cout,Cin)
    wk = wk * scale[None, :, None]                                  # fold BN scale
    wk = jnp.pad(wk, ((0, 0), (0, cout_pad - cout), (0, cin_pad - cin)))
    wk = jnp.transpose(wk, (1, 0, 2)).reshape(cout_pad, 9 * cin_pad)
    bk = jnp.pad(bias, (0, cout_pad - cout)).reshape(cout_pad, 1)
    return wk.astype(jnp.bfloat16), bk.astype(jnp.float32)


# --------------------------- parameter init ----------------------------------
def _make_conv_bn_relu_params(key, cin, cout):
    kw, kg, kb, km, kv = jax.random.split(key, 5)
    w = 0.05 * jax.random.normal(kw, (3, 3, cin, cout), jnp.float32)
    gamma = 1.0 + 0.1 * jax.random.normal(kg, (cout,), jnp.float32)
    beta = 0.1 * jax.random.normal(kb, (cout,), jnp.float32)
    rmean = 0.1 * jax.random.normal(km, (cout,), jnp.float32)
    rvar = 1.0 + jnp.abs(jax.random.normal(kv, (cout,), jnp.float32))
    scale = gamma / jnp.sqrt(rvar + BN_EPS)           # fold eval-mode BN
    bias = beta - rmean * scale
    return w, scale, bias


def _make_conv_bias_params(key, cin, cout):
    kw, kb = jax.random.split(key)
    w = 0.05 * jax.random.normal(kw, (3, 3, cin, cout), jnp.float32)
    b = 0.01 * jax.random.normal(kb, (cout,), jnp.float32)
    return w, jnp.ones((cout,), jnp.float32), b


def make_head_params(key):
    keys = jax.random.split(key, 2 * STACK_LAYERS + 2)
    reg_convs, cls_convs = [], []
    for i in range(STACK_LAYERS):
        cin = NUM_FEATURES_IN if i == 0 else MID_CHANNEL
        reg_convs.append(_make_conv_bn_relu_params(keys[i], cin, MID_CHANNEL))
        cls_convs.append(
            _make_conv_bn_relu_params(keys[STACK_LAYERS + i], cin, MID_CHANNEL))
    reg_head = _make_conv_bias_params(
        keys[-2], MID_CHANNEL, NUM_ANCHORS * REG_OUT_CHANNEL)
    cls_head = _make_conv_bias_params(
        keys[-1], MID_CHANNEL, NUM_ANCHORS * CLS_OUT_CHANNEL)
    return {"reg_convs": reg_convs, "cls_convs": cls_convs,
            "reg_head": reg_head, "cls_head": cls_head}


# --------------------------- forward pass ------------------------------------
def test_head_forward(x_nchw, params):
    """Mirrors test_Head.forward. x_nchw: (B, C, H, W) -> (reg_out, cls_out)."""
    B, Cin, H, W = x_nchw.shape
    HW = H * W
    N = B * HW
    cin0_p = _round_up(Cin, 8)

    # NCHW -> lane-dense (Cin, B*H*W); zero-pad channels to a multiple of 8.
    x_t = jnp.transpose(x_nchw, (1, 0, 2, 3)).reshape(Cin, N).astype(jnp.float32)
    x_t = jnp.pad(x_t, ((0, cin0_p - Cin), (0, 0)))

    # Precomputed boundary masks for the 8 non-center taps: implement the conv
    # zero padding AND kill pltpu.roll wraparound across image/batch boundaries.
    lane = jnp.arange(N, dtype=jnp.int32)
    h = (lane % HW) // W
    w = lane % W
    rows = []
    for kh in range(3):
        for kw in range(3):
            if kh == 1 and kw == 1:
                continue
            h_in = h + (kh - 1)
            w_in = w + (kw - 1)
            rows.append(((h_in >= 0) & (h_in < H) & (w_in >= 0) & (w_in < W))
                        .astype(jnp.float32))
    masks = jnp.stack(rows, axis=0)                                   # (8, N)

    reg_cout = NUM_ANCHORS * REG_OUT_CHANNEL
    cls_cout = NUM_ANCHORS * CLS_OUT_CHANNEL
    reg_cout_p = _round_up(reg_cout, 8)
    cls_cout_p = _round_up(cls_cout, 8)

    inputs = [x_t, masks]

    # Layer 0: reg + cls weights fused along Cout (both branches read x).
    w_r0, b_r0 = _pack_conv(*params["reg_convs"][0], cin0_p, MID_CHANNEL)
    w_c0, b_c0 = _pack_conv(*params["cls_convs"][0], cin0_p, MID_CHANNEL)
    inputs += [jnp.concatenate([w_r0, w_c0], axis=0),
               jnp.concatenate([b_r0, b_c0], axis=0)]

    # Remaining shared conv stacks (conv + folded-BN + relu), interleaved.
    for li in range(1, STACK_LAYERS):
        w_r, b_r = _pack_conv(*params["reg_convs"][li], MID_CHANNEL, MID_CHANNEL)
        w_c, b_c = _pack_conv(*params["cls_convs"][li], MID_CHANNEL, MID_CHANNEL)
        inputs += [w_r, b_r, w_c, b_c]

    # Head convs (conv + bias; reg: identity, cls: sigmoid inside the kernel).
    w_rh, b_rh = _pack_conv(*params["reg_head"], MID_CHANNEL, reg_cout_p)
    w_ch, b_ch = _pack_conv(*params["cls_head"], MID_CHANNEL, cls_cout_p)
    inputs += [w_rh, b_rh, w_ch, b_ch]

    kern = functools.partial(_fused_head_kernel, H=H, W=W, B=B,
                             n_stack=STACK_LAYERS, mid=MID_CHANNEL)
    vmem = pl.BlockSpec(memory_space=pltpu.MemorySpace.VMEM)
    reg_raw, cls_raw = pl.pallas_call(
        kern,
        out_shape=(jax.ShapeDtypeStruct((reg_cout_p, N), jnp.float32),
                   jax.ShapeDtypeStruct((cls_cout_p, N), jnp.float32)),
        in_specs=[vmem] * len(inputs),
        out_specs=(vmem, vmem),
    )(*inputs)

    # (Cout, B*HW) -> PyTorch's permute(0,2,3,1).view(b, -1, out_ch)
    def _unpack(y, out_ch):
        y = y[:NUM_ANCHORS * out_ch]                          # drop channel pad
        y = y.reshape(NUM_ANCHORS, out_ch, B, HW)
        y = jnp.transpose(y, (2, 3, 0, 1))                    # (B, HW, A, out_ch)
        return y.reshape(B, HW * NUM_ANCHORS, out_ch)

    reg_out = _unpack(reg_raw, REG_OUT_CHANNEL)
    cls_out = _unpack(cls_raw, CLS_OUT_CHANNEL)
    return reg_out, cls_out
    # TODO(synk): loss_calculater (anchors/assigner/sampler/loss) is training
    # infrastructure outside the forward hot path and is not implemented.


# ------------------------------- main -----------------------------------------
if __name__ == "__main__":
    key = jax.random.PRNGKey(0)
    kx, kp = jax.random.split(key)

    B, C, H, W = 2, NUM_FEATURES_IN, 16, 16
    x = jax.random.normal(kx, (B, C, H, W), jnp.float32)   # NCHW like PyTorch
    params = make_head_params(kp)

    reg_out, cls_out = jax.jit(test_head_forward)(x, params)
    jax.block_until_ready((reg_out, cls_out))

    assert reg_out.shape == (B, H * W * NUM_ANCHORS, REG_OUT_CHANNEL)
    assert cls_out.shape == (B, H * W * NUM_ANCHORS, CLS_OUT_CHANNEL)
    print("KERNEL_OK")
</pallas_src>

<mosaic_0001>
module attributes {stable_mosaic.version = 11 : i64} {
  func.func @_fused_head_kernel(%arg0: memref<8x512xf32, #tpu.memory_space<vmem>>, %arg1: memref<8x512xf32, #tpu.memory_space<vmem>>, %arg2: memref<64x72xbf16, #tpu.memory_space<vmem>>, %arg3: memref<64x1xf32, #tpu.memory_space<vmem>>, %arg4: memref<32x288xbf16, #tpu.memory_space<vmem>>, %arg5: memref<32x1xf32, #tpu.memory_space<vmem>>, %arg6: memref<32x288xbf16, #tpu.memory_space<vmem>>, %arg7: memref<32x1xf32, #tpu.memory_space<vmem>>, %arg8: memref<16x288xbf16, #tpu.memory_space<vmem>>, %arg9: memref<16x1xf32, #tpu.memory_space<vmem>>, %arg10: memref<24x288xbf16, #tpu.memory_space<vmem>>, %arg11: memref<24x1xf32, #tpu.memory_space<vmem>>, %arg12: memref<16x512xf32, #tpu.memory_space<vmem>>, %arg13: memref<24x512xf32, #tpu.memory_space<vmem>>) attributes {dimension_semantics = [], scalar_prefetch = 0 : i64, scratch_operands = 0 : i64, tpu.core_type = #tpu.core_type<tc>} {
    %c0 = arith.constant 0 : index
    %c0_0 = arith.constant 0 : index
    %0 = vector.load %arg0[%c0, %c0_0] : memref<8x512xf32, #tpu.memory_space<vmem>>, vector<8x512xf32>
    %c17_i32 = arith.constant 17 : i32
    %1 = tpu.dynamic_rotate %0 by %c17_i32 dim 1 : vector<8x512xf32>, i32 -> vector<8x512xf32>
    %c0_1 = arith.constant 0 : index
    %c0_2 = arith.constant 0 : index
    %2 = vector.load %arg1[%c0_1, %c0_2] : memref<8x512xf32, #tpu.memory_space<vmem>>, vector<1x512xf32>
    %3 = vector.broadcast %2 : vector<1x512xf32> to vector<8x512xf32>
    %4 = arith.mulf %1, %3 : vector<8x512xf32>
    %c16_i32 = arith.constant 16 : i32
    %5 = tpu.dynamic_rotate %0 by %c16_i32 dim 1 : vector<8x512xf32>, i32 -> vector<8x512xf32>
    %c1 = arith.constant 1 : index
    %c0_3 = arith.constant 0 : index
    %6 = vector.load %arg1[%c1, %c0_3] : memref<8x512xf32, #tpu.memory_space<vmem>>, vector<1x512xf32>
    %7 = vector.broadcast %6 : vector<1x512xf32> to vector<8x512xf32>
    %8 = arith.mulf %5, %7 : vector<8x512xf32>
    %c15_i32 = arith.constant 15 : i32
    %9 = tpu.dynamic_rotate %0 by %c15_i32 dim 1 : vector<8x512xf32>, i32 -> vector<8x512xf32>
    %c2 = arith.constant 2 : index
    %c0_4 = arith.constant 0 : index
    %10 = vector.load %arg1[%c2, %c0_4] : memref<8x512xf32, #tpu.memory_space<vmem>>, vector<1x512xf32>
    %11 = vector.broadcast %10 : vector<1x512xf32> to vector<8x512xf32>
    %12 = arith.mulf %9, %11 : vector<8x512xf32>
    %c1_i32 = arith.constant 1 : i32
    %13 = tpu.dynamic_rotate %0 by %c1_i32 dim 1 : vector<8x512xf32>, i32 -> vector<8x512xf32>
    %c3 = arith.constant 3 : index
    %c0_5 = arith.constant 0 : index
    %14 = vector.load %arg1[%c3, %c0_5] : memref<8x512xf32, #tpu.memory_space<vmem>>, vector<1x512xf32>
    %15 = vector.broadcast %14 : vector<1x512xf32> to vector<8x512xf32>
    %16 = arith.mulf %13, %15 : vector<8x512xf32>
    %c511_i32 = arith.constant 511 : i32
    %17 = tpu.dynamic_rotate %0 by %c511_i32 dim 1 : vector<8x512xf32>, i32 -> vector<8x512xf32>
    %c4 = arith.constant 4 : index
    %c0_6 = arith.constant 0 : index
    %18 = vector.load %arg1[%c4, %c0_6] : memref<8x512xf32, #tpu.memory_space<vmem>>, vector<1x512xf32>
    %19 = vector.broadcast %18 : vector<1x512xf32> to vector<8x512xf32>
    %20 = arith.mulf %17, %19 : vector<8x512xf32>
    %c497_i32 = arith.constant 497 : i32
    %21 = tpu.dynamic_rotate %0 by %c497_i32 dim 1 : vector<8x512xf32>, i32 -> vector<8x512xf32>
    %c5 = arith.constant 5 : index
    %c0_7 = arith.constant 0 : index
    %22 = vector.load %arg1[%c5, %c0_7] : memref<8x512xf32, #tpu.memory_space<vmem>>, vector<1x512xf32>
    %23 = vector.broadcast %22 : vector<1x512xf32> to vector<8x512xf32>
    %24 = arith.mulf %21, %23 : vector<8x512xf32>
    %c496_i32 = arith.constant 496 : i32
    %25 = tpu.dynamic_rotate %0 by %c496_i32 dim 1 : vector<8x512xf32>, i32 -> vector<8x512xf32>
    %c6 = arith.constant 6 : index
    %c0_8 = arith.constant 0 : index
    %26 = vector.load %arg1[%c6, %c0_8] : memref<8x512xf32, #tpu.memory_space<vmem>>, vector<1x512xf32>
    %27 = vector.broadcast %26 : vector<1x512xf32> to vector<8x512xf32>
    %28 = arith.mulf %25, %27 : vector<8x512xf32>
    %c495_i32 = arith.constant 495 : i32
    %29 = tpu.dynamic_rotate %0 by %c495_i32 dim 1 : vector<8x512xf32>, i32 -> vector<8x512xf32>
    %c7 = arith.constant 7 : index
    %c0_9 = arith.constant 0 : index
    %30 = vector.load %arg1[%c7, %c0_9] : memref<8x512xf32, #tpu.memory_space<vmem>>, vector<1x512xf32>
    %31 = vector.broadcast %30 : vector<1x512xf32> to vector<8x512xf32>
    %32 = arith.mulf %29, %31 : vector<8x512xf32>
    %33 = tpu.concatenate %4, %8, %12, %16, %0, %20, %24, %28, %32 in 0 : vector<8x512xf32>, vector<8x512xf32>, vector<8x512xf32>, vector<8x512xf32>, vector<8x512xf32>, vector<8x512xf32>, vector<8x512xf32>, vector<8x512xf32>, vector<8x512xf32> -> vector<72x512xf32>
    %34 = arith.truncf %33 : vector<72x512xf32> to vector<72x512xbf16>
    %c0_10 = arith.constant 0 : index
    %c0_11 = arith.constant 0 : index
    %35 = vector.load %arg2[%c0_10, %c0_11] : memref<64x72xbf16, #tpu.memory_space<vmem>>, vector<64x72xbf16>
    %cst = arith.constant dense<0.000000e+00> : vector<64x512xf32>
    %36 = tpu.matmul %35, %34, %cst {dimension_numbers = #tpu.dot_dimension_numbers<[1], [0], [0], [1], [0, 0, 1, 1], [], []>} : vector<64x72xbf16>, vector<72x512xbf16>, vector<64x512xf32> -> vector<64x512xf32>
    %c0_12 = arith.constant 0 : index
    %c0_13 = arith.constant 0 : index
    %37 = vector.load %arg3[%c0_12, %c0_13] : memref<64x1xf32, #tpu.memory_space<vmem>>, vector<64x1xf32>
    %38 = vector.broadcast %37 : vector<64x1xf32> to vector<64x512xf32>
    %39 = arith.addf %36, %38 : vector<64x512xf32>
    %cst_14 = arith.constant 0.000000e+00 : f32
    %40 = vector.broadcast %cst_14 : f32 to vector<64x512xf32>
    %41 = arith.maximumf %39, %40 : vector<64x512xf32>
    %42 = vector.extract_strided_slice %41 {offsets = [0, 0], sizes = [32, 512], strides = [1, 1]} : vector<64x512xf32> to vector<32x512xf32>
    %43 = vector.extract_strided_slice %41 {offsets = [32, 0], sizes = [32, 512], strides = [1, 1]} : vector<64x512xf32> to vector<32x512xf32>
    %c17_i32_15 = arith.constant 17 : i32
    %44 = tpu.dynamic_rotate %42 by %c17_i32_15 dim 1 : vector<32x512xf32>, i32 -> vector<32x512xf32>
    %c0_16 = arith.constant 0 : index
    %c0_17 = arith.constant 0 : index
    %45 = vector.load %arg1[%c0_16, %c0_17] : memref<8x512xf32, #tpu.memory_space<vmem>>, vector<1x512xf32>
    %46 = vector.broadcast %45 : vector<1x512xf32> to vector<32x512xf32>
    %47 = arith.mulf %44, %46 : vector<32x512xf32>
    %c16_i32_18 = arith.constant 16 : i32
    %48 = tpu.dynamic_rotate %42 by %c16_i32_18 dim 1 : vector<32x512xf32>, i32 -> vector<32x512xf32>
    %c1_19 = arith.constant 1 : index
    %c0_20 = arith.constant 0 : index
    %49 = vector.load %arg1[%c1_19, %c0_20] : memref<8x512xf32, #tpu.memory_space<vmem>>, vector<1x512xf32>
    %50 = vector.broadcast %49 : vector<1x512xf32> to vector<32x512xf32>
    %51 = arith.mulf %48, %50 : vector<32x512xf32>
    %c15_i32_21 = arith.constant 15 : i32
    %52 = tpu.dynamic_rotate %42 by %c15_i32_21 dim 1 : vector<32x512xf32>, i32 -> vector<32x512xf32>
    %c2_22 = arith.constant 2 : index
    %c0_23 = arith.constant 0 : index
    %53 = vector.load %arg1[%c2_22, %c0_23] : memref<8x512xf32, #tpu.memory_space<vmem>>, vector<1x512xf32>
    %54 = vector.broadcast %53 : vector<1x512xf32> to vector<32x512xf32>
    %55 = arith.mulf %52, %54 : vector<32x512xf32>
    %c1_i32_24 = arith.constant 1 : i32
    %56 = tpu.dynamic_rotate %42 by %c1_i32_24 dim 1 : vector<32x512xf32>, i32 -> vector<32x512xf32>
    %c3_25 = arith.constant 3 : index
    %c0_26 = arith.constant 0 : index
    %57 = vector.load %arg1[%c3_25, %c0_26] : memref<8x512xf32, #tpu.memory_space<vmem>>, vector<1x512xf32>
    %58 = vector.broadcast %57 : vector<1x512xf32> to vector<32x512xf32>
    %59 = arith.mulf %56, %58 : vector<32x512xf32>
    %c511_i32_27 = arith.constant 511 : i32
    %60 = tpu.dynamic_rotate %42 by %c511_i32_27 dim 1 : vector<32x512xf32>, i32 -> vector<32x512xf32>
    %c4_28 = arith.constant 4 : index
    %c0_29 = arith.constant 0 : index
    %61 = vector.load %arg1[%c4_28, %c0_29] : memref<8x512xf32, #tpu.memory_space<vmem>>, vector<1x512xf32>
    %62 = vector.broadcast %61 : vector<1x512xf32> to vector<32x512xf32>
    %63 = arith.mulf %60, %62 : vector<32x512xf32>
    %c497_i32_30 = arith.constant 497 : i32
    %64 = tpu.dynamic_rotate %42 by %c497_i32_30 dim 1 : vector<32x512xf32>, i32 -> vector<32x512xf32>
    %c5_31 = arith.constant 5 : index
    %c0_32 = arith.constant 0 : index
    %65 = vector.load %arg1[%c5_31, %c0_32] : memref<8x512xf32, #tpu.memory_space<vmem>>, vector<1x512xf32>
    %66 = vector.broadcast %65 : vector<1x512xf32> to vector<32x512xf32>
    %67 = arith.mulf %64, %66 : vector<32x512xf32>
    %c496_i32_33 = arith.constant 496 : i32
    %68 = tpu.dynamic_rotate %42 by %c496_i32_33 dim 1 : vector<32x512xf32>, i32 -> vector<32x512xf32>
    %c6_34 = arith.constant 6 : index
    %c0_35 = arith.constant 0 : index
    %69 = vector.load %arg1[%c6_34, %c0_35] : memref<8x512xf32, #tpu.memory_space<vmem>>, vector<1x512xf32>
    %70 = vector.broadcast %69 : vector<1x512xf32> to vector<32x512xf32>
    %71 = arith.mulf %68, %70 : vector<32x512xf32>
    %c495_i32_36 = arith.constant 495 : i32
    %72 = tpu.dynamic_rotate %42 by %c495_i32_36 dim 1 : vector<32x512xf32>, i32 -> vector<32x512xf32>
    %c7_37 = arith.constant 7 : index
    %c0_38 = arith.constant 0 : index
    %73 = vector.load %arg1[%c7_37, %c0_38] : memref<8x512xf32, #tpu.memory_space<vmem>>, vector<1x512xf32>
    %74 = vector.broadcast %73 : vector<1x512xf32> to vector<32x512xf32>
    %75 = arith.mulf %72, %74 : vector<32x512xf32>
    %76 = tpu.concatenate %47, %51, %55, %59, %42, %63, %67, %71, %75 in 0 : vector<32x512xf32>, vector<32x512xf32>, vector<32x512xf32>, vector<32x512xf32>, vector<32x512xf32>, vector<32x512xf32>, vector<32x512xf32>, vector<32x512xf32>, vector<32x512xf32> -> vector<288x512xf32>
    %77 = arith.truncf %76 : vector<288x512xf32> to vector<288x512xbf16>
    %c0_39 = arith.constant 0 : index
    %c0_40 = arith.constant 0 : index
    %78 = vector.load %arg4[%c0_39, %c0_40] : memref<32x288xbf16, #tpu.memory_space<vmem>>, vector<32x288xbf16>
    %cst_41 = arith.constant dense<0.000000e+00> : vector<32x512xf32>
    %79 = tpu.matmul %78, %77, %cst_41 {dimension_numbers = #tpu.dot_dimension_numbers<[1], [0], [0], [1], [0, 0, 1, 1], [], []>} : vector<32x288xbf16>, vector<288x512xbf16>, vector<32x512xf32> -> vector<32x512xf32>
    %c0_42 = arith.constant 0 : index
    %c0_43 = arith.constant 0 : index
    %80 = vector.load %arg5[%c0_42, %c0_43] : memref<32x1xf32, #tpu.memory_space<vmem>>, vector<32x1xf32>
    %81 = vector.broadcast %80 : vector<32x1xf32> to vector<32x512xf32>
    %82 = arith.addf %79, %81 : vector<32x512xf32>
    %cst_44 = arith.constant 0.000000e+00 : f32
    %83 = vector.broadcast %cst_44 : f32 to vector<32x512xf32>
    %84 = arith.maximumf %82, %83 : vector<32x512xf32>
    %c17_i32_45 = arith.constant 17 : i32
    %85 = tpu.dynamic_rotate %43 by %c17_i32_45 dim 1 : vector<32x512xf32>, i32 -> vector<32x512xf32>
    %c0_46 = arith.constant 0 : index
    %c0_47 = arith.constant 0 : index
    %86 = vector.load %arg1[%c0_46, %c0_47] : memref<8x512xf32, #tpu.memory_space<vmem>>, vector<1x512xf32>
    %87 = vector.broadcast %86 : vector<1x512xf32> to vector<32x512xf32>
    %88 = arith.mulf %85, %87 : vector<32x512xf32>
    %c16_i32_48 = arith.constant 16 : i32
    %89 = tpu.dynamic_rotate %43 by %c16_i32_48 dim 1 : vector<32x512xf32>, i32 -> vector<32x512xf32>
    %c1_49 = arith.constant 1 : index
    %c0_50 = arith.constant 0 : index
    %90 = vector.load %arg1[%c1_49, %c0_50] : memref<8x512xf32, #tpu.memory_space<vmem>>, vector<1x512xf32>
    %91 = vector.broadcast %90 : vector<1x512xf32> to vector<32x512xf32>
    %92 = arith.mulf %89, %91 : vector<32x512xf32>
    %c15_i32_51 = arith.constant 15 : i32
    %93 = tpu.dynamic_rotate %43 by %c15_i32_51 dim 1 : vector<32x512xf32>, i32 -> vector<32x512xf32>
    %c2_52 = arith.constant 2 : index
    %c0_53 = arith.constant 0 : index
    %94 = vector.load %arg1[%c2_52, %c0_53] : memref<8x512xf32, #tpu.memory_space<vmem>>, vector<1x512xf32>
    %95 = vector.broadcast %94 : vector<1x512xf32> to vector<32x512xf32>
    %96 = arith.mulf %93, %95 : vector<32x512xf32>
    %c1_i32_54 = arith.constant 1 : i32
    %97 = tpu.dynamic_rotate %43 by %c1_i32_54 dim 1 : vector<32x512xf32>, i32 -> vector<32x512xf32>
    %c3_55 = arith.constant 3 : index
    %c0_56 = arith.constant 0 : index
    %98 = vector.load %arg1[%c3_55, %c0_56] : memref<8x512xf32, #tpu.memory_space<vmem>>, vector<1x512xf32>
    %99 = vector.broadcast %98 : vector<1x512xf32> to vector<32x512xf32>
    %100 = arith.mulf %97, %99 : vector<32x512xf32>
    %c511_i32_57 = arith.constant 511 : i32
    %101 = tpu.dynamic_rotate %43 by %c511_i32_57 dim 1 : vector<32x512xf32>, i32 -> vector<32x512xf32>
    %c4_58 = arith.constant 4 : index
    %c0_59 = arith.constant 0 : index
    %102 = vector.load %arg1[%c4_58, %c0_59] : memref<8x512xf32, #tpu.memory_space<vmem>>, vector<1x512xf32>
    %103 = vector.broadcast %102 : vector<1x512xf32> to vector<32x512xf32>
    %104 = arith.mulf %101, %103 : vector<32x512xf32>
    %c497_i32_60 = arith.constant 497 : i32
    %105 = tpu.dynamic_rotate %43 by %c497_i32_60 dim 1 : vector<32x512xf32>, i32 -> vector<32x512xf32>
    %c5_61 = arith.constant 5 : index
    %c0_62 = arith.constant 0 : index
    %106 = vector.load %arg1[%c5_61, %c0_62] : memref<8x512xf32, #tpu.memory_space<vmem>>, vector<1x512xf32>
    %107 = vector.broadcast %106 : vector<1x512xf32> to vector<32x512xf32>
    %108 = arith.mulf %105, %107 : vector<32x512xf32>
    %c496_i32_63 = arith.constant 496 : i32
    %109 = tpu.dynamic_rotate %43 by %c496_i32_63 dim 1 : vector<32x512xf32>, i32 -> vector<32x512xf32>
    %c6_64 = arith.constant 6 : index
    %c0_65 = arith.constant 0 : index
    %110 = vector.load %arg1[%c6_64, %c0_65] : memref<8x512xf32, #tpu.memory_space<vmem>>, vector<1x512xf32>
    %111 = vector.broadcast %110 : vector<1x512xf32> to vector<32x512xf32>
    %112 = arith.mulf %109, %111 : vector<32x512xf32>
    %c495_i32_66 = arith.constant 495 : i32
    %113 = tpu.dynamic_rotate %43 by %c495_i32_66 dim 1 : vector<32x512xf32>, i32 -> vector<32x512xf32>
    %c7_67 = arith.constant 7 : index
    %c0_68 = arith.constant 0 : index
    %114 = vector.load %arg1[%c7_67, %c0_68] : memref<8x512xf32, #tpu.memory_space<vmem>>, vector<1x512xf32>
    %115 = vector.broadcast %114 : vector<1x512xf32> to vector<32x512xf32>
    %116 = arith.mulf %113, %115 : vector<32x512xf32>
    %117 = tpu.concatenate %88, %92, %96, %100, %43, %104, %108, %112, %116 in 0 : vector<32x512xf32>, vector<32x512xf32>, vector<32x512xf32>, vector<32x512xf32>, vector<32x512xf32>, vector<32x512xf32>, vector<32x512xf32>, vector<32x512xf32>, vector<32x512xf32> -> vector<288x512xf32>
    %118 = arith.truncf %117 : vector<288x512xf32> to vector<288x512xbf16>
    %c0_69 = arith.constant 0 : index
    %c0_70 = arith.constant 0 : index
    %119 = vector.load %arg6[%c0_69, %c0_70] : memref<32x288xbf16, #tpu.memory_space<vmem>>, vector<32x288xbf16>
    %cst_71 = arith.constant dense<0.000000e+00> : vector<32x512xf32>
    %120 = tpu.matmul %119, %118, %cst_71 {dimension_numbers = #tpu.dot_dimension_numbers<[1], [0], [0], [1], [0, 0, 1, 1], [], []>} : vector<32x288xbf16>, vector<288x512xbf16>, vector<32x512xf32> -> vector<32x512xf32>
    %c0_72 = arith.constant 0 : index
    %c0_73 = arith.constant 0 : index
    %121 = vector.load %arg7[%c0_72, %c0_73] : memref<32x1xf32, #tpu.memory_space<vmem>>, vector<32x1xf32>
    %122 = vector.broadcast %121 : vector<32x1xf32> to vector<32x512xf32>
    %123 = arith.addf %120, %122 : vector<32x512xf32>
    %cst_74 = arith.constant 0.000000e+00 : f32
    %124 = vector.broadcast %cst_74 : f32 to vector<32x512xf32>
    %125 = arith.maximumf %123, %124 : vector<32x512xf32>
    %c17_i32_75 = arith.constant 17 : i32
    %126 = tpu.dynamic_rotate %84 by %c17_i32_75 dim 1 : vector<32x512xf32>, i32 -> vector<32x512xf32>
    %c0_76 = arith.constant 0 : index
    %c0_77 = arith.constant 0 : index
    %127 = vector.load %arg1[%c0_76, %c0_77] : memref<8x512xf32, #tpu.memory_space<vmem>>, vector<1x512xf32>
    %128 = vector.broadcast %127 : vector<1x512xf32> to vector<32x512xf32>
    %129 = arith.mulf %126, %128 : vector<32x512xf32>
    %c16_i32_78 = arith.constant 16 : i32
    %130 = tpu.dynamic_rotate %84 by %c16_i32_78 dim 1 : vector<32x512xf32>, i32 -> vector<32x512xf32>
    %c1_79 = arith.constant 1 : index
    %c0_80 = arith.constant 0 : index
    %131 = vector.load %arg1[%c1_79, %c0_80] : memref<8x512xf32, #tpu.memory_space<vmem>>, vector<1x512xf32>
    %132 = vector.broadcast %131 : vector<1x512xf32> to vector<32x512xf32>
    %133 = arith.mulf %130, %132 : vector<32x512xf32>
    %c15_i32_81 = arith.constant 15 : i32
    %134 = tpu.dynamic_rotate %84 by %c15_i32_81 dim 1 : vector<32x512xf32>, i32 -> vector<32x512xf32>
    %c2_82 = arith.constant 2 : index
    %c0_83 = arith.constant 0 : index
    %135 = vector.load %arg1[%c2_82, %c0_83] : memref<8x512xf32, #tpu.memory_space<vmem>>, vector<1x512xf32>
    %136 = vector.broadcast %135 : vector<1x512xf32> to vector<32x512xf32>
    %137 = arith.mulf %134, %136 : vector<32x512xf32>
    %c1_i32_84 = arith.constant 1 : i32
    %138 = tpu.dynamic_rotate %84 by %c1_i32_84 dim 1 : vector<32x512xf32>, i32 -> vector<32x512xf32>
    %c3_85 = arith.constant 3 : index
    %c0_86 = arith.constant 0 : index
    %139 = vector.load %arg1[%c3_85, %c0_86] : memref<8x512xf32, #tpu.memory_space<vmem>>, vector<1x512xf32>
    %140 = vector.broadcast %139 : vector<1x512xf32> to vector<32x512xf32>
    %141 = arith.mulf %138, %140 : vector<32x512xf32>
    %c511_i32_87 = arith.constant 511 : i32
    %142 = tpu.dynamic_rotate %84 by %c511_i32_87 dim 1 : vector<32x512xf32>, i32 -> vector<32x512xf32>
    %c4_88 = arith.constant 4 : index
    %c0_89 = arith.constant 0 : index
    %143 = vector.load %arg1[%c4_88, %c0_89] : memref<8x512xf32, #tpu.memory_space<vmem>>, vector<1x512xf32>
    %144 = vector.broadcast %143 : vector<1x512xf32> to vector<32x512xf32>
    %145 = arith.mulf %142, %144 : vector<32x512xf32>
    %c497_i32_90 = arith.constant 497 : i32
    %146 = tpu.dynamic_rotate %84 by %c497_i32_90 dim 1 : vector<32x512xf32>, i32 -> vector<32x512xf32>
    %c5_91 = arith.constant 5 : index
    %c0_92 = arith.constant 0 : index
    %147 = vector.load %arg1[%c5_91, %c0_92] : memref<8x512xf32, #tpu.memory_space<vmem>>, vector<1x512xf32>
    %148 = vector.broadcast %147 : vector<1x512xf32> to vector<32x512xf32>
    %149 = arith.mulf %146, %148 : vector<32x512xf32>
    %c496_i32_93 = arith.constant 496 : i32
    %150 = tpu.dynamic_rotate %84 by %c496_i32_93 dim 1 : vector<32x512xf32>, i32 -> vector<32x512xf32>
    %c6_94 = arith.constant 6 : index
    %c0_95 = arith.constant 0 : index
    %151 = vector.load %arg1[%c6_94, %c0_95] : memref<8x512xf32, #tpu.memory_space<vmem>>, vector<1x512xf32>
    %152 = vector.broadcast %151 : vector<1x512xf32> to vector<32x512xf32>
    %153 = arith.mulf %150, %152 : vector<32x512xf32>
    %c495_i32_96 = arith.constant 495 : i32
    %154 = tpu.dynamic_rotate %84 by %c495_i32_96 dim 1 : vector<32x512xf32>, i32 -> vector<32x512xf32>
    %c7_97 = arith.constant 7 : index
    %c0_98 = arith.constant 0 : index
    %155 = vector.load %arg1[%c7_97, %c0_98] : memref<8x512xf32, #tpu.memory_space<vmem>>, vector<1x512xf32>
    %156 = vector.broadcast %155 : vector<1x512xf32> to vector<32x512xf32>
    %157 = arith.mulf %154, %156 : vector<32x512xf32>
    %158 = tpu.concatenate %129, %133, %137, %141, %84, %145, %149, %153, %157 in 0 : vector<32x512xf32>, vector<32x512xf32>, vector<32x512xf32>, vector<32x512xf32>, vector<32x512xf32>, vector<32x512xf32>, vector<32x512xf32>, vector<32x512xf32>, vector<32x512xf32> -> vector<288x512xf32>
    %159 = arith.truncf %158 : vector<288x512xf32> to vector<288x512xbf16>
    %c0_99 = arith.constant 0 : index
    %c0_100 = arith.constant 0 : index
    %160 = vector.load %arg8[%c0_99, %c0_100] : memref<16x288xbf16, #tpu.memory_space<vmem>>, vector<16x288xbf16>
    %cst_101 = arith.constant dense<0.000000e+00> : vector<16x512xf32>
    %161 = tpu.matmul %160, %159, %cst_101 {dimension_numbers = #tpu.dot_dimension_numbers<[1], [0], [0], [1], [0, 0, 1, 1], [], []>} : vector<16x288xbf16>, vector<288x512xbf16>, vector<16x512xf32> -> vector<16x512xf32>
    %c0_102 = arith.constant 0 : index
    %c0_103 = arith.constant 0 : index
    %162 = vector.load %arg9[%c0_102, %c0_103] : memref<16x1xf32, #tpu.memory_space<vmem>>, vector<16x1xf32>
    %163 = vector.broadcast %162 : vector<16x1xf32> to vector<16x512xf32>
    %164 = arith.addf %161, %163 : vector<16x512xf32>
    %c0_104 = arith.constant 0 : index
    %c0_105 = arith.constant 0 : index
    %165 = vector.load %arg12[%c0_104, %c0_105] : memref<16x512xf32, #tpu.memory_space<vmem>>, vector<16x512xf32>
    tpu.vector_store %arg12[%c0_104, %c0_105], %164 {strides = array<i32>} : memref<16x512xf32, #tpu.memory_space<vmem>>, vector<16x512xf32>,
    %c17_i32_106 = arith.constant 17 : i32
    %166 = tpu.dynamic_rotate %125 by %c17_i32_106 dim 1 : vector<32x512xf32>, i32 -> vector<32x512xf32>
    %c0_107 = arith.constant 0 : index
    %c0_108 = arith.constant 0 : index
    %167 = vector.load %arg1[%c0_107, %c0_108] : memref<8x512xf32, #tpu.memory_space<vmem>>, vector<1x512xf32>
    %168 = vector.broadcast %167 : vector<1x512xf32> to vector<32x512xf32>
    %169 = arith.mulf %166, %168 : vector<32x512xf32>
    %c16_i32_109 = arith.constant 16 : i32
    %170 = tpu.dynamic_rotate %125 by %c16_i32_109 dim 1 : vector<32x512xf32>, i32 -> vector<32x512xf32>
    %c1_110 = arith.constant 1 : index
    %c0_111 = arith.constant 0 : index
    %171 = vector.load %arg1[%c1_110, %c0_111] : memref<8x512xf32, #tpu.memory_space<vmem>>, vector<1x512xf32>
    %172 = vector.broadcast %171 : vector<1x512xf32> to vector<32x512xf32>
    %173 = arith.mulf %170, %172 : vector<32x512xf32>
    %c15_i32_112 = arith.constant 15 : i32
    %174 = tpu.dynamic_rotate %125 by %c15_i32_112 dim 1 : vector<32x512xf32>, i32 -> vector<32x512xf32>
    %c2_113 = arith.constant 2 : index
    %c0_114 = arith.constant 0 : index
    %175 = vector.load %arg1[%c2_113, %c0_114] : memref<8x512xf32, #tpu.memory_space<vmem>>, vector<1x512xf32>
    %176 = vector.broadcast %175 : vector<1x512xf32> to vector<32x512xf32>
    %177 = arith.mulf %174, %176 : vector<32x512xf32>
    %c1_i32_115 = arith.constant 1 : i32
    %178 = tpu.dynamic_rotate %125 by %c1_i32_115 dim 1 : vector<32x512xf32>, i32 -> vector<32x512xf32>
    %c3_116 = arith.constant 3 : index
    %c0_117 = arith.constant 0 : index
    %179 = vector.load %arg1[%c3_116, %c0_117] : memref<8x512xf32, #tpu.memory_space<vmem>>, vector<1x512xf32>
    %180 = vector.broadcast %179 : vector<1x512xf32> to vector<32x512xf32>
    %181 = arith.mulf %178, %180 : vector<32x512xf32>
    %c511_i32_118 = arith.constant 511 : i32
    %182 = tpu.dynamic_rotate %125 by %c511_i32_118 dim 1 : vector<32x512xf32>, i32 -> vector<32x512xf32>
    %c4_119 = arith.constant 4 : index
    %c0_120 = arith.constant 0 : index
    %183 = vector.load %arg1[%c4_119, %c0_120] : memref<8x512xf32, #tpu.memory_space<vmem>>, vector<1x512xf32>
    %184 = vector.broadcast %183 : vector<1x512xf32> to vector<32x512xf32>
    %185 = arith.mulf %182, %184 : vector<32x512xf32>
    %c497_i32_121 = arith.constant 497 : i32
    %186 = tpu.dynamic_rotate %125 by %c497_i32_121 dim 1 : vector<32x512xf32>, i32 -> vector<32x512xf32>
    %c5_122 = arith.constant 5 : index
    %c0_123 = arith.constant 0 : index
    %187 = vector.load %arg1[%c5_122, %c0_123] : memref<8x512xf32, #tpu.memory_space<vmem>>, vector<1x512xf32>
    %188 = vector.broadcast %187 : vector<1x512xf32> to vector<32x512xf32>
    %189 = arith.mulf %186, %188 : vector<32x512xf32>
    %c496_i32_124 = arith.constant 496 : i32
    %190 = tpu.dynamic_rotate %125 by %c496_i32_124 dim 1 : vector<32x512xf32>, i32 -> vector<32x512xf32>
    %c6_125 = arith.constant 6 : index
    %c0_126 = arith.constant 0 : index
    %191 = vector.load %arg1[%c6_125, %c0_126] : memref<8x512xf32, #tpu.memory_space<vmem>>, vector<1x512xf32>
    %192 = vector.broadcast %191 : vector<1x512xf32> to vector<32x512xf32>
    %193 = arith.mulf %190, %192 : vector<32x512xf32>
    %c495_i32_127 = arith.constant 495 : i32
    %194 = tpu.dynamic_rotate %125 by %c495_i32_127 dim 1 : vector<32x512xf32>, i32 -> vector<32x512xf32>
    %c7_128 = arith.constant 7 : index
    %c0_129 = arith.constant 0 : index
    %195 = vector.load %arg1[%c7_128, %c0_129] : memref<8x512xf32, #tpu.memory_space<vmem>>, vector<1x512xf32>
    %196 = vector.broadcast %195 : vector<1x512xf32> to vector<32x512xf32>
    %197 = arith.mulf %194, %196 : vector<32x512xf32>
    %198 = tpu.concatenate %169, %173, %177, %181, %125, %185, %189, %193, %197 in 0 : vector<32x512xf32>, vector<32x512xf32>, vector<32x512xf32>, vector<32x512xf32>, vector<32x512xf32>, vector<32x512xf32>, vector<32x512xf32>, vector<32x512xf32>, vector<32x512xf32> -> vector<288x512xf32>
    %199 = arith.truncf %198 : vector<288x512xf32> to vector<288x512xbf16>
    %c0_130 = arith.constant 0 : index
    %c0_131 = arith.constant 0 : index
    %200 = vector.load %arg10[%c0_130, %c0_131] : memref<24x288xbf16, #tpu.memory_space<vmem>>, vector<24x288xbf16>
    %cst_132 = arith.constant dense<0.000000e+00> : vector<24x512xf32>
    %201 = tpu.matmul %200, %199, %cst_132 {dimension_numbers = #tpu.dot_dimension_numbers<[1], [0], [0], [1], [0, 0, 1, 1], [], []>} : vector<24x288xbf16>, vector<288x512xbf16>, vector<24x512xf32> -> vector<24x512xf32>
    %c0_133 = arith.constant 0 : index
    %c0_134 = arith.constant 0 : index
    %202 = vector.load %arg11[%c0_133, %c0_134] : memref<24x1xf32, #tpu.memory_space<vmem>>, vector<24x1xf32>
    %203 = vector.broadcast %202 : vector<24x1xf32> to vector<24x512xf32>
    %204 = arith.addf %201, %203 : vector<24x512xf32>
    %205 = arith.negf %204 : vector<24x512xf32>
    %206 = math.exp %205 : vector<24x512xf32>
    %cst_135 = arith.constant 1.000000e+00 : f32
    %207 = vector.broadcast %cst_135 : f32 to vector<24x512xf32>
    %208 = arith.addf %207, %206 : vector<24x512xf32>
    %209 = arith.divf %207, %208 : vector<24x512xf32>
    %c0_136 = arith.constant 0 : index
    %c0_137 = arith.constant 0 : index
    %210 = vector.load %arg13[%c0_136, %c0_137] : memref<24x512xf32, #tpu.memory_space<vmem>>, vector<24x512xf32>
    tpu.vector_store %arg13[%c0_136, %c0_137], %209 {strides = array<i32>} : memref<24x512xf32, #tpu.memory_space<vmem>>, vector<24x512xf32>,
    return
  }
}

</mosaic_0001>

<llo_original>
// kernel: test_head_forward.1
$region0: #{test_head_forward.1}
  #allocation0 [shape = 'u32[]', space=smem, size = 0x4, offset = 0x4, fixed_abs, tag = 'smem constant byte address 0x4 - core index']
  #allocation1 [shape = 'u32[144,128]{1,0:T(1,128)}', space=vmem, size = 0x12000, scoped, tag = 'internal scratch']
  %s0 = inlined_call_operand.vmem [shape: f32[8,512], index: 0, kind: input, shape index: {}]
  %s1 = inlined_call_operand.vmem [shape: f32[8,512], index: 1, kind: input, shape index: {}]
  %s2 = inlined_call_operand.vmem [shape: bf16[64,72], index: 2, kind: input, shape index: {}]
  %s3 = inlined_call_operand.vmem [shape: f32[64,1], index: 3, kind: input, shape index: {}]
  %s4 = inlined_call_operand.vmem [shape: bf16[32,288], index: 4, kind: input, shape index: {}]
  %s5 = inlined_call_operand.vmem [shape: f32[32,1], index: 5, kind: input, shape index: {}]
  %s6 = inlined_call_operand.vmem [shape: bf16[32,288], index: 6, kind: input, shape index: {}]
  %s7 = inlined_call_operand.vmem [shape: f32[32,1], index: 7, kind: input, shape index: {}]
  %s8 = inlined_call_operand.vmem [shape: bf16[16,288], index: 8, kind: input, shape index: {}]
  %s9 = inlined_call_operand.vmem [shape: f32[16,1], index: 9, kind: input, shape index: {}]
  %s10 = inlined_call_operand.vmem [shape: bf16[24,288], index: 10, kind: input, shape index: {}]
  %s11 = inlined_call_operand.vmem [shape: f32[24,1], index: 11, kind: input, shape index: {}]
  %s12 = inlined_call_operand.vmem [shape: f32[16,512], index: 12, kind: output, shape index: {0}]
  %s13 = inlined_call_operand.vmem [shape: f32[24,512], index: 13, kind: output, shape index: {1}]
  %14 = xla_tuple %s12, %s13
  %s15 = sld [smem:[#allocation0]]
  $region66: #{test_head_forward.1} parent=0
    _
  %s17 = ssub.s32 1, %s15
  %s18 = scalar_select 0, %s17, %s15
  // Predicated region
  $region2: #{test_head_forward.1} parent=0 // pred_check
    _
  $region3: #{test_head_forward.1} parent=0 // pred_check_branch
    %20 = sbr.rel (0) target = $region5
  $region4: #{test_head_forward.1} parent=0 // pred_region
    _
  $region5: #{test_head_forward.1} parent=0 // pred_fallthru
    _
  // Predicated region
  $region6: #{test_head_forward.1} parent=0 // pred_check
    _
  $region7: #{test_head_forward.1} parent=0 // pred_check_branch
    %22 = sbr.rel (0) target = $region9
  $region8: #{test_head_forward.1} parent=0 // pred_region
    _
  $region9: #{test_head_forward.1} parent=0 // pred_fallthru
    _
  // Predicated region
  $region10: #{test_head_forward.1} parent=0 // pred_check
    _
  $region11: #{test_head_forward.1} parent=0 // pred_check_branch
    %24 = sbr.rel (0) target = $region13
  $region12: #{test_head_forward.1} parent=0 // pred_region
    _
  $region13: #{test_head_forward.1} parent=0 // pred_fallthru
    _
  // Predicated region
  $region14: #{test_head_forward.1} parent=0 // pred_check
    _
  $region15: #{test_head_forward.1} parent=0 // pred_check_branch
    %26 = sbr.rel (0) target = $region17
  $region16: #{test_head_forward.1} parent=0 // pred_region
    _
  $region17: #{test_head_forward.1} parent=0 // pred_fallthru
    _
  // Predicated region
  $region18: #{test_head_forward.1} parent=0 // pred_check
    _
  $region19: #{test_head_forward.1} parent=0 // pred_check_branch
    %28 = sbr.rel (0) target = $region21
  $region20: #{test_head_forward.1} parent=0 // pred_region
    _
  $region21: #{test_head_forward.1} parent=0 // pred_fallthru
    _
  // Predicated region
  $region22: #{test_head_forward.1} parent=0 // pred_check
    _
  $region23: #{test_head_forward.1} parent=0 // pred_check_branch
    %30 = sbr.rel (0) target = $region25
  $region24: #{test_head_forward.1} parent=0 // pred_region
    _
  $region25: #{test_head_forward.1} parent=0 // pred_fallthru
    _
  // Predicated region
  $region26: #{test_head_forward.1} parent=0 // pred_check
    _
  $region27: #{test_head_forward.1} parent=0 // pred_check_branch
    %32 = sbr.rel (0) target = $region29
  $region28: #{test_head_forward.1} parent=0 // pred_region
    _
  $region29: #{test_head_forward.1} parent=0 // pred_fallthru
    _
  // Predicated region
  $region30: #{test_head_forward.1} parent=0 // pred_check
    _
  $region31: #{test_head_forward.1} parent=0 // pred_check_branch
    %34 = sbr.rel (0) target = $region33
  $region32: #{test_head_forward.1} parent=0 // pred_region
    _
  $region33: #{test_head_forward.1} parent=0 // pred_fallthru
    _
  // Predicated region
  $region34: #{test_head_forward.1} parent=0 // pred_check
    _
  $region35: #{test_head_forward.1} parent=0 // pred_check_branch
    %36 = sbr.rel (0) target = $region37
  $region36: #{test_head_forward.1} parent=0 // pred_region
    _
  $region37: #{test_head_forward.1} parent=0 // pred_fallthru
    _
  // Predicated region
  $region38: #{test_head_forward.1} parent=0 // pred_check
    _
  $region39: #{test_head_forward.1} parent=0 // pred_check_branch
    %38 = sbr.rel (0) target = $region41
  $region40: #{test_head_forward.1} parent=0 // pred_region
    _
  $region41: #{test_head_forward.1} parent=0 // pred_fallthru
    _
  // Predicated region
  $region42: #{test_head_forward.1} parent=0 // pred_check
    _
  $region43: #{test_head_forward.1} parent=0 // pred_check_branch
    %40 = sbr.rel (0) target = $region45
  $region44: #{test_head_forward.1} parent=0 // pred_region
    _
  $region45: #{test_head_forward.1} parent=0 // pred_fallthru
    _
  // Predicated region
  $region46: #{test_head_forward.1} parent=0 // pred_check
    _
  $region47: #{test_head_forward.1} parent=0 // pred_check_branch
    %42 = sbr.rel (0) target = $region49
  $region48: #{test_head_forward.1} parent=0 // pred_region
    _
  $region49: #{test_head_forward.1} parent=0 // pred_fallthru
    _
  %v44 = vld [vmem:[%s0] sm:$0xff]
  %v45 = vld [vmem:[%s0 + $0x8] sm:$0xff]
  %v46 = vld [vmem:[%s0 + $0x10] sm:$0xff]
  %v47 = vld [vmem:[%s0 + $0x18] sm:$0xff]
  %48 = vrot.lane.b32.xlu0 %v44, 17
  %v49 = vpop.permute.xlu0 %48
  %50 = vrot.lane.b32.xlu0 %v45, 17
  %v51 = vpop.permute.xlu0 %50
  %52 = vrot.lane.b32.xlu0 %v46, 17
  %v53 = vpop.permute.xlu0 %52
  %54 = vrot.lane.b32.xlu0 %v47, 17
  %v55 = vpop.permute.xlu0 %54
  %v56 = vlaneseq
  %v57 = vand.u32 %v56, 127
  %vm58 = vcmp.lt.s32.totalorder %v57, 17
  %v59 = vsel %vm58, %v53, %v55
  %v60 = vsel %vm58, %v51, %v53
  %v61 = vsel %vm58, %v49, %v51
  %v62 = vsel %vm58, %v55, %v49
  %v63 = vld [vmem:[%s1] ss:$8 sm:$0xf]
  %v65 = vlaneseq
  %v66 = vshrl.u32 %v65, 7
  %v67 = vsub.s32 0, %v66
  %v68 = vrot.slane %v63, %v67
  %v69 = vlaneseq
  %v70 = vshrl.u32 %v69, 7
  %v71 = vsub.s32 1, %v70
  %v72 = vrot.slane %v63, %v71
  %v73 = vlaneseq
  %v74 = vshrl.u32 %v73, 7
  %v75 = vsub.s32 2, %v74
  %v76 = vrot.slane %v63, %v75
  %v77 = vlaneseq
  %v78 = vshrl.u32 %v77, 7
  %v79 = vsub.s32 3, %v78
  %v80 = vrot.slane %v63, %v79
  %v85 = vmul.f32 %v62, %v68
  %v86 = vmul.f32 %v61, %v72
  %v87 = vmul.f32 %v60, %v76
  %v88 = vmul.f32 %v59, %v80
  %89 = vrot.lane.b32.xlu0 %v44, 16
  %v90 = vpop.permute.xlu0 %89
  %91 = vrot.lane.b32.xlu0 %v45, 16
  %v92 = vpop.permute.xlu0 %91
  %93 = vrot.lane.b32.xlu0 %v46, 16
  %v94 = vpop.permute.xlu0 %93
  %95 = vrot.lane.b32.xlu0 %v47, 16
  %v96 = vpop.permute.xlu0 %95
  %vm97 = vcmp.lt.s32.totalorder %v57, 16
  %v98 = vsel %vm97, %v94, %v96
  %v99 = vsel %vm97, %v92, %v94
  %v100 = vsel %vm97, %v90, %v92
  %v101 = vsel %vm97, %v96, %v90
  %s102 = scalar_lea.vmem %s1, 1
  %v103 = vld [vmem:[%s102] ss:$8 sm:$0xf]
  %v105 = vlaneseq
  %v106 = vshrl.u32 %v105, 7
  %v107 = vsub.s32 0, %v106
  %v108 = vrot.slane %v103, %v107
  %v109 = vlaneseq
  %v110 = vshrl.u32 %v109, 7
  %v111 = vsub.s32 1, %v110
  %v112 = vrot.slane %v103, %v111
  %v113 = vlaneseq
  %v114 = vshrl.u32 %v113, 7
  %v115 = vsub.s32 2, %v114
  %v116 = vrot.slane %v103, %v115
  %v117 = vlaneseq
  %v118 = vshrl.u32 %v117, 7
  %v119 = vsub.s32 3, %v118
  %v120 = vrot.slane %v103, %v119
  %v125 = vmul.f32 %v101, %v108
  %v126 = vmul.f32 %v100, %v112
  %v127 = vmul.f32 %v99, %v116
  %v128 = vmul.f32 %v98, %v120
  %129 = vrot.lane.b32.xlu0 %v44, 15
  %v130 = vpop.permute.xlu0 %129
  %131 = vrot.lane.b32.xlu0 %v45, 15
  %v132 = vpop.permute.xlu0 %131
  %133 = vrot.lane.b32.xlu0 %v46, 15
  %v134 = vpop.permute.xlu0 %133
  %135 = vrot.lane.b32.xlu0 %v47, 15
  %v136 = vpop.permute.xlu0 %135
  %vm137 = vcmp.lt.s32.totalorder %v57, 15
  %v138 = vsel %vm137, %v134, %v136
  %v139 = vsel %vm137, %v132, %v134
  %v140 = vsel %vm137, %v130, %v132
  %v141 = vsel %vm137, %v136, %v130
  %s142 = scalar_lea.vmem %s1, 2
  %v143 = vld [vmem:[%s142] ss:$8 sm:$0xf]
  %v145 = vlaneseq
  %v146 = vshrl.u32 %v145, 7
  %v147 = vsub.s32 0, %v146
  %v148 = vrot.slane %v143, %v147
  %v149 = vlaneseq
  %v150 = vshrl.u32 %v149, 7
  %v151 = vsub.s32 1, %v150
  %v152 = vrot.slane %v143, %v151
  %v153 = vlaneseq
  %v154 = vshrl.u32 %v153, 7
  %v155 = vsub.s32 2, %v154
  %v156 = vrot.slane %v143, %v155
  %v157 = vlaneseq
  %v158 = vshrl.u32 %v157, 7
  %v159 = vsub.s32 3, %v158
  %v160 = vrot.slane %v143, %v159
  %v165 = vmul.f32 %v141, %v148
  %v166 = vmul.f32 %v140, %v152
  %v167 = vmul.f32 %v139, %v156
  %v168 = vmul.f32 %v138, %v160
  %169 = vrot.lane.b32.xlu0 %v44, 1
  %v170 = vpop.permute.xlu0 %169
  %171 = vrot.lane.b32.xlu0 %v45, 1
  %v172 = vpop.permute.xlu0 %171
  %173 = vrot.lane.b32.xlu0 %v46, 1
  %v174 = vpop.permute.xlu0 %173
  %175 = vrot.lane.b32.xlu0 %v47, 1
  %v176 = vpop.permute.xlu0 %175
  %vm177 = vcmp.lt.s32.totalorder %v57, 1
  %v178 = vsel %vm177, %v174, %v176
  %v179 = vsel %vm177, %v172, %v174
  %v180 = vsel %vm177, %v170, %v172
  %v181 = vsel %vm177, %v176, %v170
  %s182 = scalar_lea.vmem %s1, 3
  %v183 = vld [vmem:[%s182] ss:$8 sm:$0xf]
  %v185 = vlaneseq
  %v186 = vshrl.u32 %v185, 7
  %v187 = vsub.s32 0, %v186
  %v188 = vrot.slane %v183, %v187
  %v189 = vlaneseq
  %v190 = vshrl.u32 %v189, 7
  %v191 = vsub.s32 1, %v190
  %v192 = vrot.slane %v183, %v191
  %v193 = vlaneseq
  %v194 = vshrl.u32 %v193, 7
  %v195 = vsub.s32 2, %v194
  %v196 = vrot.slane %v183, %v195
  %v197 = vlaneseq
  %v198 = vshrl.u32 %v197, 7
  %v199 = vsub.s32 3, %v198
  %v200 = vrot.slane %v183, %v199
  %v205 = vmul.f32 %v181, %v188
  %v206 = vmul.f32 %v180, %v192
  %v207 = vmul.f32 %v179, %v196
  %v208 = vmul.f32 %v178, %v200
  %209 = vrot.lane.b32.xlu0 %v44, 127
  %v210 = vpop.permute.xlu0 %209
  %211 = vrot.lane.b32.xlu0 %v45, 127
  %v212 = vpop.permute.xlu0 %211
  %213 = vrot.lane.b32.xlu0 %v46, 127
  %v214 = vpop.permute.xlu0 %213
  %215 = vrot.lane.b32.xlu0 %v47, 127
  %v216 = vpop.permute.xlu0 %215
  %vm217 = vcmp.lt.s32.totalorder %v57, 127
  %v218 = vsel %vm217, %v214, %v216
  %v219 = vsel %vm217, %v212, %v214
  %v220 = vsel %vm217, %v210, %v212
  %v221 = vsel %vm217, %v216, %v210
  %s222 = scalar_lea.vmem %s1, 4
  %v223 = vld [vmem:[%s222] ss:$8 sm:$0xf]
  %v225 = vlaneseq
  %v226 = vshrl.u32 %v225, 7
  %v227 = vsub.s32 0, %v226
  %v228 = vrot.slane %v223, %v227
  %v229 = vlaneseq
  %v230 = vshrl.u32 %v229, 7
  %v231 = vsub.s32 1, %v230
  %v232 = vrot.slane %v223, %v231
  %v233 = vlaneseq
  %v234 = vshrl.u32 %v233, 7
  %v235 = vsub.s32 2, %v234
  %v236 = vrot.slane %v223, %v235
  %v237 = vlaneseq
  %v238 = vshrl.u32 %v237, 7
  %v239 = vsub.s32 3, %v238
  %v240 = vrot.slane %v223, %v239
  %v245 = vmul.f32 %v220, %v228
  %v246 = vmul.f32 %v219, %v232
  %v247 = vmul.f32 %v218, %v236
  %v248 = vmul.f32 %v221, %v240
  %249 = vrot.lane.b32.xlu0 %v44, 113
  %v250 = vpop.permute.xlu0 %249
  %251 = vrot.lane.b32.xlu0 %v45, 113
  %v252 = vpop.permute.xlu0 %251
  %253 = vrot.lane.b32.xlu0 %v46, 113
  %v254 = vpop.permute.xlu0 %253
  %255 = vrot.lane.b32.xlu0 %v47, 113
  %v256 = vpop.permute.xlu0 %255
  %vm257 = vcmp.lt.s32.totalorder %v57, 113
  %v258 = vsel %vm257, %v254, %v256
  %v259 = vsel %vm257, %v252, %v254
  %v260 = vsel %vm257, %v250, %v252
  %v261 = vsel %vm257, %v256, %v250
  %s262 = scalar_lea.vmem %s1, 5
  %v263 = vld [vmem:[%s262] ss:$8 sm:$0xf]
  %v265 = vlaneseq
  %v266 = vshrl.u32 %v265, 7
  %v267 = vsub.s32 0, %v266
  %v268 = vrot.slane %v263, %v267
  %v269 = vlaneseq
  %v270 = vshrl.u32 %v269, 7
  %v271 = vsub.s32 1, %v270
  %v272 = vrot.slane %v263, %v271
  %v273 = vlaneseq
  %v274 = vshrl.u32 %v273, 7
  %v275 = vsub.s32 2, %v274
  %v276 = vrot.slane %v263, %v275
  %v277 = vlaneseq
  %v278 = vshrl.u32 %v277, 7
  %v279 = vsub.s32 3, %v278
  %v280 = vrot.slane %v263, %v279
  %v285 = vmul.f32 %v260, %v268
  %v286 = vmul.f32 %v259, %v272
  %v287 = vmul.f32 %v258, %v276
  %v288 = vmul.f32 %v261, %v280
  %289 = vrot.lane.b32.xlu0 %v44, 112
  %v290 = vpop.permute.xlu0 %289
  %291 = vrot.lane.b32.xlu0 %v45, 112
  %v292 = vpop.permute.xlu0 %291
  %293 = vrot.lane.b32.xlu0 %v46, 112
  %v294 = vpop.permute.xlu0 %293
  %295 = vrot.lane.b32.xlu0 %v47, 112
  %v296 = vpop.permute.xlu0 %295
  %vm297 = vcmp.lt.s32.totalorder %v57, 112
  %v298 = vsel %vm297, %v294, %v296
  %v299 = vsel %vm297, %v292, %v294
  %v300 = vsel %vm297, %v290, %v292
  %v301 = vsel %vm297, %v296, %v290
  %s302 = scalar_lea.vmem %s1, 6
  %v303 = vld [vmem:[%s302] ss:$8 sm:$0xf]
  %v305 = vlaneseq
  %v306 = vshrl.u32 %v305, 7
  %v307 = vsub.s32 0, %v306
  %v308 = vrot.slane %v303, %v307
  %v309 = vlaneseq
  %v310 = vshrl.u32 %v309, 7
  %v311 = vsub.s32 1, %v310
  %v312 = vrot.slane %v303, %v311
  %v313 = vlaneseq
  %v314 = vshrl.u32 %v313, 7
  %v315 = vsub.s32 2, %v314
  %v316 = vrot.slane %v303, %v315
  %v317 = vlaneseq
  %v318 = vshrl.u32 %v317, 7
  %v319 = vsub.s32 3, %v318
  %v320 = vrot.slane %v303, %v319
  %v325 = vmul.f32 %v300, %v308
  %v326 = vmul.f32 %v299, %v312
  %v327 = vmul.f32 %v298, %v316
  %v328 = vmul.f32 %v301, %v320
  %329 = vrot.lane.b32.xlu0 %v44, 111
  %v330 = vpop.permute.xlu0 %329
  %331 = vrot.lane.b32.xlu0 %v45, 111
  %v332 = vpop.permute.xlu0 %331
  %333 = vrot.lane.b32.xlu0 %v46, 111
  %v334 = vpop.permute.xlu0 %333
  %335 = vrot.lane.b32.xlu0 %v47, 111
  %v336 = vpop.permute.xlu0 %335
  %vm337 = vcmp.lt.s32.totalorder %v57, 111
  %v338 = vsel %vm337, %v334, %v336
  %v339 = vsel %vm337, %v332, %v334
  %v340 = vsel %vm337, %v330, %v332
  %v341 = vsel %vm337, %v336, %v330
  %s342 = scalar_lea.vmem %s1, 7
  %v343 = vld [vmem:[%s342] ss:$8 sm:$0xf]
  %v345 = vlaneseq
  %v346 = vshrl.u32 %v345, 7
  %v347 = vsub.s32 0, %v346
  %v348 = vrot.slane %v343, %v347
  %v349 = vlaneseq
  %v350 = vshrl.u32 %v349, 7
  %v351 = vsub.s32 1, %v350
  %v352 = vrot.slane %v343, %v351
  %v353 = vlaneseq
  %v354 = vshrl.u32 %v353, 7
  %v355 = vsub.s32 2, %v354
  %v356 = vrot.slane %v343, %v355
  %v357 = vlaneseq
  %v358 = vshrl.u32 %v357, 7
  %v359 = vsub.s32 3, %v358
  %v360 = vrot.slane %v343, %v359
  %v365 = vmul.f32 %v340, %v348
  %v366 = vmul.f32 %v339, %v352
  %v367 = vmul.f32 %v338, %v356
  %v368 = vmul.f32 %v341, %v360
  %v369 = vpack.c.bf16 %v125, %v85
  %v370 = vpack.c.bf16 %v126, %v86
  %v371 = vpack.c.bf16 %v127, %v87
  %v372 = vpack.c.bf16 %v128, %v88
  %v373 = vpack.c.bf16 %v205, %v165
  %v374 = vpack.c.bf16 %v206, %v166
  %v375 = vpack.c.bf16 %v207, %v167
  %v376 = vpack.c.bf16 %v208, %v168
  %v377 = vpack.c.bf16 %v245, %v44
  %v378 = vpack.c.bf16 %v246, %v45
  %v379 = vpack.c.bf16 %v247, %v46
  %v380 = vpack.c.bf16 %v248, %v47
  %v381 = vpack.c.bf16 %v325, %v285
  %v382 = vpack.c.bf16 %v326, %v286
  %v383 = vpack.c.bf16 %v327, %v287
  %v384 = vpack.c.bf16 %v328, %v288
  %v385 = vpack.c.bf16 %v365, %v365
  %v386 = vpack.c.bf16 %v366, %v366
  %v387 = vpack.c.bf16 %v367, %v367
  %v388 = vpack.c.bf16 %v368, %v368
  %v389 = vld [vmem:[%s2] sm:$0xf]
  %v390 = vld [vmem:[%s2 + $0x4] sm:$0xf]
  %v391 = vld [vmem:[%s2 + $0x8] sm:$0xf]
  %v392 = vld [vmem:[%s2 + $0xc] sm:$0xf]
  %v393 = vld [vmem:[%s2 + $0x10] sm:$0xf]
  %v394 = vld [vmem:[%s2 + $0x14] sm:$0xf]
  %v395 = vld [vmem:[%s2 + $0x18] sm:$0xf]
  %v396 = vld [vmem:[%s2 + $0x1c] sm:$0xf]
  %v397 = vld [vmem:[%s3] sm:$0xff]
  %v398 = vld [vmem:[%s3 + $0x8] sm:$0xff]
  %v399 = vld [vmem:[%s3 + $0x10] sm:$0xff]
  %v400 = vld [vmem:[%s3 + $0x18] sm:$0xff]
  %v401 = vld [vmem:[%s3 + $0x20] sm:$0xff]
  %v402 = vld [vmem:[%s3 + $0x28] sm:$0xff]
  %v403 = vld [vmem:[%s3 + $0x30] sm:$0xff]
  %v404 = vld [vmem:[%s3 + $0x38] sm:$0xff]
  %406 = vset.pattern.permute.xlu0 0
  %407 = vperm.xlu0 %406, %v397
  %v408 = vpop.permute.xlu0 %407
  %411 = vset.pattern.permute.xlu0 0
  %412 = vperm.xlu0 %411, %v398
  %v413 = vpop.permute.xlu0 %412
  %416 = vset.pattern.permute.xlu0 0
  %417 = vperm.xlu0 %416, %v399
  %v418 = vpop.permute.xlu0 %417
  %421 = vset.pattern.permute.xlu0 0
  %422 = vperm.xlu0 %421, %v400
  %v423 = vpop.permute.xlu0 %422
  %426 = vset.pattern.permute.xlu0 0
  %427 = vperm.xlu0 %426, %v401
  %v428 = vpop.permute.xlu0 %427
  %431 = vset.pattern.permute.xlu0 0
  %432 = vperm.xlu0 %431, %v402
  %v433 = vpop.permute.xlu0 %432
  %436 = vset.pattern.permute.xlu0 0
  %437 = vperm.xlu0 %436, %v403
  %v438 = vpop.permute.xlu0 %437
  %441 = vset.pattern.permute.xlu0 0
  %442 = vperm.xlu0 %441, %v404
  %v443 = vpop.permute.xlu0 %442
  %v453 = vunpack.c.l.b16 %v389
  %v454 = vunpack.c.l.b16 %v390
  %v455 = vunpack.c.l.b16 %v391
  %v456 = vunpack.c.l.b16 %v392
  %v457 = vunpack.c.l.b16 %v393
  %v458 = vunpack.c.l.b16 %v394
  %v459 = vunpack.c.l.b16 %v395
  %v460 = vunpack.c.l.b16 %v396
  %v461 = vpack.c.b16 %v454, %v453
  %v462 = vpack.c.b16 %v456, %v455
  %v463 = vpack.c.b16 %v458, %v457
  %v464 = vpack.c.b16 %v460, %v459
  %vm465 = vcmask 588800
  %v467 = vsel %vm465, %v461, 0
  %v470 = vsel %vm465, %v462, 0
  %v473 = vsel %vm465, %v463, 0
  %v476 = vsel %vm465, %v464, 0
  %vm478 = vcmask 1043456
  %v480 = vsel %vm478, %v385, 0
  %v483 = vsel %vm478, %v386, 0
  %v486 = vsel %vm478, %v387, 0
  %v489 = vsel %vm478, %v388, 0
  %491 = vmatprep.subr.bf16.mxu0 %v370
  %492 = vmatpush1.bf16.msra.mxu0 %v369
  %493 = vmatprep.subr.bf16.mxu0 %v374
  %494 = vmatpush1.bf16.msra.mxu0 %v373
  %495 = vmatprep.subr.bf16.mxu0 %v378
  %496 = vmatpush1.bf16.msra.mxu0 %v377
  %497 = vmatprep.subr.bf16.mxu0 %v382
  %498 = vmatpush1.bf16.msra.mxu0 %v381
  %499 = vmatprep.subr.bf16.mxu0 %v483
  %500 = vmatpush1.bf16.msra.mxu0 %v480
  %501 = vmatprep.subr.bf16.mxu0 0
  %502 = vmatpush1.bf16.msra.mxu0 0
  %503 = vmatprep.subr.bf16.mxu0 0
  %504 = vmatpush1.bf16.msra.mxu0 0
  %505 = vmatprep.subr.bf16.mxu0 0
  %506 = vmatpush1.bf16.msra.mxu0 0
  %507 = vmatprep.subr.bf16.mxu0 0
  %508 = vmatpush1.bf16.msra.mxu0 0
  %509 = vmatprep.subr.bf16.mxu0 0
  %510 = vmatpush1.bf16.msra.mxu0 0
  %511 = vmatprep.subr.bf16.mxu0 0
  %512 = vmatpush1.bf16.msra.mxu0 0
  %513 = vmatprep.subr.bf16.mxu0 0
  %514 = vmatpush1.bf16.msra.mxu0 0
  %515 = vmatprep.subr.bf16.mxu0 0
  %516 = vmatpush1.bf16.msra.mxu0 0
  %517 = vmatprep.subr.bf16.mxu0 0
  %518 = vmatpush1.bf16.msra.mxu0 0
  %519 = vmatprep.subr.bf16.mxu0 0
  %520 = vmatpush1.bf16.msra.mxu0 0
  %521 = vmatprep.subr.bf16.mxu0 0
  %522 = vmatpush1.bf16.msra.mxu0 0
  %523 = vmatprep.mubr.bf16.mxu0 0
  %524 = vmatmul.mubr.bf16.gmra.mrb[0].mxu0 %v467
  %v525 = vpop.f32.mrb[0].mxu0
  %v526 = vadd.f32 %v408, %v525
  %v527 = vpop.f32.mrb[0].mxu0
  %v528 = vadd.f32 %v408, %v527
  %v529 = vpop.f32.mrb[0].mxu0
  %v530 = vadd.f32 %v413, %v529
  %v531 = vpop.f32.mrb[0].mxu0
  %v532 = vadd.f32 %v413, %v531
  %533 = vmatprep.mubr.bf16.mxu0 0
  %534 = vmatmul.mubr.bf16.gmra.mrb[0].mxu0 %v470
  %v535 = vpop.f32.mrb[0].mxu0
  %v536 = vadd.f32 %v418, %v535
  %v537 = vpop.f32.mrb[0].mxu0
  %v538 = vadd.f32 %v418, %v537
  %v539 = vpop.f32.mrb[0].mxu0
  %v540 = vadd.f32 %v423, %v539
  %v541 = vpop.f32.mrb[0].mxu0
  %v542 = vadd.f32 %v423, %v541
  %543 = vmatprep.mubr.bf16.mxu0 0
  %544 = vmatmul.mubr.bf16.gmra.mrb[0].mxu0 %v473
  %v545 = vpop.f32.mrb[0].mxu0
  %v546 = vadd.f32 %v428, %v545
  %v547 = vpop.f32.mrb[0].mxu0
  %v548 = vadd.f32 %v428, %v547
  %v549 = vpop.f32.mrb[0].mxu0
  %v550 = vadd.f32 %v433, %v549
  %v551 = vpop.f32.mrb[0].mxu0
  %v552 = vadd.f32 %v433, %v551
  %553 = vmatprep.mubr.bf16.mxu0 0
  %554 = vmatmul.mubr.bf16.gmra.mrb[0].mxu0 %v476
  %v555 = vpop.f32.mrb[0].mxu0
  %v556 = vadd.f32 %v438, %v555
  %v557 = vpop.f32.mrb[0].mxu0
  %v558 = vadd.f32 %v438, %v557
  %v559 = vpop.f32.mrb[0].mxu0
  %v560 = vadd.f32 %v443, %v559
  %v561 = vpop.f32.mrb[0].mxu0
  %v562 = vadd.f32 %v443, %v561
  %563 = vdwg.mxu0
  %564 = vmatprep.subr.bf16.mxu0 %v372
  %565 = vmatpush1.bf16.msra.mxu0 %v371
  %566 = vmatprep.subr.bf16.mxu0 %v376
  %567 = vmatpush1.bf16.msra.mxu0 %v375
  %568 = vmatprep.subr.bf16.mxu0 %v380
  %569 = vmatpush1.bf16.msra.mxu0 %v379
  %570 = vmatprep.subr.bf16.mxu0 %v384
  %571 = vmatpush1.bf16.msra.mxu0 %v383
  %572 = vmatprep.subr.bf16.mxu0 %v489
  %573 = vmatpush1.bf16.msra.mxu0 %v486
  %574 = vmatprep.subr.bf16.mxu0 0
  %575 = vmatpush1.bf16.msra.mxu0 0
  %576 = vmatprep.subr.bf16.mxu0 0
  %577 = vmatpush1.bf16.msra.mxu0 0
  %578 = vmatprep.subr.bf16.mxu0 0
  %579 = vmatpush1.bf16.msra.mxu0 0
  %580 = vmatprep.subr.bf16.mxu0 0
  %581 = vmatpush1.bf16.msra.mxu0 0
  %582 = vmatprep.subr.bf16.mxu0 0
  %583 = vmatpush1.bf16.msra.mxu0 0
  %584 = vmatprep.subr.bf16.mxu0 0
  %585 = vmatpush1.bf16.msra.mxu0 0
  %586 = vmatprep.subr.bf16.mxu0 0
  %587 = vmatpush1.bf16.msra.mxu0 0
  %588 = vmatprep.subr.bf16.mxu0 0
  %589 = vmatpush1.bf16.msra.mxu0 0
  %590 = vmatprep.subr.bf16.mxu0 0
  %591 = vmatpush1.bf16.msra.mxu0 0
  %592 = vmatprep.subr.bf16.mxu0 0
  %593 = vmatpush1.bf16.msra.mxu0 0
  %594 = vmatprep.subr.bf16.mxu0 0
  %595 = vmatpush1.bf16.msra.mxu0 0
  %596 = vmatprep.mubr.bf16.mxu0 0
  %597 = vmatmul.mubr.bf16.gmra.mrb[0].mxu0 %v467
  %v598 = vpop.f32.mrb[0].mxu0
  %v599 = vadd.f32 %v408, %v598
  %v600 = vpop.f32.mrb[0].mxu0
  %v601 = vadd.f32 %v408, %v600
  %v602 = vpop.f32.mrb[0].mxu0
  %v603 = vadd.f32 %v413, %v602
  %v604 = vpop.f32.mrb[0].mxu0
  %v605 = vadd.f32 %v413, %v604
  %606 = vmatprep.mubr.bf16.mxu0 0
  %607 = vmatmul.mubr.bf16.gmra.mrb[0].mxu0 %v470
  %v608 = vpop.f32.mrb[0].mxu0
  %v609 = vadd.f32 %v418, %v608
  %v610 = vpop.f32.mrb[0].mxu0
  %v611 = vadd.f32 %v418, %v610
  %v612 = vpop.f32.mrb[0].mxu0
  %v613 = vadd.f32 %v423, %v612
  %v614 = vpop.f32.mrb[0].mxu0
  %v615 = vadd.f32 %v423, %v614
  %616 = vmatprep.mubr.bf16.mxu0 0
  %617 = vmatmul.mubr.bf16.gmra.mrb[0].mxu0 %v473
  %v618 = vpop.f32.mrb[0].mxu0
  %v619 = vadd.f32 %v428, %v618
  %v620 = vpop.f32.mrb[0].mxu0
  %v621 = vadd.f32 %v428, %v620
  %v622 = vpop.f32.mrb[0].mxu0
  %v623 = vadd.f32 %v433, %v622
  %v624 = vpop.f32.mrb[0].mxu0
  %v625 = vadd.f32 %v433, %v624
  %626 = vmatprep.mubr.bf16.mxu0 0
  %627 = vmatmul.mubr.bf16.gmra.mrb[0].mxu0 %v476
  %v628 = vpop.f32.mrb[0].mxu0
  %v629 = vadd.f32 %v438, %v628
  %v630 = vpop.f32.mrb[0].mxu0
  %v631 = vadd.f32 %v438, %v630
  %v632 = vpop.f32.mrb[0].mxu0
  %v633 = vadd.f32 %v443, %v632
  %v634 = vpop.f32.mrb[0].mxu0
  %v635 = vadd.f32 %v443, %v634
  %636 = vdwg.mxu0
  %v637 = vmax.f32 %v526, 0.0
  %v638 = vmax.f32 %v528, 0.0
  %v639 = vmax.f32 %v599, 0.0
  %v640 = vmax.f32 %v601, 0.0
  %v641 = vmax.f32 %v530, 0.0
  %v642 = vmax.f32 %v532, 0.0
  %v643 = vmax.f32 %v603, 0.0
  %v644 = vmax.f32 %v605, 0.0
  %v645 = vmax.f32 %v536, 0.0
  %v646 = vmax.f32 %v538, 0.0
  %v647 = vmax.f32 %v609, 0.0
  %v648 = vmax.f32 %v611, 0.0
  %v649 = vmax.f32 %v540, 0.0
  %v650 = vmax.f32 %v542, 0.0
  %v651 = vmax.f32 %v613, 0.0
  %v652 = vmax.f32 %v615, 0.0
  %v653 = vmax.f32 %v546, 0.0
  %v654 = vmax.f32 %v548, 0.0
  %v655 = vmax.f32 %v619, 0.0
  %v656 = vmax.f32 %v621, 0.0
  %v657 = vmax.f32 %v550, 0.0
  %v658 = vmax.f32 %v552, 0.0
  %v659 = vmax.f32 %v623, 0.0
  %v660 = vmax.f32 %v625, 0.0
  %v661 = vmax.f32 %v556, 0.0
  %v662 = vmax.f32 %v558, 0.0
  %v663 = vmax.f32 %v629, 0.0
  %v664 = vmax.f32 %v631, 0.0
  %v665 = vmax.f32 %v560, 0.0
  %v666 = vmax.f32 %v562, 0.0
  %v667 = vmax.f32 %v633, 0.0
  %v668 = vmax.f32 %v635, 0.0
  %669 = vrot.lane.b32.xlu0 %v637, 17
  %v670 = vpop.permute.xlu0 %669
  %671 = vrot.lane.b32.xlu0 %v641, 17
  %v672 = vpop.permute.xlu0 %671
  %673 = vrot.lane.b32.xlu0 %v645, 17
  %v674 = vpop.permute.xlu0 %673
  %675 = vrot.lane.b32.xlu0 %v649, 17
  %v676 = vpop.permute.xlu0 %675
  %677 = vrot.lane.b32.xlu0 %v638, 17
  %v678 = vpop.permute.xlu0 %677
  %679 = vrot.lane.b32.xlu0 %v642, 17
  %v680 = vpop.permute.xlu0 %679
  %681 = vrot.lane.b32.xlu0 %v646, 17
  %v682 = vpop.permute.xlu0 %681
  %683 = vrot.lane.b32.xlu0 %v650, 17
  %v684 = vpop.permute.xlu0 %683
  %685 = vrot.lane.b32.xlu0 %v639, 17
  %v686 = vpop.permute.xlu0 %685
  %687 = vrot.lane.b32.xlu0 %v643, 17
  %v688 = vpop.permute.xlu0 %687
  %689 = vrot.lane.b32.xlu0 %v647, 17
  %v690 = vpop.permute.xlu0 %689
  %691 = vrot.lane.b32.xlu0 %v651, 17
  %v692 = vpop.permute.xlu0 %691
  %693 = vrot.lane.b32.xlu0 %v640, 17
  %v694 = vpop.permute.xlu0 %693
  %695 = vrot.lane.b32.xlu0 %v644, 17
  %v696 = vpop.permute.xlu0 %695
  %697 = vrot.lane.b32.xlu0 %v648, 17
  %v698 = vpop.permute.xlu0 %697
  %699 = vrot.lane.b32.xlu0 %v652, 17
  %v700 = vpop.permute.xlu0 %699
  %v701 = vsel %vm58, %v686, %v694
  %v702 = vsel %vm58, %v688, %v696
  %v703 = vsel %vm58, %v690, %v698
  %v704 = vsel %vm58, %v692, %v700
  %v705 = vsel %vm58, %v678, %v686
  %v706 = vsel %vm58, %v680, %v688
  %v707 = vsel %vm58, %v682, %v690
  %v708 = vsel %vm58, %v684, %v692
  %v709 = vsel %vm58, %v670, %v678
  %v710 = vsel %vm58, %v672, %v680
  %v711 = vsel %vm58, %v674, %v682
  %v712 = vsel %vm58, %v676, %v684
  %v713 = vsel %vm58, %v694, %v670
  %v714 = vsel %vm58, %v696, %v672
  %v715 = vsel %vm58, %v698, %v674
  %v716 = vsel %vm58, %v700, %v676
  %v717 = vmul.f32 %v713, %v68
  %v718 = vmul.f32 %v709, %v72
  %v719 = vmul.f32 %v705, %v76
  %v720 = vmul.f32 %v701, %v80
  %v721 = vmul.f32 %v714, %v68
  %v722 = vmul.f32 %v710, %v72
  %v723 = vmul.f32 %v706, %v76
  %v724 = vmul.f32 %v702, %v80
  %v725 = vmul.f32 %v715, %v68
  %v726 = vmul.f32 %v711, %v72
  %v727 = vmul.f32 %v707, %v76
  %v728 = vmul.f32 %v703, %v80
  %v729 = vmul.f32 %v716, %v68
  %v730 = vmul.f32 %v712, %v72
  %v731 = vmul.f32 %v708, %v76
  %v732 = vmul.f32 %v704, %v80
  %733 = vrot.lane.b32.xlu0 %v637, 16
  %v734 = vpop.permute.xlu0 %733
  %735 = vrot.lane.b32.xlu0 %v641, 16
  %v736 = vpop.permute.xlu0 %735
  %737 = vrot.lane.b32.xlu0 %v645, 16
  %v738 = vpop.permute.xlu0 %737
  %739 = vrot.lane.b32.xlu0 %v649, 16
  %v740 = vpop.permute.xlu0 %739
  %741 = vrot.lane.b32.xlu0 %v638, 16
  %v742 = vpop.permute.xlu0 %741
  %743 = vrot.lane.b32.xlu0 %v642, 16
  %v744 = vpop.permute.xlu0 %743
  %745 = vrot.lane.b32.xlu0 %v646, 16
  %v746 = vpop.permute.xlu0 %745
  %747 = vrot.lane.b32.xlu0 %v650, 16
  %v748 = vpop.permute.xlu0 %747
  %749 = vrot.lane.b32.xlu0 %v639, 16
  %v750 = vpop.permute.xlu0 %749
  %751 = vrot.lane.b32.xlu0 %v643, 16
  %v752 = vpop.permute.xlu0 %751
  %753 = vrot.lane.b32.xlu0 %v647, 16
  %v754 = vpop.permute.xlu0 %753
  %755 = vrot.lane.b32.xlu0 %v651, 16
  %v756 = vpop.permute.xlu0 %755
  %757 = vrot.lane.b32.xlu0 %v640, 16
  %v758 = vpop.permute.xlu0 %757
  %759 = vrot.lane.b32.xlu0 %v644, 16
  %v760 = vpop.permute.xlu0 %759
  %761 = vrot.lane.b32.xlu0 %v648, 16
  %v762 = vpop.permute.xlu0 %761
  %763 = vrot.lane.b32.xlu0 %v652, 16
  %v764 = vpop.permute.xlu0 %763
  %v765 = vsel %vm97, %v750, %v758
  %v766 = vsel %vm97, %v752, %v760
  %v767 = vsel %vm97, %v754, %v762
  %v768 = vsel %vm97, %v756, %v764
  %v769 = vsel %vm97, %v742, %v750
  %v770 = vsel %vm97, %v744, %v752
  %v771 = vsel %vm97, %v746, %v754
  %v772 = vsel %vm97, %v748, %v756
  %v773 = vsel %vm97, %v734, %v742
  %v774 = vsel %vm97, %v736, %v744
  %v775 = vsel %vm97, %v738, %v746
  %v776 = vsel %vm97, %v740, %v748
  %v777 = vsel %vm97, %v758, %v734
  %v778 = vsel %vm97, %v760, %v736
  %v779 = vsel %vm97, %v762, %v738
  %v780 = vsel %vm97, %v764, %v740
  %v781 = vmul.f32 %v777, %v108
  %v782 = vmul.f32 %v773, %v112
  %v783 = vmul.f32 %v769, %v116
  %v784 = vmul.f32 %v765, %v120
  %v785 = vmul.f32 %v778, %v108
  %v786 = vmul.f32 %v774, %v112
  %v787 = vmul.f32 %v770, %v116
  %v788 = vmul.f32 %v766, %v120
  %v789 = vmul.f32 %v779, %v108
  %v790 = vmul.f32 %v775, %v112
  %v791 = vmul.f32 %v771, %v116
  %v792 = vmul.f32 %v767, %v120
  %v793 = vmul.f32 %v780, %v108
  %v794 = vmul.f32 %v776, %v112
  %v795 = vmul.f32 %v772, %v116
  %v796 = vmul.f32 %v768, %v120
  %797 = vrot.lane.b32.xlu0 %v637, 15
  %v798 = vpop.permute.xlu0 %797
  %799 = vrot.lane.b32.xlu0 %v641, 15
  %v800 = vpop.permute.xlu0 %799
  %801 = vrot.lane.b32.xlu0 %v645, 15
  %v802 = vpop.permute.xlu0 %801
  %803 = vrot.lane.b32.xlu0 %v649, 15
  %v804 = vpop.permute.xlu0 %803
  %805 = vrot.lane.b32.xlu0 %v638, 15
  %v806 = vpop.permute.xlu0 %805
  %807 = vrot.lane.b32.xlu0 %v642, 15
  %v808 = vpop.permute.xlu0 %807
  %809 = vrot.lane.b32.xlu0 %v646, 15
  %v810 = vpop.permute.xlu0 %809
  %811 = vrot.lane.b32.xlu0 %v650, 15
  %v812 = vpop.permute.xlu0 %811
  %813 = vrot.lane.b32.xlu0 %v639, 15
  %v814 = vpop.permute.xlu0 %813
  %815 = vrot.lane.b32.xlu0 %v643, 15
  %v816 = vpop.permute.xlu0 %815
  %817 = vrot.lane.b32.xlu0 %v647, 15
  %v818 = vpop.permute.xlu0 %817
  %819 = vrot.lane.b32.xlu0 %v651, 15
  %v820 = vpop.permute.xlu0 %819
  %821 = vrot.lane.b32.xlu0 %v640, 15
  %v822 = vpop.permute.xlu0 %821
  %823 = vrot.lane.b32.xlu0 %v644, 15
  %v824 = vpop.permute.xlu0 %823
  %825 = vrot.lane.b32.xlu0 %v648, 15
  %v826 = vpop.permute.xlu0 %825
  %827 = vrot.lane.b32.xlu0 %v652, 15
  %v828 = vpop.permute.xlu0 %827
  %v829 = vsel %vm137, %v814, %v822
  %v830 = vsel %vm137, %v816, %v824
  %v831 = vsel %vm137, %v818, %v826
  %v832 = vsel %vm137, %v820, %v828
  %v833 = vsel %vm137, %v806, %v814
  %v834 = vsel %vm137, %v808, %v816
  %v835 = vsel %vm137, %v810, %v818
  %v836 = vsel %vm137, %v812, %v820
  %v837 = vsel %vm137, %v798, %v806
  %v838 = vsel %vm137, %v800, %v808
  %v839 = vsel %vm137, %v802, %v810
  %v840 = vsel %vm137, %v804, %v812
  %v841 = vsel %vm137, %v822, %v798
  %v842 = vsel %vm137, %v824, %v800
  %v843 = vsel %vm137, %v826, %v802
  %v844 = vsel %vm137, %v828, %v804
  %v845 = vmul.f32 %v841, %v148
  %v846 = vmul.f32 %v837, %v152
  %v847 = vmul.f32 %v833, %v156
  %v848 = vmul.f32 %v829, %v160
  %v849 = vmul.f32 %v842, %v148
  %v850 = vmul.f32 %v838, %v152
  %v851 = vmul.f32 %v834, %v156
  %v852 = vmul.f32 %v830, %v160
  %v853 = vmul.f32 %v843, %v148
  %v854 = vmul.f32 %v839, %v152
  %v855 = vmul.f32 %v835, %v156
  %v856 = vmul.f32 %v831, %v160
  %v857 = vmul.f32 %v844, %v148
  %v858 = vmul.f32 %v840, %v152
  %v859 = vmul.f32 %v836, %v156
  %v860 = vmul.f32 %v832, %v160
  %861 = vrot.lane.b32.xlu0 %v637, 1
  %v862 = vpop.permute.xlu0 %861
  %863 = vrot.lane.b32.xlu0 %v641, 1
  %v864 = vpop.permute.xlu0 %863
  %865 = vrot.lane.b32.xlu0 %v645, 1
  %v866 = vpop.permute.xlu0 %865
  %867 = vrot.lane.b32.xlu0 %v649, 1
  %v868 = vpop.permute.xlu0 %867
  %869 = vrot.lane.b32.xlu0 %v638, 1
  %v870 = vpop.permute.xlu0 %869
  %871 = vrot.lane.b32.xlu0 %v642, 1
  %v872 = vpop.permute.xlu0 %871
  %873 = vrot.lane.b32.xlu0 %v646, 1
  %v874 = vpop.permute.xlu0 %873
  %875 = vrot.lane.b32.xlu0 %v650, 1
  %v876 = vpop.permute.xlu0 %875
  %877 = vrot.lane.b32.xlu0 %v639, 1
  %v878 = vpop.permute.xlu0 %877
  %879 = vrot.lane.b32.xlu0 %v643, 1
  %v880 = vpop.permute.xlu0 %879
  %881 = vrot.lane.b32.xlu0 %v647, 1
  %v882 = vpop.permute.xlu0 %881
  %883 = vrot.lane.b32.xlu0 %v651, 1
  %v884 = vpop.permute.xlu0 %883
  %885 = vrot.lane.b32.xlu0 %v640, 1
  %v886 = vpop.permute.xlu0 %885
  %887 = vrot.lane.b32.xlu0 %v644, 1
  %v888 = vpop.permute.xlu0 %887
  %889 = vrot.lane.b32.xlu0 %v648, 1
  %v890 = vpop.permute.xlu0 %889
  %891 = vrot.lane.b32.xlu0 %v652, 1
  %v892 = vpop.permute.xlu0 %891
  %v893 = vsel %vm177, %v878, %v886
  %v894 = vsel %vm177, %v880, %v888
  %v895 = vsel %vm177, %v882, %v890
  %v896 = vsel %vm177, %v884, %v892
  %v897 = vsel %vm177, %v870, %v878
  %v898 = vsel %vm177, %v872, %v880
  %v899 = vsel %vm177, %v874, %v882
  %v900 = vsel %vm177, %v876, %v884
  %v901 = vsel %vm177, %v862, %v870
  %v902 = vsel %vm177, %v864, %v872
  %v903 = vsel %vm177, %v866, %v874
  %v904 = vsel %vm177, %v868, %v876
  %v905 = vsel %vm177, %v886, %v862
  %v906 = vsel %vm177, %v888, %v864
  %v907 = vsel %vm177, %v890, %v866
  %v908 = vsel %vm177, %v892, %v868
  %v909 = vmul.f32 %v905, %v188
  %v910 = vmul.f32 %v901, %v192
  %v911 = vmul.f32 %v897, %v196
  %v912 = vmul.f32 %v893, %v200
  %v913 = vmul.f32 %v906, %v188
  %v914 = vmul.f32 %v902, %v192
  %v915 = vmul.f32 %v898, %v196
  %v916 = vmul.f32 %v894, %v200
  %v917 = vmul.f32 %v907, %v188
  %v918 = vmul.f32 %v903, %v192
  %v919 = vmul.f32 %v899, %v196
  %v920 = vmul.f32 %v895, %v200
  %v921 = vmul.f32 %v908, %v188
  %v922 = vmul.f32 %v904, %v192
  %v923 = vmul.f32 %v900, %v196
  %v924 = vmul.f32 %v896, %v200
  %925 = vrot.lane.b32.xlu0 %v637, 127
  %v926 = vpop.permute.xlu0 %925
  %927 = vrot.lane.b32.xlu0 %v641, 127
  %v928 = vpop.permute.xlu0 %927
  %929 = vrot.lane.b32.xlu0 %v645, 127
  %v930 = vpop.permute.xlu0 %929
  %931 = vrot.lane.b32.xlu0 %v649, 127
  %v932 = vpop.permute.xlu0 %931
  %933 = vrot.lane.b32.xlu0 %v638, 127
  %v934 = vpop.permute.xlu0 %933
  %935 = vrot.lane.b32.xlu0 %v642, 127
  %v936 = vpop.permute.xlu0 %935
  %937 = vrot.lane.b32.xlu0 %v646, 127
  %v938 = vpop.permute.xlu0 %937
  %939 = vrot.lane.b32.xlu0 %v650, 127
  %v940 = vpop.permute.xlu0 %939
  %941 = vrot.lane.b32.xlu0 %v639, 127
  %v942 = vpop.permute.xlu0 %941
  %943 = vrot.lane.b32.xlu0 %v643, 127
  %v944 = vpop.permute.xlu0 %943
  %945 = vrot.lane.b32.xlu0 %v647, 127
  %v946 = vpop.permute.xlu0 %945
  %947 = vrot.lane.b32.xlu0 %v651, 127
  %v948 = vpop.permute.xlu0 %947
  %949 = vrot.lane.b32.xlu0 %v640, 127
  %v950 = vpop.permute.xlu0 %949
  %951 = vrot.lane.b32.xlu0 %v644, 127
  %v952 = vpop.permute.xlu0 %951
  %953 = vrot.lane.b32.xlu0 %v648, 127
  %v954 = vpop.permute.xlu0 %953
  %955 = vrot.lane.b32.xlu0 %v652, 127
  %v956 = vpop.permute.xlu0 %955
  %v957 = vsel %vm217, %v942, %v950
  %v958 = vsel %vm217, %v944, %v952
  %v959 = vsel %vm217, %v946, %v954
  %v960 = vsel %vm217, %v948, %v956
  %v961 = vsel %vm217, %v934, %v942
  %v962 = vsel %vm217, %v936, %v944
  %v963 = vsel %vm217, %v938, %v946
  %v964 = vsel %vm217, %v940, %v948
  %v965 = vsel %vm217, %v926, %v934
  %v966 = vsel %vm217, %v928, %v936
  %v967 = vsel %vm217, %v930, %v938
  %v968 = vsel %vm217, %v932, %v940
  %v969 = vsel %vm217, %v950, %v926
  %v970 = vsel %vm217, %v952, %v928
  %v971 = vsel %vm217, %v954, %v930
  %v972 = vsel %vm217, %v956, %v932
  %v973 = vmul.f32 %v965, %v228
  %v974 = vmul.f32 %v961, %v232
  %v975 = vmul.f32 %v957, %v236
  %v976 = vmul.f32 %v969, %v240
  %v977 = vmul.f32 %v966, %v228
  %v978 = vmul.f32 %v962, %v232
  %v979 = vmul.f32 %v958, %v236
  %v980 = vmul.f32 %v970, %v240
  %v981 = vmul.f32 %v967, %v228
  %v982 = vmul.f32 %v963, %v232
  %v983 = vmul.f32 %v959, %v236
  %v984 = vmul.f32 %v971, %v240
  %v985 = vmul.f32 %v968, %v228
  %v986 = vmul.f32 %v964, %v232
  %v987 = vmul.f32 %v960, %v236
  %v988 = vmul.f32 %v972, %v240
  %989 = vrot.lane.b32.xlu0 %v637, 113
  %v990 = vpop.permute.xlu0 %989
  %991 = vrot.lane.b32.xlu0 %v641, 113
  %v992 = vpop.permute.xlu0 %991
  %993 = vrot.lane.b32.xlu0 %v645, 113
  %v994 = vpop.permute.xlu0 %993
  %995 = vrot.lane.b32.xlu0 %v649, 113
  %v996 = vpop.permute.xlu0 %995
  %997 = vrot.lane.b32.xlu0 %v638, 113
  %v998 = vpop.permute.xlu0 %997
  %999 = vrot.lane.b32.xlu0 %v642, 113
  %v1000 = vpop.permute.xlu0 %999
  %1001 = vrot.lane.b32.xlu0 %v646, 113
  %v1002 = vpop.permute.xlu0 %1001
  %1003 = vrot.lane.b32.xlu0 %v650, 113
  %v1004 = vpop.permute.xlu0 %1003
  %1005 = vrot.lane.b32.xlu0 %v639, 113
  %v1006 = vpop.permute.xlu0 %1005
  %1007 = vrot.lane.b32.xlu0 %v643, 113
  %v1008 = vpop.permute.xlu0 %1007
  %1009 = vrot.lane.b32.xlu0 %v647, 113
  %v1010 = vpop.permute.xlu0 %1009
  %1011 = vrot.lane.b32.xlu0 %v651, 113
  %v1012 = vpop.permute.xlu0 %1011
  %1013 = vrot.lane.b32.xlu0 %v640, 113
  %v1014 = vpop.permute.xlu0 %1013
  %1015 = vrot.lane.b32.xlu0 %v644, 113
  %v1016 = vpop.permute.xlu0 %1015
  %1017 = vrot.lane.b32.xlu0 %v648, 113
  %v1018 = vpop.permute.xlu0 %1017
  %1019 = vrot.lane.b32.xlu0 %v652, 113
  %v1020 = vpop.permute.xlu0 %1019
  %v1021 = vsel %vm257, %v1006, %v1014
  %v1022 = vsel %vm257, %v1008, %v1016
  %v1023 = vsel %vm257, %v1010, %v1018
  %v1024 = vsel %vm257, %v1012, %v1020
  %v1025 = vsel %vm257, %v998, %v1006
  %v1026 = vsel %vm257, %v1000, %v1008
  %v1027 = vsel %vm257, %v1002, %v1010
  %v1028 = vsel %vm257, %v1004, %v1012
  %v1029 = vsel %vm257, %v990, %v998
  %v1030 = vsel %vm257, %v992, %v1000
  %v1031 = vsel %vm257, %v994, %v1002
  %v1032 = vsel %vm257, %v996, %v1004
  %v1033 = vsel %vm257, %v1014, %v990
  %v1034 = vsel %vm257, %v1016, %v992
  %v1035 = vsel %vm257, %v1018, %v994
  %v1036 = vsel %vm257, %v1020, %v996
  %v1037 = vmul.f32 %v1029, %v268
  %v1038 = vmul.f32 %v1025, %v272
  %v1039 = vmul.f32 %v1021, %v276
  %v1040 = vmul.f32 %v1033, %v280
  %v1041 = vmul.f32 %v1030, %v268
  %v1042 = vmul.f32 %v1026, %v272
  %v1043 = vmul.f32 %v1022, %v276
  %v1044 = vmul.f32 %v1034, %v280
  %v1045 = vmul.f32 %v1031, %v268
  %v1046 = vmul.f32 %v1027, %v272
  %v1047 = vmul.f32 %v1023, %v276
  %v1048 = vmul.f32 %v1035, %v280
  %v1049 = vmul.f32 %v1032, %v268
  %v1050 = vmul.f32 %v1028, %v272
  %v1051 = vmul.f32 %v1024, %v276
  %v1052 = vmul.f32 %v1036, %v280
  %1053 = vrot.lane.b32.xlu0 %v637, 112
  %v1054 = vpop.permute.xlu0 %1053
  %1055 = vrot.lane.b32.xlu0 %v641, 112
  %v1056 = vpop.permute.xlu0 %1055
  %1057 = vrot.lane.b32.xlu0 %v645, 112
  %v1058 = vpop.permute.xlu0 %1057
  %1059 = vrot.lane.b32.xlu0 %v649, 112
  %v1060 = vpop.permute.xlu0 %1059
  %1061 = vrot.lane.b32.xlu0 %v638, 112
  %v1062 = vpop.permute.xlu0 %1061
  %1063 = vrot.lane.b32.xlu0 %v642, 112
  %v1064 = vpop.permute.xlu0 %1063
  %1065 = vrot.lane.b32.xlu0 %v646, 112
  %v1066 = vpop.permute.xlu0 %1065
  %1067 = vrot.lane.b32.xlu0 %v650, 112
  %v1068 = vpop.permute.xlu0 %1067
  %1069 = vrot.lane.b32.xlu0 %v639, 112
  %v1070 = vpop.permute.xlu0 %1069
  %1071 = vrot.lane.b32.xlu0 %v643, 112
  %v1072 = vpop.permute.xlu0 %1071
  %1073 = vrot.lane.b32.xlu0 %v647, 112
  %v1074 = vpop.permute.xlu0 %1073
  %1075 = vrot.lane.b32.xlu0 %v651, 112
  %v1076 = vpop.permute.xlu0 %1075
  %1077 = vrot.lane.b32.xlu0 %v640, 112
  %v1078 = vpop.permute.xlu0 %1077
  %1079 = vrot.lane.b32.xlu0 %v644, 112
  %v1080 = vpop.permute.xlu0 %1079
  %1081 = vrot.lane.b32.xlu0 %v648, 112
  %v1082 = vpop.permute.xlu0 %1081
  %1083 = vrot.lane.b32.xlu0 %v652, 112
  %v1084 = vpop.permute.xlu0 %1083
  %v1085 = vsel %vm297, %v1070, %v1078
  %v1086 = vsel %vm297, %v1072, %v1080
  %v1087 = vsel %vm297, %v1074, %v1082
  %v1088 = vsel %vm297, %v1076, %v1084
  %v1089 = vsel %vm297, %v1062, %v1070
  %v1090 = vsel %vm297, %v1064, %v1072
  %v1091 = vsel %vm297, %v1066, %v1074
  %v1092 = vsel %vm297, %v1068, %v1076
  %v1093 = vsel %vm297, %v1054, %v1062
  %v1094 = vsel %vm297, %v1056, %v1064
  %v1095 = vsel %vm297, %v1058, %v1066
  %v1096 = vsel %vm297, %v1060, %v1068
  %v1097 = vsel %vm297, %v1078, %v1054
  %v1098 = vsel %vm297, %v1080, %v1056
  %v1099 = vsel %vm297, %v1082, %v1058
  %v1100 = vsel %vm297, %v1084, %v1060
  %v1101 = vmul.f32 %v1093, %v308
  %v1102 = vmul.f32 %v1089, %v312
  %v1103 = vmul.f32 %v1085, %v316
  %v1104 = vmul.f32 %v1097, %v320
  %v1105 = vmul.f32 %v1094, %v308
  %v1106 = vmul.f32 %v1090, %v312
  %v1107 = vmul.f32 %v1086, %v316
  %v1108 = vmul.f32 %v1098, %v320
  %v1109 = vmul.f32 %v1095, %v308
  %v1110 = vmul.f32 %v1091, %v312
  %v1111 = vmul.f32 %v1087, %v316
  %v1112 = vmul.f32 %v1099, %v320
  %v1113 = vmul.f32 %v1096, %v308
  %v1114 = vmul.f32 %v1092, %v312
  %v1115 = vmul.f32 %v1088, %v316
  %v1116 = vmul.f32 %v1100, %v320
  %1117 = vrot.lane.b32.xlu0 %v637, 111
  %v1118 = vpop.permute.xlu0 %1117
  %1119 = vrot.lane.b32.xlu0 %v641, 111
  %v1120 = vpop.permute.xlu0 %1119
  %1121 = vrot.lane.b32.xlu0 %v645, 111
  %v1122 = vpop.permute.xlu0 %1121
  %1123 = vrot.lane.b32.xlu0 %v649, 111
  %v1124 = vpop.permute.xlu0 %1123
  %1125 = vrot.lane.b32.xlu0 %v638, 111
  %v1126 = vpop.permute.xlu0 %1125
  %1127 = vrot.lane.b32.xlu0 %v642, 111
  %v1128 = vpop.permute.xlu0 %1127
  %1129 = vrot.lane.b32.xlu0 %v646, 111
  %v1130 = vpop.permute.xlu0 %1129
  %1131 = vrot.lane.b32.xlu0 %v650, 111
  %v1132 = vpop.permute.xlu0 %1131
  %1133 = vrot.lane.b32.xlu0 %v639, 111
  %v1134 = vpop.permute.xlu0 %1133
  %1135 = vrot.lane.b32.xlu0 %v643, 111
  %v1136 = vpop.permute.xlu0 %1135
  %1137 = vrot.lane.b32.xlu0 %v647, 111
  %v1138 = vpop.permute.xlu0 %1137
  %1139 = vrot.lane.b32.xlu0 %v651, 111
  %v1140 = vpop.permute.xlu0 %1139
  %1141 = vrot.lane.b32.xlu0 %v640, 111
  %v1142 = vpop.permute.xlu0 %1141
  %1143 = vrot.lane.b32.xlu0 %v644, 111
  %v1144 = vpop.permute.xlu0 %1143
  %1145 = vrot.lane.b32.xlu0 %v648, 111
  %v1146 = vpop.permute.xlu0 %1145
  %1147 = vrot.lane.b32.xlu0 %v652, 111
  %v1148 = vpop.permute.xlu0 %1147
  %v1149 = vsel %vm337, %v1134, %v1142
  %v1150 = vsel %vm337, %v1136, %v1144
  %v1151 = vsel %vm337, %v1138, %v1146
  %v1152 = vsel %vm337, %v1140, %v1148
  %v1153 = vsel %vm337, %v1126, %v1134
  %v1154 = vsel %vm337, %v1128, %v1136
  %v1155 = vsel %vm337, %v1130, %v1138
  %v1156 = vsel %vm337, %v1132, %v1140
  %v1157 = vsel %vm337, %v1118, %v1126
  %v1158 = vsel %vm337, %v1120, %v1128
  %v1159 = vsel %vm337, %v1122, %v1130
  %v1160 = vsel %vm337, %v1124, %v1132
  %v1161 = vsel %vm337, %v1142, %v1118
  %v1162 = vsel %vm337, %v1144, %v1120
  %v1163 = vsel %vm337, %v1146, %v1122
  %v1164 = vsel %vm337, %v1148, %v1124
  %v1165 = vmul.f32 %v1157, %v348
  %v1166 = vmul.f32 %v1153, %v352
  %v1167 = vmul.f32 %v1149, %v356
  %v1168 = vmul.f32 %v1161, %v360
  %v1169 = vmul.f32 %v1158, %v348
  %v1170 = vmul.f32 %v1154, %v352
  %v1171 = vmul.f32 %v1150, %v356
  %v1172 = vmul.f32 %v1162, %v360
  %v1173 = vmul.f32 %v1159, %v348
  %v1174 = vmul.f32 %v1155, %v352
  %v1175 = vmul.f32 %v1151, %v356
  %v1176 = vmul.f32 %v1163, %v360
  %v1177 = vmul.f32 %v1160, %v348
  %v1178 = vmul.f32 %v1156, %v352
  %v1179 = vmul.f32 %v1152, %v356
  %v1180 = vmul.f32 %v1164, %v360
  %v1181 = vpack.c.bf16 %v721, %v717
  %v1182 = vpack.c.bf16 %v722, %v718
  %v1183 = vpack.c.bf16 %v723, %v719
  %v1184 = vpack.c.bf16 %v724, %v720
  %v1185 = vpack.c.bf16 %v729, %v725
  %v1186 = vpack.c.bf16 %v730, %v726
  %v1187 = vpack.c.bf16 %v731, %v727
  %v1188 = vpack.c.bf16 %v732, %v728
  %v1189 = vpack.c.bf16 %v785, %v781
  %v1190 = vpack.c.bf16 %v786, %v782
  %v1191 = vpack.c.bf16 %v787, %v783
  %v1192 = vpack.c.bf16 %v788, %v784
  %v1193 = vpack.c.bf16 %v793, %v789
  %v1194 = vpack.c.bf16 %v794, %v790
  %v1195 = vpack.c.bf16 %v795, %v791
  %v1196 = vpack.c.bf16 %v796, %v792
  %v1197 = vpack.c.bf16 %v849, %v845
  %v1198 = vpack.c.bf16 %v850, %v846
  %v1199 = vpack.c.bf16 %v851, %v847
  %v1200 = vpack.c.bf16 %v852, %v848
  %v1201 = vpack.c.bf16 %v857, %v853
  %v1202 = vpack.c.bf16 %v858, %v854
  %v1203 = vpack.c.bf16 %v859, %v855
  %v1204 = vpack.c.bf16 %v860, %v856
  %v1205 = vpack.c.bf16 %v913, %v909
  %v1206 = vpack.c.bf16 %v914, %v910
  %v1207 = vpack.c.bf16 %v915, %v911
  %v1208 = vpack.c.bf16 %v916, %v912
  %v1209 = vpack.c.bf16 %v921, %v917
  %v1210 = vpack.c.bf16 %v922, %v918
  %v1211 = vpack.c.bf16 %v923, %v919
  %v1212 = vpack.c.bf16 %v924, %v920
  %v1213 = vpack.c.bf16 %v641, %v637
  %v1214 = vpack.c.bf16 %v642, %v638
  %v1215 = vpack.c.bf16 %v643, %v639
  %v1216 = vpack.c.bf16 %v644, %v640
  %v1217 = vpack.c.bf16 %v649, %v645
  %v1218 = vpack.c.bf16 %v650, %v646
  %v1219 = vpack.c.bf16 %v651, %v647
  %v1220 = vpack.c.bf16 %v652, %v648
  %v1221 = vpack.c.bf16 %v977, %v973
  %v1222 = vpack.c.bf16 %v978, %v974
  %v1223 = vpack.c.bf16 %v979, %v975
  %v1224 = vpack.c.bf16 %v980, %v976
  %v1225 = vpack.c.bf16 %v985, %v981
  %v1226 = vpack.c.bf16 %v986, %v982
  %v1227 = vpack.c.bf16 %v987, %v983
  %v1228 = vpack.c.bf16 %v988, %v984
  %v1229 = vpack.c.bf16 %v1041, %v1037
  %v1230 = vpack.c.bf16 %v1042, %v1038
  %v1231 = vpack.c.bf16 %v1043, %v1039
  %v1232 = vpack.c.bf16 %v1044, %v1040
  %v1233 = vpack.c.bf16 %v1049, %v1045
  %v1234 = vpack.c.bf16 %v1050, %v1046
  %v1235 = vpack.c.bf16 %v1051, %v1047
  %v1236 = vpack.c.bf16 %v1052, %v1048
  %v1237 = vpack.c.bf16 %v1105, %v1101
  %v1238 = vpack.c.bf16 %v1106, %v1102
  %v1239 = vpack.c.bf16 %v1107, %v1103
  %v1240 = vpack.c.bf16 %v1108, %v1104
  %v1241 = vpack.c.bf16 %v1113, %v1109
  %v1242 = vpack.c.bf16 %v1114, %v1110
  %v1243 = vpack.c.bf16 %v1115, %v1111
  %v1244 = vpack.c.bf16 %v1116, %v1112
  %v1245 = vpack.c.bf16 %v1169, %v1165
  %v1246 = vpack.c.bf16 %v1170, %v1166
  %v1247 = vpack.c.bf16 %v1171, %v1167
  %v1248 = vpack.c.bf16 %v1172, %v1168
  %v1249 = vpack.c.bf16 %v1177, %v1173
  %v1250 = vpack.c.bf16 %v1178, %v1174
  %v1251 = vpack.c.bf16 %v1179, %v1175
  %v1252 = vpack.c.bf16 %v1180, %v1176
  %v1253 = vld [vmem:[%s4] sm:$0xff]
  %v1254 = vld [vmem:[%s4 + $0x8] sm:$0xf]
  %v1255 = vld [vmem:[%s4 + $0xc] sm:$0xff]
  %v1256 = vld [vmem:[%s4 + $0x14] sm:$0xf]
  %v1257 = vld [vmem:[%s4 + $0x18] sm:$0xff]
  %v1258 = vld [vmem:[%s4 + $0x20] sm:$0xf]
  %v1259 = vld [vmem:[%s4 + $0x24] sm:$0xff]
  %v1260 = vld [vmem:[%s4 + $0x2c] sm:$0xf]
  %v1261 = vld [vmem:[%s5] sm:$0xff]
  %v1262 = vld [vmem:[%s5 + $0x8] sm:$0xff]
  %v1263 = vld [vmem:[%s5 + $0x10] sm:$0xff]
  %v1264 = vld [vmem:[%s5 + $0x18] sm:$0xff]
  %1266 = vset.pattern.permute.xlu0 0
  %1267 = vperm.xlu0 %1266, %v1261
  %v1268 = vpop.permute.xlu0 %1267
  %1271 = vset.pattern.permute.xlu0 0
  %1272 = vperm.xlu0 %1271, %v1262
  %v1273 = vpop.permute.xlu0 %1272
  %1276 = vset.pattern.permute.xlu0 0
  %1277 = vperm.xlu0 %1276, %v1263
  %v1278 = vpop.permute.xlu0 %1277
  %1281 = vset.pattern.permute.xlu0 0
  %1282 = vperm.xlu0 %1281, %v1264
  %v1283 = vpop.permute.xlu0 %1282
  %v1293 = vunpack.c.l.b16 %v1253
  %v1294 = vunpack.c.h.b16 %v1253
  %v1295 = vunpack.c.l.b16 %v1254
  %v1296 = vunpack.c.l.b16 %v1255
  %v1297 = vunpack.c.h.b16 %v1255
  %v1298 = vunpack.c.l.b16 %v1256
  %v1299 = vunpack.c.l.b16 %v1257
  %v1300 = vunpack.c.h.b16 %v1257
  %v1301 = vunpack.c.l.b16 %v1258
  %v1302 = vunpack.c.l.b16 %v1259
  %v1303 = vunpack.c.h.b16 %v1259
  %v1304 = vunpack.c.l.b16 %v1260
  %v1305 = vpack.c.b16 %v1296, %v1293
  %v1306 = vpack.c.b16 %v1297, %v1294
  %v1307 = vpack.c.b16 %v1298, %v1295
  %v1308 = vpack.c.b16 %v1302, %v1299
  %v1309 = vpack.c.b16 %v1303, %v1300
  %v1310 = vpack.c.b16 %v1304, %v1301
  %vm1315 = vcmask 261120
  %v1317 = vsel %vm1315, %v1307, 0
  %v1320 = vsel %vm1315, %v1310, 0
  %1322 = vmatprep.subr.bf16.mxu0 %v1182
  %1323 = vmatpush1.bf16.msra.mxu0 %v1181
  %1324 = vmatprep.subr.bf16.mxu0 %v1186
  %1325 = vmatpush1.bf16.msra.mxu0 %v1185
  %1326 = vmatprep.subr.bf16.mxu0 %v1190
  %1327 = vmatpush1.bf16.msra.mxu0 %v1189
  %1328 = vmatprep.subr.bf16.mxu0 %v1194
  %1329 = vmatpush1.bf16.msra.mxu0 %v1193
  %1330 = vmatprep.subr.bf16.mxu0 %v1198
  %1331 = vmatpush1.bf16.msra.mxu0 %v1197
  %1332 = vmatprep.subr.bf16.mxu0 %v1202
  %1333 = vmatpush1.bf16.msra.mxu0 %v1201
  %1334 = vmatprep.subr.bf16.mxu0 %v1206
  %1335 = vmatpush1.bf16.msra.mxu0 %v1205
  %1336 = vmatprep.subr.bf16.mxu0 %v1210
  %1337 = vmatpush1.bf16.msra.mxu0 %v1209
  %1338 = vmatprep.subr.bf16.mxu0 %v1214
  %1339 = vmatpush1.bf16.msra.mxu0 %v1213
  %1340 = vmatprep.subr.bf16.mxu0 %v1218
  %1341 = vmatpush1.bf16.msra.mxu0 %v1217
  %1342 = vmatprep.subr.bf16.mxu0 %v1222
  %1343 = vmatpush1.bf16.msra.mxu0 %v1221
  %1344 = vmatprep.subr.bf16.mxu0 %v1226
  %1345 = vmatpush1.bf16.msra.mxu0 %v1225
  %1346 = vmatprep.subr.bf16.mxu0 %v1230
  %1347 = vmatpush1.bf16.msra.mxu0 %v1229
  %1348 = vmatprep.subr.bf16.mxu0 %v1234
  %1349 = vmatpush1.bf16.msra.mxu0 %v1233
  %1350 = vmatprep.subr.bf16.mxu0 %v1238
  %1351 = vmatpush1.bf16.msra.mxu0 %v1237
  %1352 = vmatprep.subr.bf16.mxu0 %v1242
  %1353 = vmatpush1.bf16.msra.mxu0 %v1241
  %1354 = vmatprep.mubr.bf16.mxu0 %v1306
  %1355 = vmatmul.mubr.bf16.gmra.mrb[0].mxu0 %v1305
  %v1356 = vpop.f32.mrb[0].mxu0
  %v1357 = vadd.f32 %v1268, %v1356
  %v1358 = vpop.f32.mrb[0].mxu0
  %v1359 = vadd.f32 %v1268, %v1358
  %v1360 = vpop.f32.mrb[0].mxu0
  %v1361 = vadd.f32 %v1273, %v1360
  %v1362 = vpop.f32.mrb[0].mxu0
  %v1363 = vadd.f32 %v1273, %v1362
  %1364 = vmatprep.mubr.bf16.mxu0 %v1309
  %1365 = vmatmul.mubr.bf16.gmra.mrb[0].mxu0 %v1308
  %v1366 = vpop.f32.mrb[0].mxu0
  %v1367 = vadd.f32 %v1278, %v1366
  %v1368 = vpop.f32.mrb[0].mxu0
  %v1369 = vadd.f32 %v1278, %v1368
  %v1370 = vpop.f32.mrb[0].mxu0
  %v1371 = vadd.f32 %v1283, %v1370
  %v1372 = vpop.f32.mrb[0].mxu0
  %v1373 = vadd.f32 %v1283, %v1372
  %1374 = vdwg.mxu0
  %1375 = vmatprep.subr.bf16.mxu0 %v1246
  %1376 = vmatpush1.bf16.msra.mxu0 %v1245
  %1377 = vmatprep.subr.bf16.mxu0 %v1250
  %1378 = vmatpush1.bf16.msra.mxu0 %v1249
  %1379 = vmatprep.subr.bf16.mxu0 0
  %1380 = vmatpush1.bf16.msra.mxu0 0
  %1381 = vmatprep.subr.bf16.mxu0 0
  %1382 = vmatpush1.bf16.msra.mxu0 0
  %1383 = vmatprep.subr.bf16.mxu0 0
  %1384 = vmatpush1.bf16.msra.mxu0 0
  %1385 = vmatprep.subr.bf16.mxu0 0
  %1386 = vmatpush1.bf16.msra.mxu0 0
  %1387 = vmatprep.subr.bf16.mxu0 0
  %1388 = vmatpush1.bf16.msra.mxu0 0
  %1389 = vmatprep.subr.bf16.mxu0 0
  %1390 = vmatpush1.bf16.msra.mxu0 0
  %1391 = vmatprep.subr.bf16.mxu0 0
  %1392 = vmatpush1.bf16.msra.mxu0 0
  %1393 = vmatprep.subr.bf16.mxu0 0
  %1394 = vmatpush1.bf16.msra.mxu0 0
  %1395 = vmatprep.subr.bf16.mxu0 0
  %1396 = vmatpush1.bf16.msra.mxu0 0
  %1397 = vmatprep.subr.bf16.mxu0 0
  %1398 = vmatpush1.bf16.msra.mxu0 0
  %1399 = vmatprep.subr.bf16.mxu0 0
  %1400 = vmatpush1.bf16.msra.mxu0 0
  %1401 = vmatprep.subr.bf16.mxu0 0
  %1402 = vmatpush1.bf16.msra.mxu0 0
  %1403 = vmatprep.subr.bf16.mxu0 0
  %1404 = vmatpush1.bf16.msra.mxu0 0
  %1405 = vmatprep.subr.bf16.mxu0 0
  %1406 = vmatpush1.bf16.msra.mxu0 0
  %1407 = vmatprep.mubr.bf16.mxu0 0
  %1408 = vmatmul.mubr.bf16.gmra.mrb[0].mxu0 %v1317
  %v1409 = vpop.f32.mrb[0].mxu0
  %v1410 = vadd.f32 %v1357, %v1409
  %v1411 = vpop.f32.mrb[0].mxu0
  %v1412 = vadd.f32 %v1359, %v1411
  %v1413 = vpop.f32.mrb[0].mxu0
  %v1414 = vadd.f32 %v1361, %v1413
  %v1415 = vpop.f32.mrb[0].mxu0
  %v1416 = vadd.f32 %v1363, %v1415
  %1417 = vmatprep.mubr.bf16.mxu0 0
  %1418 = vmatmul.mubr.bf16.gmra.mrb[0].mxu0 %v1320
  %v1419 = vpop.f32.mrb[0].mxu0
  %v1420 = vadd.f32 %v1367, %v1419
  %v1421 = vpop.f32.mrb[0].mxu0
  %v1422 = vadd.f32 %v1369, %v1421
  %v1423 = vpop.f32.mrb[0].mxu0
  %v1424 = vadd.f32 %v1371, %v1423
  %v1425 = vpop.f32.mrb[0].mxu0
  %v1426 = vadd.f32 %v1373, %v1425
  %1427 = vdwg.mxu0
  %1428 = vmatprep.subr.bf16.mxu0 %v1184
  %1429 = vmatpush1.bf16.msra.mxu0 %v1183
  %1430 = vmatprep.subr.bf16.mxu0 %v1188
  %1431 = vmatpush1.bf16.msra.mxu0 %v1187
  %1432 = vmatprep.subr.bf16.mxu0 %v1192
  %1433 = vmatpush1.bf16.msra.mxu0 %v1191
  %1434 = vmatprep.subr.bf16.mxu0 %v1196
  %1435 = vmatpush1.bf16.msra.mxu0 %v1195
  %1436 = vmatprep.subr.bf16.mxu0 %v1200
  %1437 = vmatpush1.bf16.msra.mxu0 %v1199
  %1438 = vmatprep.subr.bf16.mxu0 %v1204
  %1439 = vmatpush1.bf16.msra.mxu0 %v1203
  %1440 = vmatprep.subr.bf16.mxu0 %v1208
  %1441 = vmatpush1.bf16.msra.mxu0 %v1207
  %1442 = vmatprep.subr.bf16.mxu0 %v1212
  %1443 = vmatpush1.bf16.msra.mxu0 %v1211
  %1444 = vmatprep.subr.bf16.mxu0 %v1216
  %1445 = vmatpush1.bf16.msra.mxu0 %v1215
  %1446 = vmatprep.subr.bf16.mxu0 %v1220
  %1447 = vmatpush1.bf16.msra.mxu0 %v1219
  %1448 = vmatprep.subr.bf16.mxu0 %v1224
  %1449 = vmatpush1.bf16.msra.mxu0 %v1223
  %1450 = vmatprep.subr.bf16.mxu0 %v1228
  %1451 = vmatpush1.bf16.msra.mxu0 %v1227
  %1452 = vmatprep.subr.bf16.mxu0 %v1232
  %1453 = vmatpush1.bf16.msra.mxu0 %v1231
  %1454 = vmatprep.subr.bf16.mxu0 %v1236
  %1455 = vmatpush1.bf16.msra.mxu0 %v1235
  %1456 = vmatprep.subr.bf16.mxu0 %v1240
  %1457 = vmatpush1.bf16.msra.mxu0 %v1239
  %1458 = vmatprep.subr.bf16.mxu0 %v1244
  %1459 = vmatpush1.bf16.msra.mxu0 %v1243
  %1460 = vmatprep.mubr.bf16.mxu0 %v1306
  %1461 = vmatmul.mubr.bf16.gmra.mrb[0].mxu0 %v1305
  %v1462 = vpop.f32.mrb[0].mxu0
  %v1463 = vadd.f32 %v1268, %v1462
  %v1464 = vpop.f32.mrb[0].mxu0
  %v1465 = vadd.f32 %v1268, %v1464
  %v1466 = vpop.f32.mrb[0].mxu0
  %v1467 = vadd.f32 %v1273, %v1466
  %v1468 = vpop.f32.mrb[0].mxu0
  %v1469 = vadd.f32 %v1273, %v1468
  %1470 = vmatprep.mubr.bf16.mxu0 %v1309
  %1471 = vmatmul.mubr.bf16.gmra.mrb[0].mxu0 %v1308
  %v1472 = vpop.f32.mrb[0].mxu0
  %v1473 = vadd.f32 %v1278, %v1472
  %v1474 = vpop.f32.mrb[0].mxu0
  %v1475 = vadd.f32 %v1278, %v1474
  %v1476 = vpop.f32.mrb[0].mxu0
  %v1477 = vadd.f32 %v1283, %v1476
  %v1478 = vpop.f32.mrb[0].mxu0
  %v1479 = vadd.f32 %v1283, %v1478
  %1480 = vdwg.mxu0
  %1481 = vmatprep.subr.bf16.mxu0 %v1248
  %1482 = vmatpush1.bf16.msra.mxu0 %v1247
  %1483 = vmatprep.subr.bf16.mxu0 %v1252
  %1484 = vmatpush1.bf16.msra.mxu0 %v1251
  %1485 = vmatprep.subr.bf16.mxu0 0
  %1486 = vmatpush1.bf16.msra.mxu0 0
  %1487 = vmatprep.subr.bf16.mxu0 0
  %1488 = vmatpush1.bf16.msra.mxu0 0
  %1489 = vmatprep.subr.bf16.mxu0 0
  %1490 = vmatpush1.bf16.msra.mxu0 0
  %1491 = vmatprep.subr.bf16.mxu0 0
  %1492 = vmatpush1.bf16.msra.mxu0 0
  %1493 = vmatprep.subr.bf16.mxu0 0
  %1494 = vmatpush1.bf16.msra.mxu0 0
  %1495 = vmatprep.subr.bf16.mxu0 0
  %1496 = vmatpush1.bf16.msra.mxu0 0
  %1497 = vmatprep.subr.bf16.mxu0 0
  %1498 = vmatpush1.bf16.msra.mxu0 0
  %1499 = vmatprep.subr.bf16.mxu0 0
  %1500 = vmatpush1.bf16.msra.mxu0 0
  %1501 = vmatprep.subr.bf16.mxu0 0
  %1502 = vmatpush1.bf16.msra.mxu0 0
  %1503 = vmatprep.subr.bf16.mxu0 0
  %1504 = vmatpush1.bf16.msra.mxu0 0
  %1505 = vmatprep.subr.bf16.mxu0 0
  %1506 = vmatpush1.bf16.msra.mxu0 0
  %1507 = vmatprep.subr.bf16.mxu0 0
  %1508 = vmatpush1.bf16.msra.mxu0 0
  %1509 = vmatprep.subr.bf16.mxu0 0
  %1510 = vmatpush1.bf16.msra.mxu0 0
  %1511 = vmatprep.subr.bf16.mxu0 0
  %1512 = vmatpush1.bf16.msra.mxu0 0
  %1513 = vmatprep.mubr.bf16.mxu0 0
  %1514 = vmatmul.mubr.bf16.gmra.mrb[0].mxu0 %v1317
  %v1515 = vpop.f32.mrb[0].mxu0
  %v1516 = vadd.f32 %v1463, %v1515
  %v1517 = vpop.f32.mrb[0].mxu0
  %v1518 = vadd.f32 %v1465, %v1517
  %v1519 = vpop.f32.mrb[0].mxu0
  %v1520 = vadd.f32 %v1467, %v1519
  %v1521 = vpop.f32.mrb[0].mxu0
  %v1522 = vadd.f32 %v1469, %v1521
  %1523 = vmatprep.mubr.bf16.mxu0 0
  %1524 = vmatmul.mubr.bf16.gmra.mrb[0].mxu0 %v1320
  %v1525 = vpop.f32.mrb[0].mxu0
  %v1526 = vadd.f32 %v1473, %v1525
  %v1527 = vpop.f32.mrb[0].mxu0
  %v1528 = vadd.f32 %v1475, %v1527
  %v1529 = vpop.f32.mrb[0].mxu0
  %v1530 = vadd.f32 %v1477, %v1529
  %v1531 = vpop.f32.mrb[0].mxu0
  %v1532 = vadd.f32 %v1479, %v1531
  %1533 = vdwg.mxu0
  %v1534 = vmax.f32 %v1410, 0.0
  %v1535 = vmax.f32 %v1412, 0.0
  %v1536 = vmax.f32 %v1516, 0.0
  %v1537 = vmax.f32 %v1518, 0.0
  %v1538 = vmax.f32 %v1414, 0.0
  %v1539 = vmax.f32 %v1416, 0.0
  %v1540 = vmax.f32 %v1520, 0.0
  %v1541 = vmax.f32 %v1522, 0.0
  %v1542 = vmax.f32 %v1420, 0.0
  %v1543 = vmax.f32 %v1422, 0.0
  %v1544 = vmax.f32 %v1526, 0.0
  %v1545 = vmax.f32 %v1528, 0.0
  %v1546 = vmax.f32 %v1424, 0.0
  %v1547 = vmax.f32 %v1426, 0.0
  %v1548 = vmax.f32 %v1530, 0.0
  %v1549 = vmax.f32 %v1532, 0.0
  %1550 = vrot.lane.b32.xlu0 %v653, 17
  %v1551 = vpop.permute.xlu0 %1550
  %1552 = vrot.lane.b32.xlu0 %v657, 17
  %v1553 = vpop.permute.xlu0 %1552
  %1554 = vrot.lane.b32.xlu0 %v661, 17
  %v1555 = vpop.permute.xlu0 %1554
  %1556 = vrot.lane.b32.xlu0 %v665, 17
  %v1557 = vpop.permute.xlu0 %1556
  %1558 = vrot.lane.b32.xlu0 %v654, 17
  %v1559 = vpop.permute.xlu0 %1558
  %1560 = vrot.lane.b32.xlu0 %v658, 17
  %v1561 = vpop.permute.xlu0 %1560
  %1562 = vrot.lane.b32.xlu0 %v662, 17
  %v1563 = vpop.permute.xlu0 %1562
  %1564 = vrot.lane.b32.xlu0 %v666, 17
  %v1565 = vpop.permute.xlu0 %1564
  %1566 = vrot.lane.b32.xlu0 %v655, 17
  %v1567 = vpop.permute.xlu0 %1566
  %1568 = vrot.lane.b32.xlu0 %v659, 17
  %v1569 = vpop.permute.xlu0 %1568
  %1570 = vrot.lane.b32.xlu0 %v663, 17
  %v1571 = vpop.permute.xlu0 %1570
  %1572 = vrot.lane.b32.xlu0 %v667, 17
  %v1573 = vpop.permute.xlu0 %1572
  %1574 = vrot.lane.b32.xlu0 %v656, 17
  %v1575 = vpop.permute.xlu0 %1574
  %1576 = vrot.lane.b32.xlu0 %v660, 17
  %v1577 = vpop.permute.xlu0 %1576
  %1578 = vrot.lane.b32.xlu0 %v664, 17
  %v1579 = vpop.permute.xlu0 %1578
  %1580 = vrot.lane.b32.xlu0 %v668, 17
  %v1581 = vpop.permute.xlu0 %1580
  %v1582 = vsel %vm58, %v1567, %v1575
  %v1583 = vsel %vm58, %v1569, %v1577
  %v1584 = vsel %vm58, %v1571, %v1579
  %v1585 = vsel %vm58, %v1573, %v1581
  %v1586 = vsel %vm58, %v1559, %v1567
  %v1587 = vsel %vm58, %v1561, %v1569
  %v1588 = vsel %vm58, %v1563, %v1571
  %v1589 = vsel %vm58, %v1565, %v1573
  %v1590 = vsel %vm58, %v1551, %v1559
  %v1591 = vsel %vm58, %v1553, %v1561
  %v1592 = vsel %vm58, %v1555, %v1563
  %v1593 = vsel %vm58, %v1557, %v1565
  %v1594 = vsel %vm58, %v1575, %v1551
  %v1595 = vsel %vm58, %v1577, %v1553
  %v1596 = vsel %vm58, %v1579, %v1555
  %v1597 = vsel %vm58, %v1581, %v1557
  %v1598 = vmul.f32 %v1594, %v68
  %v1599 = vmul.f32 %v1590, %v72
  %v1600 = vmul.f32 %v1586, %v76
  %v1601 = vmul.f32 %v1582, %v80
  %v1602 = vmul.f32 %v1595, %v68
  %v1603 = vmul.f32 %v1591, %v72
  %v1604 = vmul.f32 %v1587, %v76
  %v1605 = vmul.f32 %v1583, %v80
  %v1606 = vmul.f32 %v1596, %v68
  %v1607 = vmul.f32 %v1592, %v72
  %v1608 = vmul.f32 %v1588, %v76
  %v1609 = vmul.f32 %v1584, %v80
  %v1610 = vmul.f32 %v1597, %v68
  %v1611 = vmul.f32 %v1593, %v72
  %v1612 = vmul.f32 %v1589, %v76
  %v1613 = vmul.f32 %v1585, %v80
  %1614 = vrot.lane.b32.xlu0 %v653, 16
  %v1615 = vpop.permute.xlu0 %1614
  %1616 = vrot.lane.b32.xlu0 %v657, 16
  %v1617 = vpop.permute.xlu0 %1616
  %1618 = vrot.lane.b32.xlu0 %v661, 16
  %v1619 = vpop.permute.xlu0 %1618
  %1620 = vrot.lane.b32.xlu0 %v665, 16
  %v1621 = vpop.permute.xlu0 %1620
  %1622 = vrot.lane.b32.xlu0 %v654, 16
  %v1623 = vpop.permute.xlu0 %1622
  %1624 = vrot.lane.b32.xlu0 %v658, 16
  %v1625 = vpop.permute.xlu0 %1624
  %1626 = vrot.lane.b32.xlu0 %v662, 16
  %v1627 = vpop.permute.xlu0 %1626
  %1628 = vrot.lane.b32.xlu0 %v666, 16
  %v1629 = vpop.permute.xlu0 %1628
  %1630 = vrot.lane.b32.xlu0 %v655, 16
  %v1631 = vpop.permute.xlu0 %1630
  %1632 = vrot.lane.b32.xlu0 %v659, 16
  %v1633 = vpop.permute.xlu0 %1632
  %1634 = vrot.lane.b32.xlu0 %v663, 16
  %v1635 = vpop.permute.xlu0 %1634
  %1636 = vrot.lane.b32.xlu0 %v667, 16
  %v1637 = vpop.permute.xlu0 %1636
  %1638 = vrot.lane.b32.xlu0 %v656, 16
  %v1639 = vpop.permute.xlu0 %1638
  %1640 = vrot.lane.b32.xlu0 %v660, 16
  %v1641 = vpop.permute.xlu0 %1640
  %1642 = vrot.lane.b32.xlu0 %v664, 16
  %v1643 = vpop.permute.xlu0 %1642
  %1644 = vrot.lane.b32.xlu0 %v668, 16
  %v1645 = vpop.permute.xlu0 %1644
  %v1646 = vsel %vm97, %v1631, %v1639
  %v1647 = vsel %vm97, %v1633, %v1641
  %v1648 = vsel %vm97, %v1635, %v1643
  %v1649 = vsel %vm97, %v1637, %v1645
  %v1650 = vsel %vm97, %v1623, %v1631
  %v1651 = vsel %vm97, %v1625, %v1633
  %v1652 = vsel %vm97, %v1627, %v1635
  %v1653 = vsel %vm97, %v1629, %v1637
  %v1654 = vsel %vm97, %v1615, %v1623
  %v1655 = vsel %vm97, %v1617, %v1625
  %v1656 = vsel %vm97, %v1619, %v1627
  %v1657 = vsel %vm97, %v1621, %v1629
  %v1658 = vsel %vm97, %v1639, %v1615
  %v1659 = vsel %vm97, %v1641, %v1617
  %v1660 = vsel %vm97, %v1643, %v1619
  %v1661 = vsel %vm97, %v1645, %v1621
  %v1662 = vmul.f32 %v1658, %v108
  %v1663 = vmul.f32 %v1654, %v112
  %v1664 = vmul.f32 %v1650, %v116
  %v1665 = vmul.f32 %v1646, %v120
  %v1666 = vmul.f32 %v1659, %v108
  %v1667 = vmul.f32 %v1655, %v112
  %v1668 = vmul.f32 %v1651, %v116
  %v1669 = vmul.f32 %v1647, %v120
  %v1670 = vmul.f32 %v1660, %v108
  %v1671 = vmul.f32 %v1656, %v112
  %v1672 = vmul.f32 %v1652, %v116
  %v1673 = vmul.f32 %v1648, %v120
  %v1674 = vmul.f32 %v1661, %v108
  %v1675 = vmul.f32 %v1657, %v112
  %v1676 = vmul.f32 %v1653, %v116
  %v1677 = vmul.f32 %v1649, %v120
  %1678 = vrot.lane.b32.xlu0 %v653, 15
  %v1679 = vpop.permute.xlu0 %1678
  %1680 = vrot.lane.b32.xlu0 %v657, 15
  %v1681 = vpop.permute.xlu0 %1680
  %1682 = vrot.lane.b32.xlu0 %v661, 15
  %v1683 = vpop.permute.xlu0 %1682
  %1684 = vrot.lane.b32.xlu0 %v665, 15
  %v1685 = vpop.permute.xlu0 %1684
  %1686 = vrot.lane.b32.xlu0 %v654, 15
  %v1687 = vpop.permute.xlu0 %1686
  %1688 = vrot.lane.b32.xlu0 %v658, 15
  %v1689 = vpop.permute.xlu0 %1688
  %1690 = vrot.lane.b32.xlu0 %v662, 15
  %v1691 = vpop.permute.xlu0 %1690
  %1692 = vrot.lane.b32.xlu0 %v666, 15
  %v1693 = vpop.permute.xlu0 %1692
  %1694 = vrot.lane.b32.xlu0 %v655, 15
  %v1695 = vpop.permute.xlu0 %1694
  %1696 = vrot.lane.b32.xlu0 %v659, 15
  %v1697 = vpop.permute.xlu0 %1696
  %1698 = vrot.lane.b32.xlu0 %v663, 15
  %v1699 = vpop.permute.xlu0 %1698
  %1700 = vrot.lane.b32.xlu0 %v667, 15
  %v1701 = vpop.permute.xlu0 %1700
  %1702 = vrot.lane.b32.xlu0 %v656, 15
  %v1703 = vpop.permute.xlu0 %1702
  %1704 = vrot.lane.b32.xlu0 %v660, 15
  %v1705 = vpop.permute.xlu0 %1704
  %1706 = vrot.lane.b32.xlu0 %v664, 15
  %v1707 = vpop.permute.xlu0 %1706
  %1708 = vrot.lane.b32.xlu0 %v668, 15
  %v1709 = vpop.permute.xlu0 %1708
  %v1710 = vsel %vm137, %v1695, %v1703
  %v1711 = vsel %vm137, %v1697, %v1705
  %v1712 = vsel %vm137, %v1699, %v1707
  %v1713 = vsel %vm137, %v1701, %v1709
  %v1714 = vsel %vm137, %v1687, %v1695
  %v1715 = vsel %vm137, %v1689, %v1697
  %v1716 = vsel %vm137, %v1691, %v1699
  %v1717 = vsel %vm137, %v1693, %v1701
  %v1718 = vsel %vm137, %v1679, %v1687
  %v1719 = vsel %vm137, %v1681, %v1689
  %v1720 = vsel %vm137, %v1683, %v1691
  %v1721 = vsel %vm137, %v1685, %v1693
  %v1722 = vsel %vm137, %v1703, %v1679
  %v1723 = vsel %vm137, %v1705, %v1681
  %v1724 = vsel %vm137, %v1707, %v1683
  %v1725 = vsel %vm137, %v1709, %v1685
  %v1726 = vmul.f32 %v1722, %v148
  %v1727 = vmul.f32 %v1718, %v152
  %v1728 = vmul.f32 %v1714, %v156
  %v1729 = vmul.f32 %v1710, %v160
  %v1730 = vmul.f32 %v1723, %v148
  %v1731 = vmul.f32 %v1719, %v152
  %v1732 = vmul.f32 %v1715, %v156
  %v1733 = vmul.f32 %v1711, %v160
  %v1734 = vmul.f32 %v1724, %v148
  %v1735 = vmul.f32 %v1720, %v152
  %v1736 = vmul.f32 %v1716, %v156
  %v1737 = vmul.f32 %v1712, %v160
  %v1738 = vmul.f32 %v1725, %v148
  %v1739 = vmul.f32 %v1721, %v152
  %v1740 = vmul.f32 %v1717, %v156
  %v1741 = vmul.f32 %v1713, %v160
  %1742 = vrot.lane.b32.xlu0 %v653, 1
  %v1743 = vpop.permute.xlu0 %1742
  %1744 = vrot.lane.b32.xlu0 %v657, 1
  %v1745 = vpop.permute.xlu0 %1744
  %1746 = vrot.lane.b32.xlu0 %v661, 1
  %v1747 = vpop.permute.xlu0 %1746
  %1748 = vrot.lane.b32.xlu0 %v665, 1
  %v1749 = vpop.permute.xlu0 %1748
  %1750 = vrot.lane.b32.xlu0 %v654, 1
  %v1751 = vpop.permute.xlu0 %1750
  %1752 = vrot.lane.b32.xlu0 %v658, 1
  %v1753 = vpop.permute.xlu0 %1752
  %1754 = vrot.lane.b32.xlu0 %v662, 1
  %v1755 = vpop.permute.xlu0 %1754
  %1756 = vrot.lane.b32.xlu0 %v666, 1
  %v1757 = vpop.permute.xlu0 %1756
  %1758 = vrot.lane.b32.xlu0 %v655, 1
  %v1759 = vpop.permute.xlu0 %1758
  %1760 = vrot.lane.b32.xlu0 %v659, 1
  %v1761 = vpop.permute.xlu0 %1760
  %1762 = vrot.lane.b32.xlu0 %v663, 1
  %v1763 = vpop.permute.xlu0 %1762
  %1764 = vrot.lane.b32.xlu0 %v667, 1
  %v1765 = vpop.permute.xlu0 %1764
  %1766 = vrot.lane.b32.xlu0 %v656, 1
  %v1767 = vpop.permute.xlu0 %1766
  %1768 = vrot.lane.b32.xlu0 %v660, 1
  %v1769 = vpop.permute.xlu0 %1768
  %1770 = vrot.lane.b32.xlu0 %v664, 1
  %v1771 = vpop.permute.xlu0 %1770
  %1772 = vrot.lane.b32.xlu0 %v668, 1
  %v1773 = vpop.permute.xlu0 %1772
  %v1774 = vsel %vm177, %v1759, %v1767
  %v1775 = vsel %vm177, %v1761, %v1769
  %v1776 = vsel %vm177, %v1763, %v1771
  %v1777 = vsel %vm177, %v1765, %v1773
  %v1778 = vsel %vm177, %v1751, %v1759
  %v1779 = vsel %vm177, %v1753, %v1761
  %v1780 = vsel %vm177, %v1755, %v1763
  %v1781 = vsel %vm177, %v1757, %v1765
  %v1782 = vsel %vm177, %v1743, %v1751
  %v1783 = vsel %vm177, %v1745, %v1753
  %v1784 = vsel %vm177, %v1747, %v1755
  %v1785 = vsel %vm177, %v1749, %v1757
  %v1786 = vsel %vm177, %v1767, %v1743
  %v1787 = vsel %vm177, %v1769, %v1745
  %v1788 = vsel %vm177, %v1771, %v1747
  %v1789 = vsel %vm177, %v1773, %v1749
  %v1790 = vmul.f32 %v1786, %v188
  %v1791 = vmul.f32 %v1782, %v192
  %v1792 = vmul.f32 %v1778, %v196
  %v1793 = vmul.f32 %v1774, %v200
  %v1794 = vmul.f32 %v1787, %v188
  %v1795 = vmul.f32 %v1783, %v192
  %v1796 = vmul.f32 %v1779, %v196
  %v1797 = vmul.f32 %v1775, %v200
  %v1798 = vmul.f32 %v1788, %v188
  %v1799 = vmul.f32 %v1784, %v192
  %v1800 = vmul.f32 %v1780, %v196
  %v1801 = vmul.f32 %v1776, %v200
  %v1802 = vmul.f32 %v1789, %v188
  %v1803 = vmul.f32 %v1785, %v192
  %v1804 = vmul.f32 %v1781, %v196
  %v1805 = vmul.f32 %v1777, %v200
  %1806 = vrot.lane.b32.xlu0 %v653, 127
  %v1807 = vpop.permute.xlu0 %1806
  %1808 = vrot.lane.b32.xlu0 %v657, 127
  %v1809 = vpop.permute.xlu0 %1808
  %1810 = vrot.lane.b32.xlu0 %v661, 127
  %v1811 = vpop.permute.xlu0 %1810
  %1812 = vrot.lane.b32.xlu0 %v665, 127
  %v1813 = vpop.permute.xlu0 %1812
  %1814 = vrot.lane.b32.xlu0 %v654, 127
  %v1815 = vpop.permute.xlu0 %1814
  %1816 = vrot.lane.b32.xlu0 %v658, 127
  %v1817 = vpop.permute.xlu0 %1816
  %1818 = vrot.lane.b32.xlu0 %v662, 127
  %v1819 = vpop.permute.xlu0 %1818
  %1820 = vrot.lane.b32.xlu0 %v666, 127
  %v1821 = vpop.permute.xlu0 %1820
  %1822 = vrot.lane.b32.xlu0 %v655, 127
  %v1823 = vpop.permute.xlu0 %1822
  %1824 = vrot.lane.b32.xlu0 %v659, 127
  %v1825 = vpop.permute.xlu0 %1824
  %1826 = vrot.lane.b32.xlu0 %v663, 127
  %v1827 = vpop.permute.xlu0 %1826
  %1828 = vrot.lane.b32.xlu0 %v667, 127
  %v1829 = vpop.permute.xlu0 %1828
  %1830 = vrot.lane.b32.xlu0 %v656, 127
  %v1831 = vpop.permute.xlu0 %1830
  %1832 = vrot.lane.b32.xlu0 %v660, 127
  %v1833 = vpop.permute.xlu0 %1832
  %1834 = vrot.lane.b32.xlu0 %v664, 127
  %v1835 = vpop.permute.xlu0 %1834
  %1836 = vrot.lane.b32.xlu0 %v668, 127
  %v1837 = vpop.permute.xlu0 %1836
  %v1838 = vsel %vm217, %v1823, %v1831
  %v1839 = vsel %vm217, %v1825, %v1833
  %v1840 = vsel %vm217, %v1827, %v1835
  %v1841 = vsel %vm217, %v1829, %v1837
  %v1842 = vsel %vm217, %v1815, %v1823
  %v1843 = vsel %vm217, %v1817, %v1825
  %v1844 = vsel %vm217, %v1819, %v1827
  %v1845 = vsel %vm217, %v1821, %v1829
  %v1846 = vsel %vm217, %v1807, %v1815
  %v1847 = vsel %vm217, %v1809, %v1817
  %v1848 = vsel %vm217, %v1811, %v1819
  %v1849 = vsel %vm217, %v1813, %v1821
  %v1850 = vsel %vm217, %v1831, %v1807
  %v1851 = vsel %vm217, %v1833, %v1809
  %v1852 = vsel %vm217, %v1835, %v1811
  %v1853 = vsel %vm217, %v1837, %v1813
  %v1854 = vmul.f32 %v1846, %v228
  %v1855 = vmul.f32 %v1842, %v232
  %v1856 = vmul.f32 %v1838, %v236
  %v1857 = vmul.f32 %v1850, %v240
  %v1858 = vmul.f32 %v1847, %v228
  %v1859 = vmul.f32 %v1843, %v232
  %v1860 = vmul.f32 %v1839, %v236
  %v1861 = vmul.f32 %v1851, %v240
  %v1862 = vmul.f32 %v1848, %v228
  %v1863 = vmul.f32 %v1844, %v232
  %v1864 = vmul.f32 %v1840, %v236
  %v1865 = vmul.f32 %v1852, %v240
  %v1866 = vmul.f32 %v1849, %v228
  %v1867 = vmul.f32 %v1845, %v232
  %v1868 = vmul.f32 %v1841, %v236
  %v1869 = vmul.f32 %v1853, %v240
  %1870 = vrot.lane.b32.xlu0 %v653, 113
  %v1871 = vpop.permute.xlu0 %1870
  %1872 = vrot.lane.b32.xlu0 %v657, 113
  %v1873 = vpop.permute.xlu0 %1872
  %1874 = vrot.lane.b32.xlu0 %v661, 113
  %v1875 = vpop.permute.xlu0 %1874
  %1876 = vrot.lane.b32.xlu0 %v665, 113
  %v1877 = vpop.permute.xlu0 %1876
  %1878 = vrot.lane.b32.xlu0 %v654, 113
  %v1879 = vpop.permute.xlu0 %1878
  %1880 = vrot.lane.b32.xlu0 %v658, 113
  %v1881 = vpop.permute.xlu0 %1880
  %1882 = vrot.lane.b32.xlu0 %v662, 113
  %v1883 = vpop.permute.xlu0 %1882
  %1884 = vrot.lane.b32.xlu0 %v666, 113
  %v1885 = vpop.permute.xlu0 %1884
  %1886 = vrot.lane.b32.xlu0 %v655, 113
  %v1887 = vpop.permute.xlu0 %1886
  %1888 = vrot.lane.b32.xlu0 %v659, 113
  %v1889 = vpop.permute.xlu0 %1888
  %1890 = vrot.lane.b32.xlu0 %v663, 113
  %v1891 = vpop.permute.xlu0 %1890
  %1892 = vrot.lane.b32.xlu0 %v667, 113
  %v1893 = vpop.permute.xlu0 %1892
  %1894 = vrot.lane.b32.xlu0 %v656, 113
  %v1895 = vpop.permute.xlu0 %1894
  %1896 = vrot.lane.b32.xlu0 %v660, 113
  %v1897 = vpop.permute.xlu0 %1896
  %1898 = vrot.lane.b32.xlu0 %v664, 113
  %v1899 = vpop.permute.xlu0 %1898
  %1900 = vrot.lane.b32.xlu0 %v668, 113
  %v1901 = vpop.permute.xlu0 %1900
  %v1902 = vsel %vm257, %v1887, %v1895
  %v1903 = vsel %vm257, %v1889, %v1897
  %v1904 = vsel %vm257, %v1891, %v1899
  %v1905 = vsel %vm257, %v1893, %v1901
  %v1906 = vsel %vm257, %v1879, %v1887
  %v1907 = vsel %vm257, %v1881, %v1889
  %v1908 = vsel %vm257, %v1883, %v1891
  %v1909 = vsel %vm257, %v1885, %v1893
  %v1910 = vsel %vm257, %v1871, %v1879
  %v1911 = vsel %vm257, %v1873, %v1881
  %v1912 = vsel %vm257, %v1875, %v1883
  %v1913 = vsel %vm257, %v1877, %v1885
  %v1914 = vsel %vm257, %v1895, %v1871
  %v1915 = vsel %vm257, %v1897, %v1873
  %v1916 = vsel %vm257, %v1899, %v1875
  %v1917 = vsel %vm257, %v1901, %v1877
  %v1918 = vmul.f32 %v1910, %v268
  %v1919 = vmul.f32 %v1906, %v272
  %v1920 = vmul.f32 %v1902, %v276
  %v1921 = vmul.f32 %v1914, %v280
  %v1922 = vmul.f32 %v1911, %v268
  %v1923 = vmul.f32 %v1907, %v272
  %v1924 = vmul.f32 %v1903, %v276
  %v1925 = vmul.f32 %v1915, %v280
  %v1926 = vmul.f32 %v1912, %v268
  %v1927 = vmul.f32 %v1908, %v272
  %v1928 = vmul.f32 %v1904, %v276
  %v1929 = vmul.f32 %v1916, %v280
  %v1930 = vmul.f32 %v1913, %v268
  %v1931 = vmul.f32 %v1909, %v272
  %v1932 = vmul.f32 %v1905, %v276
  %v1933 = vmul.f32 %v1917, %v280
  %1934 = vrot.lane.b32.xlu0 %v653, 112
  %v1935 = vpop.permute.xlu0 %1934
  %1936 = vrot.lane.b32.xlu0 %v657, 112
  %v1937 = vpop.permute.xlu0 %1936
  %1938 = vrot.lane.b32.xlu0 %v661, 112
  %v1939 = vpop.permute.xlu0 %1938
  %1940 = vrot.lane.b32.xlu0 %v665, 112
  %v1941 = vpop.permute.xlu0 %1940
  %1942 = vrot.lane.b32.xlu0 %v654, 112
  %v1943 = vpop.permute.xlu0 %1942
  %1944 = vrot.lane.b32.xlu0 %v658, 112
  %v1945 = vpop.permute.xlu0 %1944
  %1946 = vrot.lane.b32.xlu0 %v662, 112
  %v1947 = vpop.permute.xlu0 %1946
  %1948 = vrot.lane.b32.xlu0 %v666, 112
  %v1949 = vpop.permute.xlu0 %1948
  %1950 = vrot.lane.b32.xlu0 %v655, 112
  %v1951 = vpop.permute.xlu0 %1950
  %1952 = vrot.lane.b32.xlu0 %v659, 112
  %v1953 = vpop.permute.xlu0 %1952
  %1954 = vrot.lane.b32.xlu0 %v663, 112
  %v1955 = vpop.permute.xlu0 %1954
  %1956 = vrot.lane.b32.xlu0 %v667, 112
  %v1957 = vpop.permute.xlu0 %1956
  %1958 = vrot.lane.b32.xlu0 %v656, 112
  %v1959 = vpop.permute.xlu0 %1958
  %1960 = vrot.lane.b32.xlu0 %v660, 112
  %v1961 = vpop.permute.xlu0 %1960
  %1962 = vrot.lane.b32.xlu0 %v664, 112
  %v1963 = vpop.permute.xlu0 %1962
  %1964 = vrot.lane.b32.xlu0 %v668, 112
  %v1965 = vpop.permute.xlu0 %1964
  %v1966 = vsel %vm297, %v1951, %v1959
  %v1967 = vsel %vm297, %v1953, %v1961
  %v1968 = vsel %vm297, %v1955, %v1963
  %v1969 = vsel %vm297, %v1957, %v1965
  %v1970 = vsel %vm297, %v1943, %v1951
  %v1971 = vsel %vm297, %v1945, %v1953
  %v1972 = vsel %vm297, %v1947, %v1955
  %v1973 = vsel %vm297, %v1949, %v1957
  %v1974 = vsel %vm297, %v1935, %v1943
  %v1975 = vsel %vm297, %v1937, %v1945
  %v1976 = vsel %vm297, %v1939, %v1947
  %v1977 = vsel %vm297, %v1941, %v1949
  %v1978 = vsel %vm297, %v1959, %v1935
  %v1979 = vsel %vm297, %v1961, %v1937
  %v1980 = vsel %vm297, %v1963, %v1939
  %v1981 = vsel %vm297, %v1965, %v1941
  %v1982 = vmul.f32 %v1974, %v308
  %v1983 = vmul.f32 %v1970, %v312
  %v1984 = vmul.f32 %v1966, %v316
  %v1985 = vmul.f32 %v1978, %v320
  %v1986 = vmul.f32 %v1975, %v308
  %v1987 = vmul.f32 %v1971, %v312
  %v1988 = vmul.f32 %v1967, %v316
  %v1989 = vmul.f32 %v1979, %v320
  %v1990 = vmul.f32 %v1976, %v308
  %v1991 = vmul.f32 %v1972, %v312
  %v1992 = vmul.f32 %v1968, %v316
  %v1993 = vmul.f32 %v1980, %v320
  %v1994 = vmul.f32 %v1977, %v308
  %v1995 = vmul.f32 %v1973, %v312
  %v1996 = vmul.f32 %v1969, %v316
  %v1997 = vmul.f32 %v1981, %v320
  %1998 = vrot.lane.b32.xlu0 %v653, 111
  %v1999 = vpop.permute.xlu0 %1998
  %2000 = vrot.lane.b32.xlu0 %v657, 111
  %v2001 = vpop.permute.xlu0 %2000
  %2002 = vrot.lane.b32.xlu0 %v661, 111
  %v2003 = vpop.permute.xlu0 %2002
  %2004 = vrot.lane.b32.xlu0 %v665, 111
  %v2005 = vpop.permute.xlu0 %2004
  %2006 = vrot.lane.b32.xlu0 %v654, 111
  %v2007 = vpop.permute.xlu0 %2006
  %2008 = vrot.lane.b32.xlu0 %v658, 111
  %v2009 = vpop.permute.xlu0 %2008
  %2010 = vrot.lane.b32.xlu0 %v662, 111
  %v2011 = vpop.permute.xlu0 %2010
  %2012 = vrot.lane.b32.xlu0 %v666, 111
  %v2013 = vpop.permute.xlu0 %2012
  %2014 = vrot.lane.b32.xlu0 %v655, 111
  %v2015 = vpop.permute.xlu0 %2014
  %2016 = vrot.lane.b32.xlu0 %v659, 111
  %v2017 = vpop.permute.xlu0 %2016
  %2018 = vrot.lane.b32.xlu0 %v663, 111
  %v2019 = vpop.permute.xlu0 %2018
  %2020 = vrot.lane.b32.xlu0 %v667, 111
  %v2021 = vpop.permute.xlu0 %2020
  %2022 = vrot.lane.b32.xlu0 %v656, 111
  %v2023 = vpop.permute.xlu0 %2022
  %2024 = vrot.lane.b32.xlu0 %v660, 111
  %v2025 = vpop.permute.xlu0 %2024
  %2026 = vrot.lane.b32.xlu0 %v664, 111
  %v2027 = vpop.permute.xlu0 %2026
  %2028 = vrot.lane.b32.xlu0 %v668, 111
  %v2029 = vpop.permute.xlu0 %2028
  %v2030 = vsel %vm337, %v2015, %v2023
  %v2031 = vsel %vm337, %v2017, %v2025
  %v2032 = vsel %vm337, %v2019, %v2027
  %v2033 = vsel %vm337, %v2021, %v2029
  %v2034 = vsel %vm337, %v2007, %v2015
  %v2035 = vsel %vm337, %v2009, %v2017
  %v2036 = vsel %vm337, %v2011, %v2019
  %v2037 = vsel %vm337, %v2013, %v2021
  %v2038 = vsel %vm337, %v1999, %v2007
  %v2039 = vsel %vm337, %v2001, %v2009
  %v2040 = vsel %vm337, %v2003, %v2011
  %v2041 = vsel %vm337, %v2005, %v2013
  %v2042 = vsel %vm337, %v2023, %v1999
  %v2043 = vsel %vm337, %v2025, %v2001
  %v2044 = vsel %vm337, %v2027, %v2003
  %v2045 = vsel %vm337, %v2029, %v2005
  %v2046 = vmul.f32 %v2038, %v348
  %v2047 = vmul.f32 %v2034, %v352
  %v2048 = vmul.f32 %v2030, %v356
  %v2049 = vmul.f32 %v2042, %v360
  %v2050 = vmul.f32 %v2039, %v348
  %v2051 = vmul.f32 %v2035, %v352
  %v2052 = vmul.f32 %v2031, %v356
  %v2053 = vmul.f32 %v2043, %v360
  %v2054 = vmul.f32 %v2040, %v348
  %v2055 = vmul.f32 %v2036, %v352
  %v2056 = vmul.f32 %v2032, %v356
  %v2057 = vmul.f32 %v2044, %v360
  %v2058 = vmul.f32 %v2041, %v348
  %v2059 = vmul.f32 %v2037, %v352
  %v2060 = vmul.f32 %v2033, %v356
  %v2061 = vmul.f32 %v2045, %v360
  %v2062 = vpack.c.bf16 %v1602, %v1598
  %v2063 = vpack.c.bf16 %v1603, %v1599
  %v2064 = vpack.c.bf16 %v1604, %v1600
  %v2065 = vpack.c.bf16 %v1605, %v1601
  %v2066 = vpack.c.bf16 %v1610, %v1606
  %v2067 = vpack.c.bf16 %v1611, %v1607
  %v2068 = vpack.c.bf16 %v1612, %v1608
  %v2069 = vpack.c.bf16 %v1613, %v1609
  %v2070 = vpack.c.bf16 %v1666, %v1662
  %v2071 = vpack.c.bf16 %v1667, %v1663
  %v2072 = vpack.c.bf16 %v1668, %v1664
  %v2073 = vpack.c.bf16 %v1669, %v1665
  %v2074 = vpack.c.bf16 %v1674, %v1670
  %v2075 = vpack.c.bf16 %v1675, %v1671
  %v2076 = vpack.c.bf16 %v1676, %v1672
  %v2077 = vpack.c.bf16 %v1677, %v1673
  %v2078 = vpack.c.bf16 %v1730, %v1726
  %v2079 = vpack.c.bf16 %v1731, %v1727
  %v2080 = vpack.c.bf16 %v1732, %v1728
  %v2081 = vpack.c.bf16 %v1733, %v1729
  %v2082 = vpack.c.bf16 %v1738, %v1734
  %v2083 = vpack.c.bf16 %v1739, %v1735
  %v2084 = vpack.c.bf16 %v1740, %v1736
  %v2085 = vpack.c.bf16 %v1741, %v1737
  %v2086 = vpack.c.bf16 %v1794, %v1790
  %v2087 = vpack.c.bf16 %v1795, %v1791
  %v2088 = vpack.c.bf16 %v1796, %v1792
  %v2089 = vpack.c.bf16 %v1797, %v1793
  %v2090 = vpack.c.bf16 %v1802, %v1798
  %v2091 = vpack.c.bf16 %v1803, %v1799
  %v2092 = vpack.c.bf16 %v1804, %v1800
  %v2093 = vpack.c.bf16 %v1805, %v1801
  %v2094 = vpack.c.bf16 %v657, %v653
  %v2095 = vpack.c.bf16 %v658, %v654
  %v2096 = vpack.c.bf16 %v659, %v655
  %v2097 = vpack.c.bf16 %v660, %v656
  %v2098 = vpack.c.bf16 %v665, %v661
  %v2099 = vpack.c.bf16 %v666, %v662
  %v2100 = vpack.c.bf16 %v667, %v663
  %v2101 = vpack.c.bf16 %v668, %v664
  %v2102 = vpack.c.bf16 %v1858, %v1854
  %v2103 = vpack.c.bf16 %v1859, %v1855
  %v2104 = vpack.c.bf16 %v1860, %v1856
  %v2105 = vpack.c.bf16 %v1861, %v1857
  %v2106 = vpack.c.bf16 %v1866, %v1862
  %v2107 = vpack.c.bf16 %v1867, %v1863
  %v2108 = vpack.c.bf16 %v1868, %v1864
  %v2109 = vpack.c.bf16 %v1869, %v1865
  %v2110 = vpack.c.bf16 %v1922, %v1918
  %v2111 = vpack.c.bf16 %v1923, %v1919
  %v2112 = vpack.c.bf16 %v1924, %v1920
  %v2113 = vpack.c.bf16 %v1925, %v1921
  %v2114 = vpack.c.bf16 %v1930, %v1926
  %v2115 = vpack.c.bf16 %v1931, %v1927
  %v2116 = vpack.c.bf16 %v1932, %v1928
  %v2117 = vpack.c.bf16 %v1933, %v1929
  %v2118 = vpack.c.bf16 %v1986, %v1982
  %v2119 = vpack.c.bf16 %v1987, %v1983
  %v2120 = vpack.c.bf16 %v1988, %v1984
  %v2121 = vpack.c.bf16 %v1989, %v1985
  %v2122 = vpack.c.bf16 %v1994, %v1990
  %v2123 = vpack.c.bf16 %v1995, %v1991
  %v2124 = vpack.c.bf16 %v1996, %v1992
  %v2125 = vpack.c.bf16 %v1997, %v1993
  %v2126 = vpack.c.bf16 %v2050, %v2046
  %v2127 = vpack.c.bf16 %v2051, %v2047
  %v2128 = vpack.c.bf16 %v2052, %v2048
  %v2129 = vpack.c.bf16 %v2053, %v2049
  %v2130 = vpack.c.bf16 %v2058, %v2054
  %v2131 = vpack.c.bf16 %v2059, %v2055
  %v2132 = vpack.c.bf16 %v2060, %v2056
  %v2133 = vpack.c.bf16 %v2061, %v2057
  %v2134 = vld [vmem:[%s6] sm:$0xff]
  %v2135 = vld [vmem:[%s6 + $0x8] sm:$0xf]
  %v2136 = vld [vmem:[%s6 + $0xc] sm:$0xff]
  %v2137 = vld [vmem:[%s6 + $0x14] sm:$0xf]
  %v2138 = vld [vmem:[%s6 + $0x18] sm:$0xff]
  %v2139 = vld [vmem:[%s6 + $0x20] sm:$0xf]
  %v2140 = vld [vmem:[%s6 + $0x24] sm:$0xff]
  %v2141 = vld [vmem:[%s6 + $0x2c] sm:$0xf]
  %v2142 = vld [vmem:[%s7] sm:$0xff]
  %v2143 = vld [vmem:[%s7 + $0x8] sm:$0xff]
  %v2144 = vld [vmem:[%s7 + $0x10] sm:$0xff]
  %v2145 = vld [vmem:[%s7 + $0x18] sm:$0xff]
  %2147 = vset.pattern.permute.xlu0 0
  %2148 = vperm.xlu0 %2147, %v2142
  %v2149 = vpop.permute.xlu0 %2148
  %2152 = vset.pattern.permute.xlu0 0
  %2153 = vperm.xlu0 %2152, %v2143
  %v2154 = vpop.permute.xlu0 %2153
  %2157 = vset.pattern.permute.xlu0 0
  %2158 = vperm.xlu0 %2157, %v2144
  %v2159 = vpop.permute.xlu0 %2158
  %2162 = vset.pattern.permute.xlu0 0
  %2163 = vperm.xlu0 %2162, %v2145
  %v2164 = vpop.permute.xlu0 %2163
  %v2174 = vunpack.c.l.b16 %v2134
  %v2175 = vunpack.c.h.b16 %v2134
  %v2176 = vunpack.c.l.b16 %v2135
  %v2177 = vunpack.c.l.b16 %v2136
  %v2178 = vunpack.c.h.b16 %v2136
  %v2179 = vunpack.c.l.b16 %v2137
  %v2180 = vunpack.c.l.b16 %v2138
  %v2181 = vunpack.c.h.b16 %v2138
  %v2182 = vunpack.c.l.b16 %v2139
  %v2183 = vunpack.c.l.b16 %v2140
  %v2184 = vunpack.c.h.b16 %v2140
  %v2185 = vunpack.c.l.b16 %v2141
  %v2186 = vpack.c.b16 %v2177, %v2174
  %v2187 = vpack.c.b16 %v2178, %v2175
  %v2188 = vpack.c.b16 %v2179, %v2176
  %v2189 = vpack.c.b16 %v2183, %v2180
  %v2190 = vpack.c.b16 %v2184, %v2181
  %v2191 = vpack.c.b16 %v2185, %v2182
  %v2197 = vsel %vm1315, %v2188, 0
  %v2200 = vsel %vm1315, %v2191, 0
  %2202 = vmatprep.subr.bf16.mxu0 %v2063
  %2203 = vmatpush1.bf16.msra.mxu0 %v2062
  %2204 = vmatprep.subr.bf16.mxu0 %v2067
  %2205 = vmatpush1.bf16.msra.mxu0 %v2066
  %2206 = vmatprep.subr.bf16.mxu0 %v2071
  %2207 = vmatpush1.bf16.msra.mxu0 %v2070
  %2208 = vmatprep.subr.bf16.mxu0 %v2075
  %2209 = vmatpush1.bf16.msra.mxu0 %v2074
  %2210 = vmatprep.subr.bf16.mxu0 %v2079
  %2211 = vmatpush1.bf16.msra.mxu0 %v2078
  %2212 = vmatprep.subr.bf16.mxu0 %v2083
  %2213 = vmatpush1.bf16.msra.mxu0 %v2082
  %2214 = vmatprep.subr.bf16.mxu0 %v2087
  %2215 = vmatpush1.bf16.msra.mxu0 %v2086
  %2216 = vmatprep.subr.bf16.mxu0 %v2091
  %2217 = vmatpush1.bf16.msra.mxu0 %v2090
  %2218 = vmatprep.subr.bf16.mxu0 %v2095
  %2219 = vmatpush1.bf16.msra.mxu0 %v2094
  %2220 = vmatprep.subr.bf16.mxu0 %v2099
  %2221 = vmatpush1.bf16.msra.mxu0 %v2098
  %2222 = vmatprep.subr.bf16.mxu0 %v2103
  %2223 = vmatpush1.bf16.msra.mxu0 %v2102
  %2224 = vmatprep.subr.bf16.mxu0 %v2107
  %2225 = vmatpush1.bf16.msra.mxu0 %v2106
  %2226 = vmatprep.subr.bf16.mxu0 %v2111
  %2227 = vmatpush1.bf16.msra.mxu0 %v2110
  %2228 = vmatprep.subr.bf16.mxu0 %v2115
  %2229 = vmatpush1.bf16.msra.mxu0 %v2114
  %2230 = vmatprep.subr.bf16.mxu0 %v2119
  %2231 = vmatpush1.bf16.msra.mxu0 %v2118
  %2232 = vmatprep.subr.bf16.mxu0 %v2123
  %2233 = vmatpush1.bf16.msra.mxu0 %v2122
  %2234 = vmatprep.mubr.bf16.mxu0 %v2187
  %2235 = vmatmul.mubr.bf16.gmra.mrb[0].mxu0 %v2186
  %v2236 = vpop.f32.mrb[0].mxu0
  %v2237 = vadd.f32 %v2149, %v2236
  %v2238 = vpop.f32.mrb[0].mxu0
  %v2239 = vadd.f32 %v2149, %v2238
  %v2240 = vpop.f32.mrb[0].mxu0
  %v2241 = vadd.f32 %v2154, %v2240
  %v2242 = vpop.f32.mrb[0].mxu0
  %v2243 = vadd.f32 %v2154, %v2242
  %2244 = vmatprep.mubr.bf16.mxu0 %v2190
  %2245 = vmatmul.mubr.bf16.gmra.mrb[0].mxu0 %v2189
  %v2246 = vpop.f32.mrb[0].mxu0
  %v2247 = vadd.f32 %v2159, %v2246
  %v2248 = vpop.f32.mrb[0].mxu0
  %v2249 = vadd.f32 %v2159, %v2248
  %v2250 = vpop.f32.mrb[0].mxu0
  %v2251 = vadd.f32 %v2164, %v2250
  %v2252 = vpop.f32.mrb[0].mxu0
  %v2253 = vadd.f32 %v2164, %v2252
  %2254 = vdwg.mxu0
  %2255 = vmatprep.subr.bf16.mxu0 %v2127
  %2256 = vmatpush1.bf16.msra.mxu0 %v2126
  %2257 = vmatprep.subr.bf16.mxu0 %v2131
  %2258 = vmatpush1.bf16.msra.mxu0 %v2130
  %2259 = vmatprep.subr.bf16.mxu0 0
  %2260 = vmatpush1.bf16.msra.mxu0 0
  %2261 = vmatprep.subr.bf16.mxu0 0
  %2262 = vmatpush1.bf16.msra.mxu0 0
  %2263 = vmatprep.subr.bf16.mxu0 0
  %2264 = vmatpush1.bf16.msra.mxu0 0
  %2265 = vmatprep.subr.bf16.mxu0 0
  %2266 = vmatpush1.bf16.msra.mxu0 0
  %2267 = vmatprep.subr.bf16.mxu0 0
  %2268 = vmatpush1.bf16.msra.mxu0 0
  %2269 = vmatprep.subr.bf16.mxu0 0
  %2270 = vmatpush1.bf16.msra.mxu0 0
  %2271 = vmatprep.subr.bf16.mxu0 0
  %2272 = vmatpush1.bf16.msra.mxu0 0
  %2273 = vmatprep.subr.bf16.mxu0 0
  %2274 = vmatpush1.bf16.msra.mxu0 0
  %2275 = vmatprep.subr.bf16.mxu0 0
  %2276 = vmatpush1.bf16.msra.mxu0 0
  %2277 = vmatprep.subr.bf16.mxu0 0
  %2278 = vmatpush1.bf16.msra.mxu0 0
  %2279 = vmatprep.subr.bf16.mxu0 0
  %2280 = vmatpush1.bf16.msra.mxu0 0
  %2281 = vmatprep.subr.bf16.mxu0 0
  %2282 = vmatpush1.bf16.msra.mxu0 0
  %2283 = vmatprep.subr.bf16.mxu0 0
  %2284 = vmatpush1.bf16.msra.mxu0 0
  %2285 = vmatprep.subr.bf16.mxu0 0
  %2286 = vmatpush1.bf16.msra.mxu0 0
  %2287 = vmatprep.mubr.bf16.mxu0 0
  %2288 = vmatmul.mubr.bf16.gmra.mrb[0].mxu0 %v2197
  %v2289 = vpop.f32.mrb[0].mxu0
  %v2290 = vadd.f32 %v2237, %v2289
  %v2291 = vpop.f32.mrb[0].mxu0
  %v2292 = vadd.f32 %v2239, %v2291
  %v2293 = vpop.f32.mrb[0].mxu0
  %v2294 = vadd.f32 %v2241, %v2293
  %v2295 = vpop.f32.mrb[0].mxu0
  %v2296 = vadd.f32 %v2243, %v2295
  %2297 = vmatprep.mubr.bf16.mxu0 0
  %2298 = vmatmul.mubr.bf16.gmra.mrb[0].mxu0 %v2200
  %v2299 = vpop.f32.mrb[0].mxu0
  %v2300 = vadd.f32 %v2247, %v2299
  %v2301 = vpop.f32.mrb[0].mxu0
  %v2302 = vadd.f32 %v2249, %v2301
  %v2303 = vpop.f32.mrb[0].mxu0
  %v2304 = vadd.f32 %v2251, %v2303
  %v2305 = vpop.f32.mrb[0].mxu0
  %v2306 = vadd.f32 %v2253, %v2305
  %2307 = vdwg.mxu0
  %2308 = vmatprep.subr.bf16.mxu0 %v2065
  %2309 = vmatpush1.bf16.msra.mxu0 %v2064
  %2310 = vmatprep.subr.bf16.mxu0 %v2069
  %2311 = vmatpush1.bf16.msra.mxu0 %v2068
  %2312 = vmatprep.subr.bf16.mxu0 %v2073
  %2313 = vmatpush1.bf16.msra.mxu0 %v2072
  %2314 = vmatprep.subr.bf16.mxu0 %v2077
  %2315 = vmatpush1.bf16.msra.mxu0 %v2076
  %2316 = vmatprep.subr.bf16.mxu0 %v2081
  %2317 = vmatpush1.bf16.msra.mxu0 %v2080
  %2318 = vmatprep.subr.bf16.mxu0 %v2085
  %2319 = vmatpush1.bf16.msra.mxu0 %v2084
  %2320 = vmatprep.subr.bf16.mxu0 %v2089
  %2321 = vmatpush1.bf16.msra.mxu0 %v2088
  %2322 = vmatprep.subr.bf16.mxu0 %v2093
  %2323 = vmatpush1.bf16.msra.mxu0 %v2092
  %2324 = vmatprep.subr.bf16.mxu0 %v2097
  %2325 = vmatpush1.bf16.msra.mxu0 %v2096
  %2326 = vmatprep.subr.bf16.mxu0 %v2101
  %2327 = vmatpush1.bf16.msra.mxu0 %v2100
  %2328 = vmatprep.subr.bf16.mxu0 %v2105
  %2329 = vmatpush1.bf16.msra.mxu0 %v2104
  %2330 = vmatprep.subr.bf16.mxu0 %v2109
  %2331 = vmatpush1.bf16.msra.mxu0 %v2108
  %2332 = vmatprep.subr.bf16.mxu0 %v2113
  %2333 = vmatpush1.bf16.msra.mxu0 %v2112
  %2334 = vmatprep.subr.bf16.mxu0 %v2117
  %2335 = vmatpush1.bf16.msra.mxu0 %v2116
  %2336 = vmatprep.subr.bf16.mxu0 %v2121
  %2337 = vmatpush1.bf16.msra.mxu0 %v2120
  %2338 = vmatprep.subr.bf16.mxu0 %v2125
  %2339 = vmatpush1.bf16.msra.mxu0 %v2124
  %2340 = vmatprep.mubr.bf16.mxu0 %v2187
  %2341 = vmatmul.mubr.bf16.gmra.mrb[0].mxu0 %v2186
  %v2342 = vpop.f32.mrb[0].mxu0
  %v2343 = vadd.f32 %v2149, %v2342
  %v2344 = vpop.f32.mrb[0].mxu0
  %v2345 = vadd.f32 %v2149, %v2344
  %v2346 = vpop.f32.mrb[0].mxu0
  %v2347 = vadd.f32 %v2154, %v2346
  %v2348 = vpop.f32.mrb[0].mxu0
  %v2349 = vadd.f32 %v2154, %v2348
  %2350 = vmatprep.mubr.bf16.mxu0 %v2190
  %2351 = vmatmul.mubr.bf16.gmra.mrb[0].mxu0 %v2189
  %v2352 = vpop.f32.mrb[0].mxu0
  %v2353 = vadd.f32 %v2159, %v2352
  %v2354 = vpop.f32.mrb[0].mxu0
  %v2355 = vadd.f32 %v2159, %v2354
  %v2356 = vpop.f32.mrb[0].mxu0
  %v2357 = vadd.f32 %v2164, %v2356
  %v2358 = vpop.f32.mrb[0].mxu0
  %v2359 = vadd.f32 %v2164, %v2358
  %2360 = vdwg.mxu0
  %2361 = vmatprep.subr.bf16.mxu0 %v2129
  %2362 = vmatpush1.bf16.msra.mxu0 %v2128
  %2363 = vmatprep.subr.bf16.mxu0 %v2133
  %2364 = vmatpush1.bf16.msra.mxu0 %v2132
  %2365 = vmatprep.subr.bf16.mxu0 0
  %2366 = vmatpush1.bf16.msra.mxu0 0
  %2367 = vmatprep.subr.bf16.mxu0 0
  %2368 = vmatpush1.bf16.msra.mxu0 0
  %2369 = vmatprep.subr.bf16.mxu0 0
  %2370 = vmatpush1.bf16.msra.mxu0 0
  %2371 = vmatprep.subr.bf16.mxu0 0
  %2372 = vmatpush1.bf16.msra.mxu0 0
  %2373 = vmatprep.subr.bf16.mxu0 0
  %2374 = vmatpush1.bf16.msra.mxu0 0
  %2375 = vmatprep.subr.bf16.mxu0 0
  %2376 = vmatpush1.bf16.msra.mxu0 0
  %2377 = vmatprep.subr.bf16.mxu0 0
  %2378 = vmatpush1.bf16.msra.mxu0 0
  %2379 = vmatprep.subr.bf16.mxu0 0
  %2380 = vmatpush1.bf16.msra.mxu0 0
  %2381 = vmatprep.subr.bf16.mxu0 0
  %2382 = vmatpush1.bf16.msra.mxu0 0
  %2383 = vmatprep.subr.bf16.mxu0 0
  %2384 = vmatpush1.bf16.msra.mxu0 0
  %2385 = vmatprep.subr.bf16.mxu0 0
  %2386 = vmatpush1.bf16.msra.mxu0 0
  %2387 = vmatprep.subr.bf16.mxu0 0
  %2388 = vmatpush1.bf16.msra.mxu0 0
  %2389 = vmatprep.subr.bf16.mxu0 0
  %2390 = vmatpush1.bf16.msra.mxu0 0
  %2391 = vmatprep.subr.bf16.mxu0 0
  %2392 = vmatpush1.bf16.msra.mxu0 0
  %2393 = vmatprep.mubr.bf16.mxu0 0
  %2394 = vmatmul.mubr.bf16.gmra.mrb[0].mxu0 %v2197
  %v2395 = vpop.f32.mrb[0].mxu0
  %v2396 = vadd.f32 %v2343, %v2395
  %v2397 = vpop.f32.mrb[0].mxu0
  %v2398 = vadd.f32 %v2345, %v2397
  %v2399 = vpop.f32.mrb[0].mxu0
  %v2400 = vadd.f32 %v2347, %v2399
  %v2401 = vpop.f32.mrb[0].mxu0
  %v2402 = vadd.f32 %v2349, %v2401
  %2403 = vmatprep.mubr.bf16.mxu0 0
  %2404 = vmatmul.mubr.bf16.gmra.mrb[0].mxu0 %v2200
  %v2405 = vpop.f32.mrb[0].mxu0
  %v2406 = vadd.f32 %v2353, %v2405
  %v2407 = vpop.f32.mrb[0].mxu0
  %v2408 = vadd.f32 %v2355, %v2407
  %v2409 = vpop.f32.mrb[0].mxu0
  %v2410 = vadd.f32 %v2357, %v2409
  %v2411 = vpop.f32.mrb[0].mxu0
  %v2412 = vadd.f32 %v2359, %v2411
  %2413 = vdwg.mxu0
  %v2414 = vmax.f32 %v2290, 0.0
  %v2415 = vmax.f32 %v2292, 0.0
  %v2416 = vmax.f32 %v2396, 0.0
  %v2417 = vmax.f32 %v2398, 0.0
  %v2418 = vmax.f32 %v2294, 0.0
  %v2419 = vmax.f32 %v2296, 0.0
  %v2420 = vmax.f32 %v2400, 0.0
  %v2421 = vmax.f32 %v2402, 0.0
  %v2422 = vmax.f32 %v2300, 0.0
  %v2423 = vmax.f32 %v2302, 0.0
  %v2424 = vmax.f32 %v2406, 0.0
  %v2425 = vmax.f32 %v2408, 0.0
  %v2426 = vmax.f32 %v2304, 0.0
  %v2427 = vmax.f32 %v2306, 0.0
  %v2428 = vmax.f32 %v2410, 0.0
  %v2429 = vmax.f32 %v2412, 0.0
  %2430 = vrot.lane.b32.xlu0 %v1534, 17
  %v2431 = vpop.permute.xlu0 %2430
  %2432 = vrot.lane.b32.xlu0 %v1538, 17
  %v2433 = vpop.permute.xlu0 %2432
  %2434 = vrot.lane.b32.xlu0 %v1542, 17
  %v2435 = vpop.permute.xlu0 %2434
  %2436 = vrot.lane.b32.xlu0 %v1546, 17
  %v2437 = vpop.permute.xlu0 %2436
  %2438 = vrot.lane.b32.xlu0 %v1535, 17
  %v2439 = vpop.permute.xlu0 %2438
  %2440 = vrot.lane.b32.xlu0 %v1539, 17
  %v2441 = vpop.permute.xlu0 %2440
  %2442 = vrot.lane.b32.xlu0 %v1543, 17
  %v2443 = vpop.permute.xlu0 %2442
  %2444 = vrot.lane.b32.xlu0 %v1547, 17
  %v2445 = vpop.permute.xlu0 %2444
  %2446 = vrot.lane.b32.xlu0 %v1536, 17
  %v2447 = vpop.permute.xlu0 %2446
  %2448 = vrot.lane.b32.xlu0 %v1540, 17
  %v2449 = vpop.permute.xlu0 %2448
  %2450 = vrot.lane.b32.xlu0 %v1544, 17
  %v2451 = vpop.permute.xlu0 %2450
  %2452 = vrot.lane.b32.xlu0 %v1548, 17
  %v2453 = vpop.permute.xlu0 %2452
  %2454 = vrot.lane.b32.xlu0 %v1537, 17
  %v2455 = vpop.permute.xlu0 %2454
  %2456 = vrot.lane.b32.xlu0 %v1541, 17
  %v2457 = vpop.permute.xlu0 %2456
  %2458 = vrot.lane.b32.xlu0 %v1545, 17
  %v2459 = vpop.permute.xlu0 %2458
  %2460 = vrot.lane.b32.xlu0 %v1549, 17
  %v2461 = vpop.permute.xlu0 %2460
  %v2462 = vsel %vm58, %v2447, %v2455
  %v2463 = vsel %vm58, %v2449, %v2457
  %v2464 = vsel %vm58, %v2451, %v2459
  %v2465 = vsel %vm58, %v2453, %v2461
  %v2466 = vsel %vm58, %v2439, %v2447
  %v2467 = vsel %vm58, %v2441, %v2449
  %v2468 = vsel %vm58, %v2443, %v2451
  %v2469 = vsel %vm58, %v2445, %v2453
  %v2470 = vsel %vm58, %v2431, %v2439
  %v2471 = vsel %vm58, %v2433, %v2441
  %v2472 = vsel %vm58, %v2435, %v2443
  %v2473 = vsel %vm58, %v2437, %v2445
  %v2474 = vsel %vm58, %v2455, %v2431
  %v2475 = vsel %vm58, %v2457, %v2433
  %v2476 = vsel %vm58, %v2459, %v2435
  %v2477 = vsel %vm58, %v2461, %v2437
  %v2478 = vmul.f32 %v2474, %v68
  %v2479 = vmul.f32 %v2470, %v72
  %v2480 = vmul.f32 %v2466, %v76
  %v2481 = vmul.f32 %v2462, %v80
  %v2482 = vmul.f32 %v2475, %v68
  %v2483 = vmul.f32 %v2471, %v72
  %v2484 = vmul.f32 %v2467, %v76
  %v2485 = vmul.f32 %v2463, %v80
  %v2486 = vmul.f32 %v2476, %v68
  %v2487 = vmul.f32 %v2472, %v72
  %v2488 = vmul.f32 %v2468, %v76
  %v2489 = vmul.f32 %v2464, %v80
  %v2490 = vmul.f32 %v2477, %v68
  %v2491 = vmul.f32 %v2473, %v72
  %v2492 = vmul.f32 %v2469, %v76
  %v2493 = vmul.f32 %v2465, %v80
  %2494 = vrot.lane.b32.xlu0 %v1534, 16
  %v2495 = vpop.permute.xlu0 %2494
  %2496 = vrot.lane.b32.xlu0 %v1538, 16
  %v2497 = vpop.permute.xlu0 %2496
  %2498 = vrot.lane.b32.xlu0 %v1542, 16
  %v2499 = vpop.permute.xlu0 %2498
  %2500 = vrot.lane.b32.xlu0 %v1546, 16
  %v2501 = vpop.permute.xlu0 %2500
  %2502 = vrot.lane.b32.xlu0 %v1535, 16
  %v2503 = vpop.permute.xlu0 %2502
  %2504 = vrot.lane.b32.xlu0 %v1539, 16
  %v2505 = vpop.permute.xlu0 %2504
  %2506 = vrot.lane.b32.xlu0 %v1543, 16
  %v2507 = vpop.permute.xlu0 %2506
  %2508 = vrot.lane.b32.xlu0 %v1547, 16
  %v2509 = vpop.permute.xlu0 %2508
  %2510 = vrot.lane.b32.xlu0 %v1536, 16
  %v2511 = vpop.permute.xlu0 %2510
  %2512 = vrot.lane.b32.xlu0 %v1540, 16
  %v2513 = vpop.permute.xlu0 %2512
  %2514 = vrot.lane.b32.xlu0 %v1544, 16
  %v2515 = vpop.permute.xlu0 %2514
  %2516 = vrot.lane.b32.xlu0 %v1548, 16
  %v2517 = vpop.permute.xlu0 %2516
  %2518 = vrot.lane.b32.xlu0 %v1537, 16
  %v2519 = vpop.permute.xlu0 %2518
  %2520 = vrot.lane.b32.xlu0 %v1541, 16
  %v2521 = vpop.permute.xlu0 %2520
  %2522 = vrot.lane.b32.xlu0 %v1545, 16
  %v2523 = vpop.permute.xlu0 %2522
  %2524 = vrot.lane.b32.xlu0 %v1549, 16
  %v2525 = vpop.permute.xlu0 %2524
  %v2526 = vsel %vm97, %v2511, %v2519
  %v2527 = vsel %vm97, %v2513, %v2521
  %v2528 = vsel %vm97, %v2515, %v2523
  %v2529 = vsel %vm97, %v2517, %v2525
  %v2530 = vsel %vm97, %v2503, %v2511
  %v2531 = vsel %vm97, %v2505, %v2513
  %v2532 = vsel %vm97, %v2507, %v2515
  %v2533 = vsel %vm97, %v2509, %v2517
  %v2534 = vsel %vm97, %v2495, %v2503
  %v2535 = vsel %vm97, %v2497, %v2505
  %v2536 = vsel %vm97, %v2499, %v2507
  %v2537 = vsel %vm97, %v2501, %v2509
  %v2538 = vsel %vm97, %v2519, %v2495
  %v2539 = vsel %vm97, %v2521, %v2497
  %v2540 = vsel %vm97, %v2523, %v2499
  %v2541 = vsel %vm97, %v2525, %v2501
  %v2542 = vmul.f32 %v2538, %v108
  %v2543 = vmul.f32 %v2534, %v112
  %v2544 = vmul.f32 %v2530, %v116
  %v2545 = vmul.f32 %v2526, %v120
  %v2546 = vmul.f32 %v2539, %v108
  %v2547 = vmul.f32 %v2535, %v112
  %v2548 = vmul.f32 %v2531, %v116
  %v2549 = vmul.f32 %v2527, %v120
  %v2550 = vmul.f32 %v2540, %v108
  %v2551 = vmul.f32 %v2536, %v112
  %v2552 = vmul.f32 %v2532, %v116
  %v2553 = vmul.f32 %v2528, %v120
  %v2554 = vmul.f32 %v2541, %v108
  %v2555 = vmul.f32 %v2537, %v112
  %v2556 = vmul.f32 %v2533, %v116
  %v2557 = vmul.f32 %v2529, %v120
  %2558 = vrot.lane.b32.xlu0 %v1534, 15
  %v2559 = vpop.permute.xlu0 %2558
  %2560 = vrot.lane.b32.xlu0 %v1538, 15
  %v2561 = vpop.permute.xlu0 %2560
  %2562 = vrot.lane.b32.xlu0 %v1542, 15
  %v2563 = vpop.permute.xlu0 %2562
  %2564 = vrot.lane.b32.xlu0 %v1546, 15
  %v2565 = vpop.permute.xlu0 %2564
  %2566 = vrot.lane.b32.xlu0 %v1535, 15
  %v2567 = vpop.permute.xlu0 %2566
  %2568 = vrot.lane.b32.xlu0 %v1539, 15
  %v2569 = vpop.permute.xlu0 %2568
  %2570 = vrot.lane.b32.xlu0 %v1543, 15
  %v2571 = vpop.permute.xlu0 %2570
  %2572 = vrot.lane.b32.xlu0 %v1547, 15
  %v2573 = vpop.permute.xlu0 %2572
  %2574 = vrot.lane.b32.xlu0 %v1536, 15
  %v2575 = vpop.permute.xlu0 %2574
  %2576 = vrot.lane.b32.xlu0 %v1540, 15
  %v2577 = vpop.permute.xlu0 %2576
  %2578 = vrot.lane.b32.xlu0 %v1544, 15
  %v2579 = vpop.permute.xlu0 %2578
  %2580 = vrot.lane.b32.xlu0 %v1548, 15
  %v2581 = vpop.permute.xlu0 %2580
  %2582 = vrot.lane.b32.xlu0 %v1537, 15
  %v2583 = vpop.permute.xlu0 %2582
  %2584 = vrot.lane.b32.xlu0 %v1541, 15
  %v2585 = vpop.permute.xlu0 %2584
  %2586 = vrot.lane.b32.xlu0 %v1545, 15
  %v2587 = vpop.permute.xlu0 %2586
  %2588 = vrot.lane.b32.xlu0 %v1549, 15
  %v2589 = vpop.permute.xlu0 %2588
  %v2590 = vsel %vm137, %v2575, %v2583
  %v2591 = vsel %vm137, %v2577, %v2585
  %v2592 = vsel %vm137, %v2579, %v2587
  %v2593 = vsel %vm137, %v2581, %v2589
  %v2594 = vsel %vm137, %v2567, %v2575
  %v2595 = vsel %vm137, %v2569, %v2577
  %v2596 = vsel %vm137, %v2571, %v2579
  %v2597 = vsel %vm137, %v2573, %v2581
  %v2598 = vsel %vm137, %v2559, %v2567
  %v2599 = vsel %vm137, %v2561, %v2569
  %v2600 = vsel %vm137, %v2563, %v2571
  %v2601 = vsel %vm137, %v2565, %v2573
  %v2602 = vsel %vm137, %v2583, %v2559
  %v2603 = vsel %vm137, %v2585, %v2561
  %v2604 = vsel %vm137, %v2587, %v2563
  %v2605 = vsel %vm137, %v2589, %v2565
  %v2606 = vmul.f32 %v2602, %v148
  %v2607 = vmul.f32 %v2598, %v152
  %v2608 = vmul.f32 %v2594, %v156
  %v2609 = vmul.f32 %v2590, %v160
  %v2610 = vmul.f32 %v2603, %v148
  %v2611 = vmul.f32 %v2599, %v152
  %v2612 = vmul.f32 %v2595, %v156
  %v2613 = vmul.f32 %v2591, %v160
  %v2614 = vmul.f32 %v2604, %v148
  %v2615 = vmul.f32 %v2600, %v152
  %v2616 = vmul.f32 %v2596, %v156
  %v2617 = vmul.f32 %v2592, %v160
  %v2618 = vmul.f32 %v2605, %v148
  %v2619 = vmul.f32 %v2601, %v152
  %v2620 = vmul.f32 %v2597, %v156
  %v2621 = vmul.f32 %v2593, %v160
  %2622 = vrot.lane.b32.xlu0 %v1534, 1
  %v2623 = vpop.permute.xlu0 %2622
  %2624 = vrot.lane.b32.xlu0 %v1538, 1
  %v2625 = vpop.permute.xlu0 %2624
  %2626 = vrot.lane.b32.xlu0 %v1542, 1
  %v2627 = vpop.permute.xlu0 %2626
  %2628 = vrot.lane.b32.xlu0 %v1546, 1
  %v2629 = vpop.permute.xlu0 %2628
  %2630 = vrot.lane.b32.xlu0 %v1535, 1
  %v2631 = vpop.permute.xlu0 %2630
  %2632 = vrot.lane.b32.xlu0 %v1539, 1
  %v2633 = vpop.permute.xlu0 %2632
  %2634 = vrot.lane.b32.xlu0 %v1543, 1
  %v2635 = vpop.permute.xlu0 %2634
  %2636 = vrot.lane.b32.xlu0 %v1547, 1
  %v2637 = vpop.permute.xlu0 %2636
  %2638 = vrot.lane.b32.xlu0 %v1536, 1
  %v2639 = vpop.permute.xlu0 %2638
  %2640 = vrot.lane.b32.xlu0 %v1540, 1
  %v2641 = vpop.permute.xlu0 %2640
  %2642 = vrot.lane.b32.xlu0 %v1544, 1
  %v2643 = vpop.permute.xlu0 %2642
  %2644 = vrot.lane.b32.xlu0 %v1548, 1
  %v2645 = vpop.permute.xlu0 %2644
  %2646 = vrot.lane.b32.xlu0 %v1537, 1
  %v2647 = vpop.permute.xlu0 %2646
  %2648 = vrot.lane.b32.xlu0 %v1541, 1
  %v2649 = vpop.permute.xlu0 %2648
  %2650 = vrot.lane.b32.xlu0 %v1545, 1
  %v2651 = vpop.permute.xlu0 %2650
  %2652 = vrot.lane.b32.xlu0 %v1549, 1
  %v2653 = vpop.permute.xlu0 %2652
  %v2654 = vsel %vm177, %v2639, %v2647
  %v2655 = vsel %vm177, %v2641, %v2649
  %v2656 = vsel %vm177, %v2643, %v2651
  %v2657 = vsel %vm177, %v2645, %v2653
  %v2658 = vsel %vm177, %v2631, %v2639
  %v2659 = vsel %vm177, %v2633, %v2641
  %v2660 = vsel %vm177, %v2635, %v2643
  %v2661 = vsel %vm177, %v2637, %v2645
  %v2662 = vsel %vm177, %v2623, %v2631
  %v2663 = vsel %vm177, %v2625, %v2633
  %v2664 = vsel %vm177, %v2627, %v2635
  %v2665 = vsel %vm177, %v2629, %v2637
  %v2666 = vsel %vm177, %v2647, %v2623
  %v2667 = vsel %vm177, %v2649, %v2625
  %v2668 = vsel %vm177, %v2651, %v2627
  %v2669 = vsel %vm177, %v2653, %v2629
  %v2670 = vmul.f32 %v2666, %v188
  %v2671 = vmul.f32 %v2662, %v192
  %v2672 = vmul.f32 %v2658, %v196
  %v2673 = vmul.f32 %v2654, %v200
  %v2674 = vmul.f32 %v2667, %v188
  %v2675 = vmul.f32 %v2663, %v192
  %v2676 = vmul.f32 %v2659, %v196
  %v2677 = vmul.f32 %v2655, %v200
  %v2678 = vmul.f32 %v2668, %v188
  %v2679 = vmul.f32 %v2664, %v192
  %v2680 = vmul.f32 %v2660, %v196
  %v2681 = vmul.f32 %v2656, %v200
  %v2682 = vmul.f32 %v2669, %v188
  %v2683 = vmul.f32 %v2665, %v192
  %v2684 = vmul.f32 %v2661, %v196
  %v2685 = vmul.f32 %v2657, %v200
  %2686 = vrot.lane.b32.xlu0 %v1534, 127
  %v2687 = vpop.permute.xlu0 %2686
  %2688 = vrot.lane.b32.xlu0 %v1538, 127
  %v2689 = vpop.permute.xlu0 %2688
  %2690 = vrot.lane.b32.xlu0 %v1542, 127
  %v2691 = vpop.permute.xlu0 %2690
  %2692 = vrot.lane.b32.xlu0 %v1546, 127
  %v2693 = vpop.permute.xlu0 %2692
  %2694 = vrot.lane.b32.xlu0 %v1535, 127
  %v2695 = vpop.permute.xlu0 %2694
  %2696 = vrot.lane.b32.xlu0 %v1539, 127
  %v2697 = vpop.permute.xlu0 %2696
  %2698 = vrot.lane.b32.xlu0 %v1543, 127
  %v2699 = vpop.permute.xlu0 %2698
  %2700 = vrot.lane.b32.xlu0 %v1547, 127
  %v2701 = vpop.permute.xlu0 %2700
  %2702 = vrot.lane.b32.xlu0 %v1536, 127
  %v2703 = vpop.permute.xlu0 %2702
  %2704 = vrot.lane.b32.xlu0 %v1540, 127
  %v2705 = vpop.permute.xlu0 %2704
  %2706 = vrot.lane.b32.xlu0 %v1544, 127
  %v2707 = vpop.permute.xlu0 %2706
  %2708 = vrot.lane.b32.xlu0 %v1548, 127
  %v2709 = vpop.permute.xlu0 %2708
  %2710 = vrot.lane.b32.xlu0 %v1537, 127
  %v2711 = vpop.permute.xlu0 %2710
  %2712 = vrot.lane.b32.xlu0 %v1541, 127
  %v2713 = vpop.permute.xlu0 %2712
  %2714 = vrot.lane.b32.xlu0 %v1545, 127
  %v2715 = vpop.permute.xlu0 %2714
  %2716 = vrot.lane.b32.xlu0 %v1549, 127
  %v2717 = vpop.permute.xlu0 %2716
  %v2718 = vsel %vm217, %v2703, %v2711
  %v2719 = vsel %vm217, %v2705, %v2713
  %v2720 = vsel %vm217, %v2707, %v2715
  %v2721 = vsel %vm217, %v2709, %v2717
  %v2722 = vsel %vm217, %v2695, %v2703
  %v2723 = vsel %vm217, %v2697, %v2705
  %v2724 = vsel %vm217, %v2699, %v2707
  %v2725 = vsel %vm217, %v2701, %v2709
  %v2726 = vsel %vm217, %v2687, %v2695
  %v2727 = vsel %vm217, %v2689, %v2697
  %v2728 = vsel %vm217, %v2691, %v2699
  %v2729 = vsel %vm217, %v2693, %v2701
  %v2730 = vsel %vm217, %v2711, %v2687
  %v2731 = vsel %vm217, %v2713, %v2689
  %v2732 = vsel %vm217, %v2715, %v2691
  %v2733 = vsel %vm217, %v2717, %v2693
  %v2734 = vmul.f32 %v2726, %v228
  %v2735 = vmul.f32 %v2722, %v232
  %v2736 = vmul.f32 %v2718, %v236
  %v2737 = vmul.f32 %v2730, %v240
  %v2738 = vmul.f32 %v2727, %v228
  %v2739 = vmul.f32 %v2723, %v232
  %v2740 = vmul.f32 %v2719, %v236
  %v2741 = vmul.f32 %v2731, %v240
  %v2742 = vmul.f32 %v2728, %v228
  %v2743 = vmul.f32 %v2724, %v232
  %v2744 = vmul.f32 %v2720, %v236
  %v2745 = vmul.f32 %v2732, %v240
  %v2746 = vmul.f32 %v2729, %v228
  %v2747 = vmul.f32 %v2725, %v232
  %v2748 = vmul.f32 %v2721, %v236
  %v2749 = vmul.f32 %v2733, %v240
  %2750 = vrot.lane.b32.xlu0 %v1534, 113
  %v2751 = vpop.permute.xlu0 %2750
  %2752 = vrot.lane.b32.xlu0 %v1538, 113
  %v2753 = vpop.permute.xlu0 %2752
  %2754 = vrot.lane.b32.xlu0 %v1542, 113
  %v2755 = vpop.permute.xlu0 %2754
  %2756 = vrot.lane.b32.xlu0 %v1546, 113
  %v2757 = vpop.permute.xlu0 %2756
  %2758 = vrot.lane.b32.xlu0 %v1535, 113
  %v2759 = vpop.permute.xlu0 %2758
  %2760 = vrot.lane.b32.xlu0 %v1539, 113
  %v2761 = vpop.permute.xlu0 %2760
  %2762 = vrot.lane.b32.xlu0 %v1543, 113
  %v2763 = vpop.permute.xlu0 %2762
  %2764 = vrot.lane.b32.xlu0 %v1547, 113
  %v2765 = vpop.permute.xlu0 %2764
  %2766 = vrot.lane.b32.xlu0 %v1536, 113
  %v2767 = vpop.permute.xlu0 %2766
  %2768 = vrot.lane.b32.xlu0 %v1540, 113
  %v2769 = vpop.permute.xlu0 %2768
  %2770 = vrot.lane.b32.xlu0 %v1544, 113
  %v2771 = vpop.permute.xlu0 %2770
  %2772 = vrot.lane.b32.xlu0 %v1548, 113
  %v2773 = vpop.permute.xlu0 %2772
  %2774 = vrot.lane.b32.xlu0 %v1537, 113
  %v2775 = vpop.permute.xlu0 %2774
  %2776 = vrot.lane.b32.xlu0 %v1541, 113
  %v2777 = vpop.permute.xlu0 %2776
  %2778 = vrot.lane.b32.xlu0 %v1545, 113
  %v2779 = vpop.permute.xlu0 %2778
  %2780 = vrot.lane.b32.xlu0 %v1549, 113
  %v2781 = vpop.permute.xlu0 %2780
  %v2782 = vsel %vm257, %v2767, %v2775
  %v2783 = vsel %vm257, %v2769, %v2777
  %v2784 = vsel %vm257, %v2771, %v2779
  %v2785 = vsel %vm257, %v2773, %v2781
  %v2786 = vsel %vm257, %v2759, %v2767
  %v2787 = vsel %vm257, %v2761, %v2769
  %v2788 = vsel %vm257, %v2763, %v2771
  %v2789 = vsel %vm257, %v2765, %v2773
  %v2790 = vsel %vm257, %v2751, %v2759
  %v2791 = vsel %vm257, %v2753, %v2761
  %v2792 = vsel %vm257, %v2755, %v2763
  %v2793 = vsel %vm257, %v2757, %v2765
  %v2794 = vsel %vm257, %v2775, %v2751
  %v2795 = vsel %vm257, %v2777, %v2753
  %v2796 = vsel %vm257, %v2779, %v2755
  %v2797 = vsel %vm257, %v2781, %v2757
  %v2798 = vmul.f32 %v2790, %v268
  %v2799 = vmul.f32 %v2786, %v272
  %v2800 = vmul.f32 %v2782, %v276
  %v2801 = vmul.f32 %v2794, %v280
  %v2802 = vmul.f32 %v2791, %v268
  %v2803 = vmul.f32 %v2787, %v272
  %v2804 = vmul.f32 %v2783, %v276
  %v2805 = vmul.f32 %v2795, %v280
  %v2806 = vmul.f32 %v2792, %v268
  %v2807 = vmul.f32 %v2788, %v272
  %v2808 = vmul.f32 %v2784, %v276
  %v2809 = vmul.f32 %v2796, %v280
  %v2810 = vmul.f32 %v2793, %v268
  %v2811 = vmul.f32 %v2789, %v272
  %v2812 = vmul.f32 %v2785, %v276
  %v2813 = vmul.f32 %v2797, %v280
  %2814 = vrot.lane.b32.xlu0 %v1534, 112
  %v2815 = vpop.permute.xlu0 %2814
  %2816 = vrot.lane.b32.xlu0 %v1538, 112
  %v2817 = vpop.permute.xlu0 %2816
  %2818 = vrot.lane.b32.xlu0 %v1542, 112
  %v2819 = vpop.permute.xlu0 %2818
  %2820 = vrot.lane.b32.xlu0 %v1546, 112
  %v2821 = vpop.permute.xlu0 %2820
  %2822 = vrot.lane.b32.xlu0 %v1535, 112
  %v2823 = vpop.permute.xlu0 %2822
  %2824 = vrot.lane.b32.xlu0 %v1539, 112
  %v2825 = vpop.permute.xlu0 %2824
  %2826 = vrot.lane.b32.xlu0 %v1543, 112
  %v2827 = vpop.permute.xlu0 %2826
  %2828 = vrot.lane.b32.xlu0 %v1547, 112
  %v2829 = vpop.permute.xlu0 %2828
  %2830 = vrot.lane.b32.xlu0 %v1536, 112
  %v2831 = vpop.permute.xlu0 %2830
  %2832 = vrot.lane.b32.xlu0 %v1540, 112
  %v2833 = vpop.permute.xlu0 %2832
  %2834 = vrot.lane.b32.xlu0 %v1544, 112
  %v2835 = vpop.permute.xlu0 %2834
  %2836 = vrot.lane.b32.xlu0 %v1548, 112
  %v2837 = vpop.permute.xlu0 %2836
  %2838 = vrot.lane.b32.xlu0 %v1537, 112
  %v2839 = vpop.permute.xlu0 %2838
  %2840 = vrot.lane.b32.xlu0 %v1541, 112
  %v2841 = vpop.permute.xlu0 %2840
  %2842 = vrot.lane.b32.xlu0 %v1545, 112
  %v2843 = vpop.permute.xlu0 %2842
  %2844 = vrot.lane.b32.xlu0 %v1549, 112
  %v2845 = vpop.permute.xlu0 %2844
  %v2846 = vsel %vm297, %v2831, %v2839
  %v2847 = vsel %vm297, %v2833, %v2841
  %v2848 = vsel %vm297, %v2835, %v2843
  %v2849 = vsel %vm297, %v2837, %v2845
  %v2850 = vsel %vm297, %v2823, %v2831
  %v2851 = vsel %vm297, %v2825, %v2833
  %v2852 = vsel %vm297, %v2827, %v2835
  %v2853 = vsel %vm297, %v2829, %v2837
  %v2854 = vsel %vm297, %v2815, %v2823
  %v2855 = vsel %vm297, %v2817, %v2825
  %v2856 = vsel %vm297, %v2819, %v2827
  %v2857 = vsel %vm297, %v2821, %v2829
  %v2858 = vsel %vm297, %v2839, %v2815
  %v2859 = vsel %vm297, %v2841, %v2817
  %v2860 = vsel %vm297, %v2843, %v2819
  %v2861 = vsel %vm297, %v2845, %v2821
  %v2862 = vmul.f32 %v2854, %v308
  %v2863 = vmul.f32 %v2850, %v312
  %v2864 = vmul.f32 %v2846, %v316
  %v2865 = vmul.f32 %v2858, %v320
  %v2866 = vmul.f32 %v2855, %v308
  %v2867 = vmul.f32 %v2851, %v312
  %v2868 = vmul.f32 %v2847, %v316
  %v2869 = vmul.f32 %v2859, %v320
  %v2870 = vmul.f32 %v2856, %v308
  %v2871 = vmul.f32 %v2852, %v312
  %v2872 = vmul.f32 %v2848, %v316
  %v2873 = vmul.f32 %v2860, %v320
  %v2874 = vmul.f32 %v2857, %v308
  %v2875 = vmul.f32 %v2853, %v312
  %v2876 = vmul.f32 %v2849, %v316
  %v2877 = vmul.f32 %v2861, %v320
  %2878 = vrot.lane.b32.xlu0 %v1534, 111
  %v2879 = vpop.permute.xlu0 %2878
  %2880 = vrot.lane.b32.xlu0 %v1538, 111
  %v2881 = vpop.permute.xlu0 %2880
  %2882 = vrot.lane.b32.xlu0 %v1542, 111
  %v2883 = vpop.permute.xlu0 %2882
  %2884 = vrot.lane.b32.xlu0 %v1546, 111
  %v2885 = vpop.permute.xlu0 %2884
  %2886 = vrot.lane.b32.xlu0 %v1535, 111
  %v2887 = vpop.permute.xlu0 %2886
  %2888 = vrot.lane.b32.xlu0 %v1539, 111
  %v2889 = vpop.permute.xlu0 %2888
  %2890 = vrot.lane.b32.xlu0 %v1543, 111
  %v2891 = vpop.permute.xlu0 %2890
  %2892 = vrot.lane.b32.xlu0 %v1547, 111
  %v2893 = vpop.permute.xlu0 %2892
  %2894 = vrot.lane.b32.xlu0 %v1536, 111
  %v2895 = vpop.permute.xlu0 %2894
  %2896 = vrot.lane.b32.xlu0 %v1540, 111
  %v2897 = vpop.permute.xlu0 %2896
  %2898 = vrot.lane.b32.xlu0 %v1544, 111
  %v2899 = vpop.permute.xlu0 %2898
  %2900 = vrot.lane.b32.xlu0 %v1548, 111
  %v2901 = vpop.permute.xlu0 %2900
  %2902 = vrot.lane.b32.xlu0 %v1537, 111
  %v2903 = vpop.permute.xlu0 %2902
  %2904 = vrot.lane.b32.xlu0 %v1541, 111
  %v2905 = vpop.permute.xlu0 %2904
  %2906 = vrot.lane.b32.xlu0 %v1545, 111
  %v2907 = vpop.permute.xlu0 %2906
  %2908 = vrot.lane.b32.xlu0 %v1549, 111
  %v2909 = vpop.permute.xlu0 %2908
  %v2910 = vsel %vm337, %v2895, %v2903
  %v2911 = vsel %vm337, %v2897, %v2905
  %v2912 = vsel %vm337, %v2899, %v2907
  %v2913 = vsel %vm337, %v2901, %v2909
  %v2914 = vsel %vm337, %v2887, %v2895
  %v2915 = vsel %vm337, %v2889, %v2897
  %v2916 = vsel %vm337, %v2891, %v2899
  %v2917 = vsel %vm337, %v2893, %v2901
  %v2918 = vsel %vm337, %v2879, %v2887
  %v2919 = vsel %vm337, %v2881, %v2889
  %v2920 = vsel %vm337, %v2883, %v2891
  %v2921 = vsel %vm337, %v2885, %v2893
  %v2922 = vsel %vm337, %v2903, %v2879
  %v2923 = vsel %vm337, %v2905, %v2881
  %v2924 = vsel %vm337, %v2907, %v2883
  %v2925 = vsel %vm337, %v2909, %v2885
  %v2926 = vmul.f32 %v2918, %v348
  %v2927 = vmul.f32 %v2914, %v352
  %v2928 = vmul.f32 %v2910, %v356
  %v2929 = vmul.f32 %v2922, %v360
  %v2930 = vmul.f32 %v2919, %v348
  %v2931 = vmul.f32 %v2915, %v352
  %v2932 = vmul.f32 %v2911, %v356
  %v2933 = vmul.f32 %v2923, %v360
  %v2934 = vmul.f32 %v2920, %v348
  %v2935 = vmul.f32 %v2916, %v352
  %v2936 = vmul.f32 %v2912, %v356
  %v2937 = vmul.f32 %v2924, %v360
  %v2938 = vmul.f32 %v2921, %v348
  %v2939 = vmul.f32 %v2917, %v352
  %v2940 = vmul.f32 %v2913, %v356
  %v2941 = vmul.f32 %v2925, %v360
  %v2942 = vpack.c.bf16 %v2482, %v2478
  %v2943 = vpack.c.bf16 %v2483, %v2479
  %v2944 = vpack.c.bf16 %v2484, %v2480
  %v2945 = vpack.c.bf16 %v2485, %v2481
  %v2946 = vpack.c.bf16 %v2490, %v2486
  %v2947 = vpack.c.bf16 %v2491, %v2487
  %v2948 = vpack.c.bf16 %v2492, %v2488
  %v2949 = vpack.c.bf16 %v2493, %v2489
  %v2950 = vpack.c.bf16 %v2546, %v2542
  %v2951 = vpack.c.bf16 %v2547, %v2543
  %v2952 = vpack.c.bf16 %v2548, %v2544
  %v2953 = vpack.c.bf16 %v2549, %v2545
  %v2954 = vpack.c.bf16 %v2554, %v2550
  %v2955 = vpack.c.bf16 %v2555, %v2551
  %v2956 = vpack.c.bf16 %v2556, %v2552
  %v2957 = vpack.c.bf16 %v2557, %v2553
  %v2958 = vpack.c.bf16 %v2610, %v2606
  %v2959 = vpack.c.bf16 %v2611, %v2607
  %v2960 = vpack.c.bf16 %v2612, %v2608
  %v2961 = vpack.c.bf16 %v2613, %v2609
  %v2962 = vpack.c.bf16 %v2618, %v2614
  %v2963 = vpack.c.bf16 %v2619, %v2615
  %v2964 = vpack.c.bf16 %v2620, %v2616
  %v2965 = vpack.c.bf16 %v2621, %v2617
  %v2966 = vpack.c.bf16 %v2674, %v2670
  %v2967 = vpack.c.bf16 %v2675, %v2671
  %v2968 = vpack.c.bf16 %v2676, %v2672
  %v2969 = vpack.c.bf16 %v2677, %v2673
  %v2970 = vpack.c.bf16 %v2682, %v2678
  %v2971 = vpack.c.bf16 %v2683, %v2679
  %v2972 = vpack.c.bf16 %v2684, %v2680
  %v2973 = vpack.c.bf16 %v2685, %v2681
  %v2974 = vpack.c.bf16 %v1538, %v1534
  %v2975 = vpack.c.bf16 %v1539, %v1535
  %v2976 = vpack.c.bf16 %v1540, %v1536
  %v2977 = vpack.c.bf16 %v1541, %v1537
  %v2978 = vpack.c.bf16 %v1546, %v1542
  %v2979 = vpack.c.bf16 %v1547, %v1543
  %v2980 = vpack.c.bf16 %v1548, %v1544
  %v2981 = vpack.c.bf16 %v1549, %v1545
  %v2982 = vpack.c.bf16 %v2738, %v2734
  %v2983 = vpack.c.bf16 %v2739, %v2735
  %v2984 = vpack.c.bf16 %v2740, %v2736
  %v2985 = vpack.c.bf16 %v2741, %v2737
  %v2986 = vpack.c.bf16 %v2746, %v2742
  %v2987 = vpack.c.bf16 %v2747, %v2743
  %v2988 = vpack.c.bf16 %v2748, %v2744
  %v2989 = vpack.c.bf16 %v2749, %v2745
  %v2990 = vpack.c.bf16 %v2802, %v2798
  %v2991 = vpack.c.bf16 %v2803, %v2799
  %v2992 = vpack.c.bf16 %v2804, %v2800
  %v2993 = vpack.c.bf16 %v2805, %v2801
  %v2994 = vpack.c.bf16 %v2810, %v2806
  %v2995 = vpack.c.bf16 %v2811, %v2807
  %v2996 = vpack.c.bf16 %v2812, %v2808
  %v2997 = vpack.c.bf16 %v2813, %v2809
  %v2998 = vpack.c.bf16 %v2866, %v2862
  %v2999 = vpack.c.bf16 %v2867, %v2863
  %v3000 = vpack.c.bf16 %v2868, %v2864
  %v3001 = vpack.c.bf16 %v2869, %v2865
  %v3002 = vpack.c.bf16 %v2874, %v2870
  %v3003 = vpack.c.bf16 %v2875, %v2871
  %v3004 = vpack.c.bf16 %v2876, %v2872
  %v3005 = vpack.c.bf16 %v2877, %v2873
  %v3006 = vpack.c.bf16 %v2930, %v2926
  %v3007 = vpack.c.bf16 %v2931, %v2927
  %v3008 = vpack.c.bf16 %v2932, %v2928
  %v3009 = vpack.c.bf16 %v2933, %v2929
  %v3010 = vpack.c.bf16 %v2938, %v2934
  %v3011 = vpack.c.bf16 %v2939, %v2935
  %v3012 = vpack.c.bf16 %v2940, %v2936
  %v3013 = vpack.c.bf16 %v2941, %v2937
  %v3014 = vld [vmem:[%s8] sm:$0xff]
  %v3015 = vld [vmem:[%s8 + $0x8] sm:$0xf]
  %v3016 = vld [vmem:[%s8 + $0xc] sm:$0xff]
  %v3017 = vld [vmem:[%s8 + $0x14] sm:$0xf]
  %v3018 = vld [vmem:[%s9] sm:$0xff]
  %v3019 = vld [vmem:[%s9 + $0x8] sm:$0xff]
  %3021 = vset.pattern.permute.xlu0 0
  %3022 = vperm.xlu0 %3021, %v3018
  %v3023 = vpop.permute.xlu0 %3022
  %3026 = vset.pattern.permute.xlu0 0
  %3027 = vperm.xlu0 %3026, %v3019
  %v3028 = vpop.permute.xlu0 %3027
  %v3034 = vunpack.c.l.b16 %v3014
  %v3035 = vunpack.c.h.b16 %v3014
  %v3036 = vunpack.c.l.b16 %v3015
  %v3037 = vunpack.c.l.b16 %v3016
  %v3038 = vunpack.c.h.b16 %v3016
  %v3039 = vunpack.c.l.b16 %v3017
  %v3040 = vpack.c.b16 %v3037, %v3034
  %v3041 = vpack.c.b16 %v3038, %v3035
  %v3042 = vpack.c.b16 %v3039, %v3036
  %v3046 = vsel %vm1315, %v3042, 0
  %3048 = vmatprep.subr.bf16.mxu0 %v2943
  %3049 = vmatpush1.bf16.msra.mxu0 %v2942
  %3050 = vmatprep.subr.bf16.mxu0 %v2947
  %3051 = vmatpush1.bf16.msra.mxu0 %v2946
  %3052 = vmatprep.subr.bf16.mxu0 %v2951
  %3053 = vmatpush1.bf16.msra.mxu0 %v2950
  %3054 = vmatprep.subr.bf16.mxu0 %v2955
  %3055 = vmatpush1.bf16.msra.mxu0 %v2954
  %3056 = vmatprep.subr.bf16.mxu0 %v2959
  %3057 = vmatpush1.bf16.msra.mxu0 %v2958
  %3058 = vmatprep.subr.bf16.mxu0 %v2963
  %3059 = vmatpush1.bf16.msra.mxu0 %v2962
  %3060 = vmatprep.subr.bf16.mxu0 %v2967
  %3061 = vmatpush1.bf16.msra.mxu0 %v2966
  %3062 = vmatprep.subr.bf16.mxu0 %v2971
  %3063 = vmatpush1.bf16.msra.mxu0 %v2970
  %3064 = vmatprep.subr.bf16.mxu0 %v2975
  %3065 = vmatpush1.bf16.msra.mxu0 %v2974
  %3066 = vmatprep.subr.bf16.mxu0 %v2979
  %3067 = vmatpush1.bf16.msra.mxu0 %v2978
  %3068 = vmatprep.subr.bf16.mxu0 %v2983
  %3069 = vmatpush1.bf16.msra.mxu0 %v2982
  %3070 = vmatprep.subr.bf16.mxu0 %v2987
  %3071 = vmatpush1.bf16.msra.mxu0 %v2986
  %3072 = vmatprep.subr.bf16.mxu0 %v2991
  %3073 = vmatpush1.bf16.msra.mxu0 %v2990
  %3074 = vmatprep.subr.bf16.mxu0 %v2995
  %3075 = vmatpush1.bf16.msra.mxu0 %v2994
  %3076 = vmatprep.subr.bf16.mxu0 %v2999
  %3077 = vmatpush1.bf16.msra.mxu0 %v2998
  %3078 = vmatprep.subr.bf16.mxu0 %v3003
  %3079 = vmatpush1.bf16.msra.mxu0 %v3002
  %3080 = vmatprep.mubr.bf16.mxu0 %v3041
  %3081 = vmatmul.mubr.bf16.gmra.mrb[0].mxu0 %v3040
  %v3082 = vpop.f32.mrb[0].mxu0
  %v3083 = vadd.f32 %v3023, %v3082
  %v3084 = vpop.f32.mrb[0].mxu0
  %v3085 = vadd.f32 %v3023, %v3084
  %v3086 = vpop.f32.mrb[0].mxu0
  %v3087 = vadd.f32 %v3028, %v3086
  %v3088 = vpop.f32.mrb[0].mxu0
  %v3089 = vadd.f32 %v3028, %v3088
  %3090 = vdwg.mxu0
  %3091 = vmatprep.subr.bf16.mxu0 %v3007
  %3092 = vmatpush1.bf16.msra.mxu0 %v3006
  %3093 = vmatprep.subr.bf16.mxu0 %v3011
  %3094 = vmatpush1.bf16.msra.mxu0 %v3010
  %3095 = vmatprep.subr.bf16.mxu0 0
  %3096 = vmatpush1.bf16.msra.mxu0 0
  %3097 = vmatprep.subr.bf16.mxu0 0
  %3098 = vmatpush1.bf16.msra.mxu0 0
  %3099 = vmatprep.subr.bf16.mxu0 0
  %3100 = vmatpush1.bf16.msra.mxu0 0
  %3101 = vmatprep.subr.bf16.mxu0 0
  %3102 = vmatpush1.bf16.msra.mxu0 0
  %3103 = vmatprep.subr.bf16.mxu0 0
  %3104 = vmatpush1.bf16.msra.mxu0 0
  %3105 = vmatprep.subr.bf16.mxu0 0
  %3106 = vmatpush1.bf16.msra.mxu0 0
  %3107 = vmatprep.subr.bf16.mxu0 0
  %3108 = vmatpush1.bf16.msra.mxu0 0
  %3109 = vmatprep.subr.bf16.mxu0 0
  %3110 = vmatpush1.bf16.msra.mxu0 0
  %3111 = vmatprep.subr.bf16.mxu0 0
  %3112 = vmatpush1.bf16.msra.mxu0 0
  %3113 = vmatprep.subr.bf16.mxu0 0
  %3114 = vmatpush1.bf16.msra.mxu0 0
  %3115 = vmatprep.subr.bf16.mxu0 0
  %3116 = vmatpush1.bf16.msra.mxu0 0
  %3117 = vmatprep.subr.bf16.mxu0 0
  %3118 = vmatpush1.bf16.msra.mxu0 0
  %3119 = vmatprep.subr.bf16.mxu0 0
  %3120 = vmatpush1.bf16.msra.mxu0 0
  %3121 = vmatprep.subr.bf16.mxu0 0
  %3122 = vmatpush1.bf16.msra.mxu0 0
  %3123 = vmatprep.mubr.bf16.mxu0 0
  %3124 = vmatmul.mubr.bf16.gmra.mrb[0].mxu0 %v3046
  %v3125 = vpop.f32.mrb[0].mxu0
  %v3126 = vadd.f32 %v3083, %v3125
  %v3127 = vpop.f32.mrb[0].mxu0
  %v3128 = vadd.f32 %v3085, %v3127
  %v3129 = vpop.f32.mrb[0].mxu0
  %v3130 = vadd.f32 %v3087, %v3129
  %v3131 = vpop.f32.mrb[0].mxu0
  %v3132 = vadd.f32 %v3089, %v3131
  %3133 = vdwg.mxu0
  %3134 = vmatprep.subr.bf16.mxu0 %v2945
  %3135 = vmatpush1.bf16.msra.mxu0 %v2944
  %3136 = vmatprep.subr.bf16.mxu0 %v2949
  %3137 = vmatpush1.bf16.msra.mxu0 %v2948
  %3138 = vmatprep.subr.bf16.mxu0 %v2953
  %3139 = vmatpush1.bf16.msra.mxu0 %v2952
  %3140 = vmatprep.subr.bf16.mxu0 %v2957
  %3141 = vmatpush1.bf16.msra.mxu0 %v2956
  %3142 = vmatprep.subr.bf16.mxu0 %v2961
  %3143 = vmatpush1.bf16.msra.mxu0 %v2960
  %3144 = vmatprep.subr.bf16.mxu0 %v2965
  %3145 = vmatpush1.bf16.msra.mxu0 %v2964
  %3146 = vmatprep.subr.bf16.mxu0 %v2969
  %3147 = vmatpush1.bf16.msra.mxu0 %v2968
  %3148 = vmatprep.subr.bf16.mxu0 %v2973
  %3149 = vmatpush1.bf16.msra.mxu0 %v2972
  %3150 = vmatprep.subr.bf16.mxu0 %v2977
  %3151 = vmatpush1.bf16.msra.mxu0 %v2976
  %3152 = vmatprep.subr.bf16.mxu0 %v2981
  %3153 = vmatpush1.bf16.msra.mxu0 %v2980
  %3154 = vmatprep.subr.bf16.mxu0 %v2985
  %3155 = vmatpush1.bf16.msra.mxu0 %v2984
  %3156 = vmatprep.subr.bf16.mxu0 %v2989
  %3157 = vmatpush1.bf16.msra.mxu0 %v2988
  %3158 = vmatprep.subr.bf16.mxu0 %v2993
  %3159 = vmatpush1.bf16.msra.mxu0 %v2992
  %3160 = vmatprep.subr.bf16.mxu0 %v2997
  %3161 = vmatpush1.bf16.msra.mxu0 %v2996
  %3162 = vmatprep.subr.bf16.mxu0 %v3001
  %3163 = vmatpush1.bf16.msra.mxu0 %v3000
  %3164 = vmatprep.subr.bf16.mxu0 %v3005
  %3165 = vmatpush1.bf16.msra.mxu0 %v3004
  %3166 = vmatprep.mubr.bf16.mxu0 %v3041
  %3167 = vmatmul.mubr.bf16.gmra.mrb[0].mxu0 %v3040
  %v3168 = vpop.f32.mrb[0].mxu0
  %v3169 = vadd.f32 %v3023, %v3168
  %v3170 = vpop.f32.mrb[0].mxu0
  %v3171 = vadd.f32 %v3023, %v3170
  %v3172 = vpop.f32.mrb[0].mxu0
  %v3173 = vadd.f32 %v3028, %v3172
  %v3174 = vpop.f32.mrb[0].mxu0
  %v3175 = vadd.f32 %v3028, %v3174
  %3176 = vdwg.mxu0
  %3177 = vmatprep.subr.bf16.mxu0 %v3009
  %3178 = vmatpush1.bf16.msra.mxu0 %v3008
  %3179 = vmatprep.subr.bf16.mxu0 %v3013
  %3180 = vmatpush1.bf16.msra.mxu0 %v3012
  %3181 = vmatprep.subr.bf16.mxu0 0
  %3182 = vmatpush1.bf16.msra.mxu0 0
  %3183 = vmatprep.subr.bf16.mxu0 0
  %3184 = vmatpush1.bf16.msra.mxu0 0
  %3185 = vmatprep.subr.bf16.mxu0 0
  %3186 = vmatpush1.bf16.msra.mxu0 0
  %3187 = vmatprep.subr.bf16.mxu0 0
  %3188 = vmatpush1.bf16.msra.mxu0 0
  %3189 = vmatprep.subr.bf16.mxu0 0
  %3190 = vmatpush1.bf16.msra.mxu0 0
  %3191 = vmatprep.subr.bf16.mxu0 0
  %3192 = vmatpush1.bf16.msra.mxu0 0
  %3193 = vmatprep.subr.bf16.mxu0 0
  %3194 = vmatpush1.bf16.msra.mxu0 0
  %3195 = vmatprep.subr.bf16.mxu0 0
  %3196 = vmatpush1.bf16.msra.mxu0 0
  %3197 = vmatprep.subr.bf16.mxu0 0
  %3198 = vmatpush1.bf16.msra.mxu0 0
  %3199 = vmatprep.subr.bf16.mxu0 0
  %3200 = vmatpush1.bf16.msra.mxu0 0
  %3201 = vmatprep.subr.bf16.mxu0 0
  %3202 = vmatpush1.bf16.msra.mxu0 0
  %3203 = vmatprep.subr.bf16.mxu0 0
  %3204 = vmatpush1.bf16.msra.mxu0 0
  %3205 = vmatprep.subr.bf16.mxu0 0
  %3206 = vmatpush1.bf16.msra.mxu0 0
  %3207 = vmatprep.subr.bf16.mxu0 0
  %3208 = vmatpush1.bf16.msra.mxu0 0
  %3209 = vmatprep.mubr.bf16.mxu0 0
  %3210 = vmatmul.mubr.bf16.gmra.mrb[0].mxu0 %v3046
  %v3211 = vpop.f32.mrb[0].mxu0
  %v3212 = vadd.f32 %v3169, %v3211
  %v3213 = vpop.f32.mrb[0].mxu0
  %v3214 = vadd.f32 %v3171, %v3213
  %v3215 = vpop.f32.mrb[0].mxu0
  %v3216 = vadd.f32 %v3173, %v3215
  %v3217 = vpop.f32.mrb[0].mxu0
  %v3218 = vadd.f32 %v3175, %v3217
  %3219 = vdwg.mxu0
  %3220 = vst [vmem:[%s12] sm:$0xff] %v3126
  %3221 = vst [vmem:[%s12 + $0x8] sm:$0xff] %v3128
  %3222 = vst [vmem:[%s12 + $0x10] sm:$0xff] %v3212
  %3223 = vst [vmem:[%s12 + $0x18] sm:$0xff] %v3214
  %3224 = vst [vmem:[%s12 + $0x20] sm:$0xff] %v3130
  %3225 = vst [vmem:[%s12 + $0x28] sm:$0xff] %v3132
  %3226 = vst [vmem:[%s12 + $0x30] sm:$0xff] %v3216
  %3227 = vst [vmem:[%s12 + $0x38] sm:$0xff] %v3218
  %3228 = vrot.lane.b32.xlu0 %v2414, 17
  %v3229 = vpop.permute.xlu0 %3228
  %3230 = vrot.lane.b32.xlu0 %v2418, 17
  %v3231 = vpop.permute.xlu0 %3230
  %3232 = vrot.lane.b32.xlu0 %v2422, 17
  %v3233 = vpop.permute.xlu0 %3232
  %3234 = vrot.lane.b32.xlu0 %v2426, 17
  %v3235 = vpop.permute.xlu0 %3234
  %3236 = vrot.lane.b32.xlu0 %v2415, 17
  %v3237 = vpop.permute.xlu0 %3236
  %3238 = vrot.lane.b32.xlu0 %v2419, 17
  %v3239 = vpop.permute.xlu0 %3238
  %3240 = vrot.lane.b32.xlu0 %v2423, 17
  %v3241 = vpop.permute.xlu0 %3240
  %3242 = vrot.lane.b32.xlu0 %v2427, 17
  %v3243 = vpop.permute.xlu0 %3242
  %3244 = vrot.lane.b32.xlu0 %v2416, 17
  %v3245 = vpop.permute.xlu0 %3244
  %3246 = vrot.lane.b32.xlu0 %v2420, 17
  %v3247 = vpop.permute.xlu0 %3246
  %3248 = vrot.lane.b32.xlu0 %v2424, 17
  %v3249 = vpop.permute.xlu0 %3248
  %3250 = vrot.lane.b32.xlu0 %v2428, 17
  %v3251 = vpop.permute.xlu0 %3250
  %3252 = vrot.lane.b32.xlu0 %v2417, 17
  %v3253 = vpop.permute.xlu0 %3252
  %3254 = vrot.lane.b32.xlu0 %v2421, 17
  %v3255 = vpop.permute.xlu0 %3254
  %3256 = vrot.lane.b32.xlu0 %v2425, 17
  %v3257 = vpop.permute.xlu0 %3256
  %3258 = vrot.lane.b32.xlu0 %v2429, 17
  %v3259 = vpop.permute.xlu0 %3258
  %v3260 = vsel %vm58, %v3245, %v3253
  %v3261 = vsel %vm58, %v3247, %v3255
  %v3262 = vsel %vm58, %v3249, %v3257
  %v3263 = vsel %vm58, %v3251, %v3259
  %v3264 = vsel %vm58, %v3237, %v3245
  %v3265 = vsel %vm58, %v3239, %v3247
  %v3266 = vsel %vm58, %v3241, %v3249
  %v3267 = vsel %vm58, %v3243, %v3251
  %v3268 = vsel %vm58, %v3229, %v3237
  %v3269 = vsel %vm58, %v3231, %v3239
  %v3270 = vsel %vm58, %v3233, %v3241
  %v3271 = vsel %vm58, %v3235, %v3243
  %v3272 = vsel %vm58, %v3253, %v3229
  %v3273 = vsel %vm58, %v3255, %v3231
  %v3274 = vsel %vm58, %v3257, %v3233
  %v3275 = vsel %vm58, %v3259, %v3235
  %v3276 = vld [vmem:[%s1] ss:$8 sm:$0xf]
  %v3278 = vlaneseq
  %v3279 = vshrl.u32 %v3278, 7
  %v3280 = vsub.s32 0, %v3279
  %v3281 = vrot.slane %v3276, %v3280
  %v3282 = vlaneseq
  %v3283 = vshrl.u32 %v3282, 7
  %v3284 = vsub.s32 1, %v3283
  %v3285 = vrot.slane %v3276, %v3284
  %v3286 = vlaneseq
  %v3287 = vshrl.u32 %v3286, 7
  %v3288 = vsub.s32 2, %v3287
  %v3289 = vrot.slane %v3276, %v3288
  %v3290 = vlaneseq
  %v3291 = vshrl.u32 %v3290, 7
  %v3292 = vsub.s32 3, %v3291
  %v3293 = vrot.slane %v3276, %v3292
  %v3298 = vmul.f32 %v3272, %v3281
  %v3299 = vmul.f32 %v3268, %v3285
  %v3300 = vmul.f32 %v3264, %v3289
  %v3301 = vmul.f32 %v3260, %v3293
  %v3302 = vmul.f32 %v3273, %v3281
  %v3303 = vmul.f32 %v3269, %v3285
  %v3304 = vmul.f32 %v3265, %v3289
  %v3305 = vmul.f32 %v3261, %v3293
  %v3306 = vmul.f32 %v3274, %v3281
  %v3307 = vmul.f32 %v3270, %v3285
  %v3308 = vmul.f32 %v3266, %v3289
  %v3309 = vmul.f32 %v3262, %v3293
  %v3310 = vmul.f32 %v3275, %v3281
  %v3311 = vmul.f32 %v3271, %v3285
  %v3312 = vmul.f32 %v3267, %v3289
  %v3313 = vmul.f32 %v3263, %v3293
  %3314 = vrot.lane.b32.xlu0 %v2414, 16
  %v3315 = vpop.permute.xlu0 %3314
  %3316 = vrot.lane.b32.xlu0 %v2418, 16
  %v3317 = vpop.permute.xlu0 %3316
  %3318 = vrot.lane.b32.xlu0 %v2422, 16
  %v3319 = vpop.permute.xlu0 %3318
  %3320 = vrot.lane.b32.xlu0 %v2426, 16
  %v3321 = vpop.permute.xlu0 %3320
  %3322 = vrot.lane.b32.xlu0 %v2415, 16
  %v3323 = vpop.permute.xlu0 %3322
  %3324 = vrot.lane.b32.xlu0 %v2419, 16
  %v3325 = vpop.permute.xlu0 %3324
  %3326 = vrot.lane.b32.xlu0 %v2423, 16
  %v3327 = vpop.permute.xlu0 %3326
  %3328 = vrot.lane.b32.xlu0 %v2427, 16
  %v3329 = vpop.permute.xlu0 %3328
  %3330 = vrot.lane.b32.xlu0 %v2416, 16
  %v3331 = vpop.permute.xlu0 %3330
  %3332 = vrot.lane.b32.xlu0 %v2420, 16
  %v3333 = vpop.permute.xlu0 %3332
  %3334 = vrot.lane.b32.xlu0 %v2424, 16
  %v3335 = vpop.permute.xlu0 %3334
  %3336 = vrot.lane.b32.xlu0 %v2428, 16
  %v3337 = vpop.permute.xlu0 %3336
  %3338 = vrot.lane.b32.xlu0 %v2417, 16
  %v3339 = vpop.permute.xlu0 %3338
  %3340 = vrot.lane.b32.xlu0 %v2421, 16
  %v3341 = vpop.permute.xlu0 %3340
  %3342 = vrot.lane.b32.xlu0 %v2425, 16
  %v3343 = vpop.permute.xlu0 %3342
  %3344 = vrot.lane.b32.xlu0 %v2429, 16
  %v3345 = vpop.permute.xlu0 %3344
  %v3346 = vsel %vm97, %v3331, %v3339
  %v3347 = vsel %vm97, %v3333, %v3341
  %v3348 = vsel %vm97, %v3335, %v3343
  %v3349 = vsel %vm97, %v3337, %v3345
  %v3350 = vsel %vm97, %v3323, %v3331
  %v3351 = vsel %vm97, %v3325, %v3333
  %v3352 = vsel %vm97, %v3327, %v3335
  %v3353 = vsel %vm97, %v3329, %v3337
  %v3354 = vsel %vm97, %v3315, %v3323
  %v3355 = vsel %vm97, %v3317, %v3325
  %v3356 = vsel %vm97, %v3319, %v3327
  %v3357 = vsel %vm97, %v3321, %v3329
  %v3358 = vsel %vm97, %v3339, %v3315
  %v3359 = vsel %vm97, %v3341, %v3317
  %v3360 = vsel %vm97, %v3343, %v3319
  %v3361 = vsel %vm97, %v3345, %v3321
  %v3362 = vld [vmem:[%s102] ss:$8 sm:$0xf]
  %v3364 = vlaneseq
  %v3365 = vshrl.u32 %v3364, 7
  %v3366 = vsub.s32 0, %v3365
  %v3367 = vrot.slane %v3362, %v3366
  %v3368 = vlaneseq
  %v3369 = vshrl.u32 %v3368, 7
  %v3370 = vsub.s32 1, %v3369
  %v3371 = vrot.slane %v3362, %v3370
  %v3372 = vlaneseq
  %v3373 = vshrl.u32 %v3372, 7
  %v3374 = vsub.s32 2, %v3373
  %v3375 = vrot.slane %v3362, %v3374
  %v3376 = vlaneseq
  %v3377 = vshrl.u32 %v3376, 7
  %v3378 = vsub.s32 3, %v3377
  %v3379 = vrot.slane %v3362, %v3378
  %v3384 = vmul.f32 %v3358, %v3367
  %v3385 = vmul.f32 %v3354, %v3371
  %v3386 = vmul.f32 %v3350, %v3375
  %v3387 = vmul.f32 %v3346, %v3379
  %v3388 = vmul.f32 %v3359, %v3367
  %v3389 = vmul.f32 %v3355, %v3371
  %v3390 = vmul.f32 %v3351, %v3375
  %v3391 = vmul.f32 %v3347, %v3379
  %v3392 = vmul.f32 %v3360, %v3367
  %v3393 = vmul.f32 %v3356, %v3371
  %v3394 = vmul.f32 %v3352, %v3375
  %v3395 = vmul.f32 %v3348, %v3379
  %v3396 = vmul.f32 %v3361, %v3367
  %v3397 = vmul.f32 %v3357, %v3371
  %v3398 = vmul.f32 %v3353, %v3375
  %v3399 = vmul.f32 %v3349, %v3379
  %3400 = vrot.lane.b32.xlu0 %v2414, 15
  %v3401 = vpop.permute.xlu0 %3400
  %3402 = vrot.lane.b32.xlu0 %v2418, 15
  %v3403 = vpop.permute.xlu0 %3402
  %3404 = vrot.lane.b32.xlu0 %v2422, 15
  %v3405 = vpop.permute.xlu0 %3404
  %3406 = vrot.lane.b32.xlu0 %v2426, 15
  %v3407 = vpop.permute.xlu0 %3406
  %3408 = vrot.lane.b32.xlu0 %v2415, 15
  %v3409 = vpop.permute.xlu0 %3408
  %3410 = vrot.lane.b32.xlu0 %v2419, 15
  %v3411 = vpop.permute.xlu0 %3410
  %3412 = vrot.lane.b32.xlu0 %v2423, 15
  %v3413 = vpop.permute.xlu0 %3412
  %3414 = vrot.lane.b32.xlu0 %v2427, 15
  %v3415 = vpop.permute.xlu0 %3414
  %3416 = vrot.lane.b32.xlu0 %v2416, 15
  %v3417 = vpop.permute.xlu0 %3416
  %3418 = vrot.lane.b32.xlu0 %v2420, 15
  %v3419 = vpop.permute.xlu0 %3418
  %3420 = vrot.lane.b32.xlu0 %v2424, 15
  %v3421 = vpop.permute.xlu0 %3420
  %3422 = vrot.lane.b32.xlu0 %v2428, 15
  %v3423 = vpop.permute.xlu0 %3422
  %3424 = vrot.lane.b32.xlu0 %v2417, 15
  %v3425 = vpop.permute.xlu0 %3424
  %3426 = vrot.lane.b32.xlu0 %v2421, 15
  %v3427 = vpop.permute.xlu0 %3426
  %3428 = vrot.lane.b32.xlu0 %v2425, 15
  %v3429 = vpop.permute.xlu0 %3428
  %3430 = vrot.lane.b32.xlu0 %v2429, 15
  %v3431 = vpop.permute.xlu0 %3430
  %v3432 = vsel %vm137, %v3417, %v3425
  %v3433 = vsel %vm137, %v3419, %v3427
  %v3434 = vsel %vm137, %v3421, %v3429
  %v3435 = vsel %vm137, %v3423, %v3431
  %v3436 = vsel %vm137, %v3409, %v3417
  %v3437 = vsel %vm137, %v3411, %v3419
  %v3438 = vsel %vm137, %v3413, %v3421
  %v3439 = vsel %vm137, %v3415, %v3423
  %v3440 = vsel %vm137, %v3401, %v3409
  %v3441 = vsel %vm137, %v3403, %v3411
  %v3442 = vsel %vm137, %v3405, %v3413
  %v3443 = vsel %vm137, %v3407, %v3415
  %v3444 = vsel %vm137, %v3425, %v3401
  %v3445 = vsel %vm137, %v3427, %v3403
  %v3446 = vsel %vm137, %v3429, %v3405
  %v3447 = vsel %vm137, %v3431, %v3407
  %v3448 = vld [vmem:[%s142] ss:$8 sm:$0xf]
  %v3450 = vlaneseq
  %v3451 = vshrl.u32 %v3450, 7
  %v3452 = vsub.s32 0, %v3451
  %v3453 = vrot.slane %v3448, %v3452
  %v3454 = vlaneseq
  %v3455 = vshrl.u32 %v3454, 7
  %v3456 = vsub.s32 1, %v3455
  %v3457 = vrot.slane %v3448, %v3456
  %v3458 = vlaneseq
  %v3459 = vshrl.u32 %v3458, 7
  %v3460 = vsub.s32 2, %v3459
  %v3461 = vrot.slane %v3448, %v3460
  %v3462 = vlaneseq
  %v3463 = vshrl.u32 %v3462, 7
  %v3464 = vsub.s32 3, %v3463
  %v3465 = vrot.slane %v3448, %v3464
  %v3470 = vmul.f32 %v3444, %v3453
  %v3471 = vmul.f32 %v3440, %v3457
  %v3472 = vmul.f32 %v3436, %v3461
  %v3473 = vmul.f32 %v3432, %v3465
  %v3474 = vmul.f32 %v3445, %v3453
  %v3475 = vmul.f32 %v3441, %v3457
  %v3476 = vmul.f32 %v3437, %v3461
  %v3477 = vmul.f32 %v3433, %v3465
  %v3478 = vmul.f32 %v3446, %v3453
  %v3479 = vmul.f32 %v3442, %v3457
  %v3480 = vmul.f32 %v3438, %v3461
  %v3481 = vmul.f32 %v3434, %v3465
  %v3482 = vmul.f32 %v3447, %v3453
  %v3483 = vmul.f32 %v3443, %v3457
  %v3484 = vmul.f32 %v3439, %v3461
  %v3485 = vmul.f32 %v3435, %v3465
  %3486 = vrot.lane.b32.xlu0 %v2414, 1
  %v3487 = vpop.permute.xlu0 %3486
  %3488 = vrot.lane.b32.xlu0 %v2418, 1
  %v3489 = vpop.permute.xlu0 %3488
  %3490 = vrot.lane.b32.xlu0 %v2422, 1
  %v3491 = vpop.permute.xlu0 %3490
  %3492 = vrot.lane.b32.xlu0 %v2426, 1
  %v3493 = vpop.permute.xlu0 %3492
  %3494 = vrot.lane.b32.xlu0 %v2415, 1
  %v3495 = vpop.permute.xlu0 %3494
  %3496 = vrot.lane.b32.xlu0 %v2419, 1
  %v3497 = vpop.permute.xlu0 %3496
  %3498 = vrot.lane.b32.xlu0 %v2423, 1
  %v3499 = vpop.permute.xlu0 %3498
  %3500 = vrot.lane.b32.xlu0 %v2427, 1
  %v3501 = vpop.permute.xlu0 %3500
  %3502 = vrot.lane.b32.xlu0 %v2416, 1
  %v3503 = vpop.permute.xlu0 %3502
  %3504 = vrot.lane.b32.xlu0 %v2420, 1
  %v3505 = vpop.permute.xlu0 %3504
  %3506 = vrot.lane.b32.xlu0 %v2424, 1
  %v3507 = vpop.permute.xlu0 %3506
  %3508 = vrot.lane.b32.xlu0 %v2428, 1
  %v3509 = vpop.permute.xlu0 %3508
  %3510 = vrot.lane.b32.xlu0 %v2417, 1
  %v3511 = vpop.permute.xlu0 %3510
  %3512 = vrot.lane.b32.xlu0 %v2421, 1
  %v3513 = vpop.permute.xlu0 %3512
  %3514 = vrot.lane.b32.xlu0 %v2425, 1
  %v3515 = vpop.permute.xlu0 %3514
  %3516 = vrot.lane.b32.xlu0 %v2429, 1
  %v3517 = vpop.permute.xlu0 %3516
  %v3518 = vsel %vm177, %v3503, %v3511
  %v3519 = vsel %vm177, %v3505, %v3513
  %v3520 = vsel %vm177, %v3507, %v3515
  %v3521 = vsel %vm177, %v3509, %v3517
  %v3522 = vsel %vm177, %v3495, %v3503
  %v3523 = vsel %vm177, %v3497, %v3505
  %v3524 = vsel %vm177, %v3499, %v3507
  %v3525 = vsel %vm177, %v3501, %v3509
  %v3526 = vsel %vm177, %v3487, %v3495
  %v3527 = vsel %vm177, %v3489, %v3497
  %v3528 = vsel %vm177, %v3491, %v3499
  %v3529 = vsel %vm177, %v3493, %v3501
  %v3530 = vsel %vm177, %v3511, %v3487
  %v3531 = vsel %vm177, %v3513, %v3489
  %v3532 = vsel %vm177, %v3515, %v3491
  %v3533 = vsel %vm177, %v3517, %v3493
  %v3534 = vld [vmem:[%s182] ss:$8 sm:$0xf]
  %v3536 = vlaneseq
  %v3537 = vshrl.u32 %v3536, 7
  %v3538 = vsub.s32 0, %v3537
  %v3539 = vrot.slane %v3534, %v3538
  %v3540 = vlaneseq
  %v3541 = vshrl.u32 %v3540, 7
  %v3542 = vsub.s32 1, %v3541
  %v3543 = vrot.slane %v3534, %v3542
  %v3544 = vlaneseq
  %v3545 = vshrl.u32 %v3544, 7
  %v3546 = vsub.s32 2, %v3545
  %v3547 = vrot.slane %v3534, %v3546
  %v3548 = vlaneseq
  %v3549 = vshrl.u32 %v3548, 7
  %v3550 = vsub.s32 3, %v3549
  %v3551 = vrot.slane %v3534, %v3550
  %v3556 = vmul.f32 %v3530, %v3539
  %v3557 = vmul.f32 %v3526, %v3543
  %v3558 = vmul.f32 %v3522, %v3547
  %v3559 = vmul.f32 %v3518, %v3551
  %v3560 = vmul.f32 %v3531, %v3539
  %v3561 = vmul.f32 %v3527, %v3543
  %v3562 = vmul.f32 %v3523, %v3547
  %v3563 = vmul.f32 %v3519, %v3551
  %v3564 = vmul.f32 %v3532, %v3539
  %v3565 = vmul.f32 %v3528, %v3543
  %v3566 = vmul.f32 %v3524, %v3547
  %v3567 = vmul.f32 %v3520, %v3551
  %v3568 = vmul.f32 %v3533, %v3539
  %v3569 = vmul.f32 %v3529, %v3543
  %v3570 = vmul.f32 %v3525, %v3547
  %v3571 = vmul.f32 %v3521, %v3551
  %3572 = vrot.lane.b32.xlu0 %v2414, 127
  %v3573 = vpop.permute.xlu0 %3572
  %3574 = vrot.lane.b32.xlu0 %v2418, 127
  %v3575 = vpop.permute.xlu0 %3574
  %3576 = vrot.lane.b32.xlu0 %v2422, 127
  %v3577 = vpop.permute.xlu0 %3576
  %3578 = vrot.lane.b32.xlu0 %v2426, 127
  %v3579 = vpop.permute.xlu0 %3578
  %3580 = vrot.lane.b32.xlu0 %v2415, 127
  %v3581 = vpop.permute.xlu0 %3580
  %3582 = vrot.lane.b32.xlu0 %v2419, 127
  %v3583 = vpop.permute.xlu0 %3582
  %3584 = vrot.lane.b32.xlu0 %v2423, 127
  %v3585 = vpop.permute.xlu0 %3584
  %3586 = vrot.lane.b32.xlu0 %v2427, 127
  %v3587 = vpop.permute.xlu0 %3586
  %3588 = vrot.lane.b32.xlu0 %v2416, 127
  %v3589 = vpop.permute.xlu0 %3588
  %3590 = vrot.lane.b32.xlu0 %v2420, 127
  %v3591 = vpop.permute.xlu0 %3590
  %3592 = vrot.lane.b32.xlu0 %v2424, 127
  %v3593 = vpop.permute.xlu0 %3592
  %3594 = vrot.lane.b32.xlu0 %v2428, 127
  %v3595 = vpop.permute.xlu0 %3594
  %3596 = vrot.lane.b32.xlu0 %v2417, 127
  %v3597 = vpop.permute.xlu0 %3596
  %3598 = vrot.lane.b32.xlu0 %v2421, 127
  %v3599 = vpop.permute.xlu0 %3598
  %3600 = vrot.lane.b32.xlu0 %v2425, 127
  %v3601 = vpop.permute.xlu0 %3600
  %3602 = vrot.lane.b32.xlu0 %v2429, 127
  %v3603 = vpop.permute.xlu0 %3602
  %v3604 = vsel %vm217, %v3589, %v3597
  %v3605 = vsel %vm217, %v3591, %v3599
  %v3606 = vsel %vm217, %v3593, %v3601
  %v3607 = vsel %vm217, %v3595, %v3603
  %v3608 = vsel %vm217, %v3581, %v3589
  %v3609 = vsel %vm217, %v3583, %v3591
  %v3610 = vsel %vm217, %v3585, %v3593
  %v3611 = vsel %vm217, %v3587, %v3595
  %v3612 = vsel %vm217, %v3573, %v3581
  %v3613 = vsel %vm217, %v3575, %v3583
  %v3614 = vsel %vm217, %v3577, %v3585
  %v3615 = vsel %vm217, %v3579, %v3587
  %v3616 = vsel %vm217, %v3597, %v3573
  %v3617 = vsel %vm217, %v3599, %v3575
  %v3618 = vsel %vm217, %v3601, %v3577
  %v3619 = vsel %vm217, %v3603, %v3579
  %v3620 = vld [vmem:[%s222] ss:$8 sm:$0xf]
  %v3622 = vlaneseq
  %v3623 = vshrl.u32 %v3622, 7
  %v3624 = vsub.s32 0, %v3623
  %v3625 = vrot.slane %v3620, %v3624
  %v3626 = vlaneseq
  %v3627 = vshrl.u32 %v3626, 7
  %v3628 = vsub.s32 1, %v3627
  %v3629 = vrot.slane %v3620, %v3628
  %v3630 = vlaneseq
  %v3631 = vshrl.u32 %v3630, 7
  %v3632 = vsub.s32 2, %v3631
  %v3633 = vrot.slane %v3620, %v3632
  %v3634 = vlaneseq
  %v3635 = vshrl.u32 %v3634, 7
  %v3636 = vsub.s32 3, %v3635
  %v3637 = vrot.slane %v3620, %v3636
  %v3642 = vmul.f32 %v3612, %v3625
  %v3643 = vmul.f32 %v3608, %v3629
  %v3644 = vmul.f32 %v3604, %v3633
  %v3645 = vmul.f32 %v3616, %v3637
  %v3646 = vmul.f32 %v3613, %v3625
  %v3647 = vmul.f32 %v3609, %v3629
  %v3648 = vmul.f32 %v3605, %v3633
  %v3649 = vmul.f32 %v3617, %v3637
  %v3650 = vmul.f32 %v3614, %v3625
  %v3651 = vmul.f32 %v3610, %v3629
  %v3652 = vmul.f32 %v3606, %v3633
  %v3653 = vmul.f32 %v3618, %v3637
  %v3654 = vmul.f32 %v3615, %v3625
  %v3655 = vmul.f32 %v3611, %v3629
  %v3656 = vmul.f32 %v3607, %v3633
  %v3657 = vmul.f32 %v3619, %v3637
  %3658 = vrot.lane.b32.xlu0 %v2414, 113
  %v3659 = vpop.permute.xlu0 %3658
  %3660 = vrot.lane.b32.xlu0 %v2418, 113
  %v3661 = vpop.permute.xlu0 %3660
  %3662 = vrot.lane.b32.xlu0 %v2422, 113
  %v3663 = vpop.permute.xlu0 %3662
  %3664 = vrot.lane.b32.xlu0 %v2426, 113
  %v3665 = vpop.permute.xlu0 %3664
  %3666 = vrot.lane.b32.xlu0 %v2415, 113
  %v3667 = vpop.permute.xlu0 %3666
  %3668 = vrot.lane.b32.xlu0 %v2419, 113
  %v3669 = vpop.permute.xlu0 %3668
  %3670 = vrot.lane.b32.xlu0 %v2423, 113
  %v3671 = vpop.permute.xlu0 %3670
  %3672 = vrot.lane.b32.xlu0 %v2427, 113
  %v3673 = vpop.permute.xlu0 %3672
  %3674 = vrot.lane.b32.xlu0 %v2416, 113
  %v3675 = vpop.permute.xlu0 %3674
  %3676 = vrot.lane.b32.xlu0 %v2420, 113
  %v3677 = vpop.permute.xlu0 %3676
  %3678 = vrot.lane.b32.xlu0 %v2424, 113
  %v3679 = vpop.permute.xlu0 %3678
  %3680 = vrot.lane.b32.xlu0 %v2428, 113
  %v3681 = vpop.permute.xlu0 %3680
  %3682 = vrot.lane.b32.xlu0 %v2417, 113
  %v3683 = vpop.permute.xlu0 %3682
  %3684 = vrot.lane.b32.xlu0 %v2421, 113
  %v3685 = vpop.permute.xlu0 %3684
  %3686 = vrot.lane.b32.xlu0 %v2425, 113
  %v3687 = vpop.permute.xlu0 %3686
  %3688 = vrot.lane.b32.xlu0 %v2429, 113
  %v3689 = vpop.permute.xlu0 %3688
  %v3690 = vsel %vm257, %v3675, %v3683
  %v3691 = vsel %vm257, %v3677, %v3685
  %v3692 = vsel %vm257, %v3679, %v3687
  %v3693 = vsel %vm257, %v3681, %v3689
  %v3694 = vsel %vm257, %v3667, %v3675
  %v3695 = vsel %vm257, %v3669, %v3677
  %v3696 = vsel %vm257, %v3671, %v3679
  %v3697 = vsel %vm257, %v3673, %v3681
  %v3698 = vsel %vm257, %v3659, %v3667
  %v3699 = vsel %vm257, %v3661, %v3669
  %v3700 = vsel %vm257, %v3663, %v3671
  %v3701 = vsel %vm257, %v3665, %v3673
  %v3702 = vsel %vm257, %v3683, %v3659
  %v3703 = vsel %vm257, %v3685, %v3661
  %v3704 = vsel %vm257, %v3687, %v3663
  %v3705 = vsel %vm257, %v3689, %v3665
  %v3706 = vld [vmem:[%s262] ss:$8 sm:$0xf]
  %v3708 = vlaneseq
  %v3709 = vshrl.u32 %v3708, 7
  %v3710 = vsub.s32 0, %v3709
  %v3711 = vrot.slane %v3706, %v3710
  %v3712 = vlaneseq
  %v3713 = vshrl.u32 %v3712, 7
  %v3714 = vsub.s32 1, %v3713
  %v3715 = vrot.slane %v3706, %v3714
  %v3716 = vlaneseq
  %v3717 = vshrl.u32 %v3716, 7
  %v3718 = vsub.s32 2, %v3717
  %v3719 = vrot.slane %v3706, %v3718
  %v3720 = vlaneseq
  %v3721 = vshrl.u32 %v3720, 7
  %v3722 = vsub.s32 3, %v3721
  %v3723 = vrot.slane %v3706, %v3722
  %v3728 = vmul.f32 %v3698, %v3711
  %v3729 = vmul.f32 %v3694, %v3715
  %v3730 = vmul.f32 %v3690, %v3719
  %v3731 = vmul.f32 %v3702, %v3723
  %v3732 = vmul.f32 %v3699, %v3711
  %v3733 = vmul.f32 %v3695, %v3715
  %v3734 = vmul.f32 %v3691, %v3719
  %v3735 = vmul.f32 %v3703, %v3723
  %v3736 = vmul.f32 %v3700, %v3711
  %v3737 = vmul.f32 %v3696, %v3715
  %v3738 = vmul.f32 %v3692, %v3719
  %v3739 = vmul.f32 %v3704, %v3723
  %v3740 = vmul.f32 %v3701, %v3711
  %v3741 = vmul.f32 %v3697, %v3715
  %v3742 = vmul.f32 %v3693, %v3719
  %v3743 = vmul.f32 %v3705, %v3723
  %3744 = vrot.lane.b32.xlu0 %v2414, 112
  %v3745 = vpop.permute.xlu0 %3744
  %3746 = vrot.lane.b32.xlu0 %v2418, 112
  %v3747 = vpop.permute.xlu0 %3746
  %3748 = vrot.lane.b32.xlu0 %v2422, 112
  %v3749 = vpop.permute.xlu0 %3748
  %3750 = vrot.lane.b32.xlu0 %v2426, 112
  %v3751 = vpop.permute.xlu0 %3750
  %3752 = vrot.lane.b32.xlu0 %v2415, 112
  %v3753 = vpop.permute.xlu0 %3752
  %3754 = vrot.lane.b32.xlu0 %v2419, 112
  %v3755 = vpop.permute.xlu0 %3754
  %3756 = vrot.lane.b32.xlu0 %v2423, 112
  %v3757 = vpop.permute.xlu0 %3756
  %3758 = vrot.lane.b32.xlu0 %v2427, 112
  %v3759 = vpop.permute.xlu0 %3758
  %3760 = vrot.lane.b32.xlu0 %v2416, 112
  %v3761 = vpop.permute.xlu0 %3760
  %3762 = vrot.lane.b32.xlu0 %v2420, 112
  %v3763 = vpop.permute.xlu0 %3762
  %3764 = vrot.lane.b32.xlu0 %v2424, 112
  %v3765 = vpop.permute.xlu0 %3764
  %3766 = vrot.lane.b32.xlu0 %v2428, 112
  %v3767 = vpop.permute.xlu0 %3766
  %3768 = vrot.lane.b32.xlu0 %v2417, 112
  %v3769 = vpop.permute.xlu0 %3768
  %3770 = vrot.lane.b32.xlu0 %v2421, 112
  %v3771 = vpop.permute.xlu0 %3770
  %3772 = vrot.lane.b32.xlu0 %v2425, 112
  %v3773 = vpop.permute.xlu0 %3772
  %3774 = vrot.lane.b32.xlu0 %v2429, 112
  %v3775 = vpop.permute.xlu0 %3774
  %v3776 = vsel %vm297, %v3761, %v3769
  %v3777 = vsel %vm297, %v3763, %v3771
  %v3778 = vsel %vm297, %v3765, %v3773
  %v3779 = vsel %vm297, %v3767, %v3775
  %v3780 = vsel %vm297, %v3753, %v3761
  %v3781 = vsel %vm297, %v3755, %v3763
  %v3782 = vsel %vm297, %v3757, %v3765
  %v3783 = vsel %vm297, %v3759, %v3767
  %v3784 = vsel %vm297, %v3745, %v3753
  %v3785 = vsel %vm297, %v3747, %v3755
  %v3786 = vsel %vm297, %v3749, %v3757
  %v3787 = vsel %vm297, %v3751, %v3759
  %v3788 = vsel %vm297, %v3769, %v3745
  %v3789 = vsel %vm297, %v3771, %v3747
  %v3790 = vsel %vm297, %v3773, %v3749
  %v3791 = vsel %vm297, %v3775, %v3751
  %v3792 = vld [vmem:[%s302] ss:$8 sm:$0xf]
  %v3794 = vlaneseq
  %v3795 = vshrl.u32 %v3794, 7
  %v3796 = vsub.s32 0, %v3795
  %v3797 = vrot.slane %v3792, %v3796
  %v3798 = vlaneseq
  %v3799 = vshrl.u32 %v3798, 7
  %v3800 = vsub.s32 1, %v3799
  %v3801 = vrot.slane %v3792, %v3800
  %v3802 = vlaneseq
  %v3803 = vshrl.u32 %v3802, 7
  %v3804 = vsub.s32 2, %v3803
  %v3805 = vrot.slane %v3792, %v3804
  %v3806 = vlaneseq
  %v3807 = vshrl.u32 %v3806, 7
  %v3808 = vsub.s32 3, %v3807
  %v3809 = vrot.slane %v3792, %v3808
  %v3814 = vmul.f32 %v3784, %v3797
  %v3815 = vmul.f32 %v3780, %v3801
  %v3816 = vmul.f32 %v3776, %v3805
  %v3817 = vmul.f32 %v3788, %v3809
  %v3818 = vmul.f32 %v3785, %v3797
  %v3819 = vmul.f32 %v3781, %v3801
  %v3820 = vmul.f32 %v3777, %v3805
  %v3821 = vmul.f32 %v3789, %v3809
  %v3822 = vmul.f32 %v3786, %v3797
  %v3823 = vmul.f32 %v3782, %v3801
  %v3824 = vmul.f32 %v3778, %v3805
  %v3825 = vmul.f32 %v3790, %v3809
  %v3826 = vmul.f32 %v3787, %v3797
  %v3827 = vmul.f32 %v3783, %v3801
  %v3828 = vmul.f32 %v3779, %v3805
  %v3829 = vmul.f32 %v3791, %v3809
  %3830 = vrot.lane.b32.xlu0 %v2414, 111
  %v3831 = vpop.permute.xlu0 %3830
  %3832 = vrot.lane.b32.xlu0 %v2418, 111
  %v3833 = vpop.permute.xlu0 %3832
  %3834 = vrot.lane.b32.xlu0 %v2422, 111
  %v3835 = vpop.permute.xlu0 %3834
  %3836 = vrot.lane.b32.xlu0 %v2426, 111
  %v3837 = vpop.permute.xlu0 %3836
  %3838 = vrot.lane.b32.xlu0 %v2415, 111
  %v3839 = vpop.permute.xlu0 %3838
  %3840 = vrot.lane.b32.xlu0 %v2419, 111
  %v3841 = vpop.permute.xlu0 %3840
  %3842 = vrot.lane.b32.xlu0 %v2423, 111
  %v3843 = vpop.permute.xlu0 %3842
  %3844 = vrot.lane.b32.xlu0 %v2427, 111
  %v3845 = vpop.permute.xlu0 %3844
  %3846 = vrot.lane.b32.xlu0 %v2416, 111
  %v3847 = vpop.permute.xlu0 %3846
  %3848 = vrot.lane.b32.xlu0 %v2420, 111
  %v3849 = vpop.permute.xlu0 %3848
  %3850 = vrot.lane.b32.xlu0 %v2424, 111
  %v3851 = vpop.permute.xlu0 %3850
  %3852 = vrot.lane.b32.xlu0 %v2428, 111
  %v3853 = vpop.permute.xlu0 %3852
  %3854 = vrot.lane.b32.xlu0 %v2417, 111
  %v3855 = vpop.permute.xlu0 %3854
  %3856 = vrot.lane.b32.xlu0 %v2421, 111
  %v3857 = vpop.permute.xlu0 %3856
  %3858 = vrot.lane.b32.xlu0 %v2425, 111
  %v3859 = vpop.permute.xlu0 %3858
  %3860 = vrot.lane.b32.xlu0 %v2429, 111
  %v3861 = vpop.permute.xlu0 %3860
  %v3862 = vsel %vm337, %v3847, %v3855
  %v3863 = vsel %vm337, %v3849, %v3857
  %v3864 = vsel %vm337, %v3851, %v3859
  %v3865 = vsel %vm337, %v3853, %v3861
  %v3866 = vsel %vm337, %v3839, %v3847
  %v3867 = vsel %vm337, %v3841, %v3849
  %v3868 = vsel %vm337, %v3843, %v3851
  %v3869 = vsel %vm337, %v3845, %v3853
  %v3870 = vsel %vm337, %v3831, %v3839
  %v3871 = vsel %vm337, %v3833, %v3841
  %v3872 = vsel %vm337, %v3835, %v3843
  %v3873 = vsel %vm337, %v3837, %v3845
  %v3874 = vsel %vm337, %v3855, %v3831
  %v3875 = vsel %vm337, %v3857, %v3833
  %v3876 = vsel %vm337, %v3859, %v3835
  %v3877 = vsel %vm337, %v3861, %v3837
  %v3878 = vld [vmem:[%s342] ss:$8 sm:$0xf]
  %v3880 = vlaneseq
  %v3881 = vshrl.u32 %v3880, 7
  %v3882 = vsub.s32 0, %v3881
  %v3883 = vrot.slane %v3878, %v3882
  %v3884 = vlaneseq
  %v3885 = vshrl.u32 %v3884, 7
  %v3886 = vsub.s32 1, %v3885
  %v3887 = vrot.slane %v3878, %v3886
  %v3888 = vlaneseq
  %v3889 = vshrl.u32 %v3888, 7
  %v3890 = vsub.s32 2, %v3889
  %v3891 = vrot.slane %v3878, %v3890
  %v3892 = vlaneseq
  %v3893 = vshrl.u32 %v3892, 7
  %v3894 = vsub.s32 3, %v3893
  %v3895 = vrot.slane %v3878, %v3894
  %v3900 = vmul.f32 %v3870, %v3883
  %v3901 = vmul.f32 %v3866, %v3887
  %v3902 = vmul.f32 %v3862, %v3891
  %v3903 = vmul.f32 %v3874, %v3895
  %v3904 = vmul.f32 %v3871, %v3883
  %v3905 = vmul.f32 %v3867, %v3887
  %v3906 = vmul.f32 %v3863, %v3891
  %v3907 = vmul.f32 %v3875, %v3895
  %v3908 = vmul.f32 %v3872, %v3883
  %v3909 = vmul.f32 %v3868, %v3887
  %v3910 = vmul.f32 %v3864, %v3891
  %v3911 = vmul.f32 %v3876, %v3895
  %v3912 = vmul.f32 %v3873, %v3883
  %v3913 = vmul.f32 %v3869, %v3887
  %v3914 = vmul.f32 %v3865, %v3891
  %v3915 = vmul.f32 %v3877, %v3895
  %v3916 = vpack.c.bf16 %v3302, %v3298
  %v3917 = vpack.c.bf16 %v3303, %v3299
  %v3918 = vpack.c.bf16 %v3304, %v3300
  %v3919 = vpack.c.bf16 %v3305, %v3301
  %v3920 = vpack.c.bf16 %v3310, %v3306
  %v3921 = vpack.c.bf16 %v3311, %v3307
  %v3922 = vpack.c.bf16 %v3312, %v3308
  %v3923 = vpack.c.bf16 %v3313, %v3309
  %v3924 = vpack.c.bf16 %v3388, %v3384
  %v3925 = vpack.c.bf16 %v3389, %v3385
  %v3926 = vpack.c.bf16 %v3390, %v3386
  %v3927 = vpack.c.bf16 %v3391, %v3387
  %v3928 = vpack.c.bf16 %v3396, %v3392
  %v3929 = vpack.c.bf16 %v3397, %v3393
  %v3930 = vpack.c.bf16 %v3398, %v3394
  %v3931 = vpack.c.bf16 %v3399, %v3395
  %v3932 = vpack.c.bf16 %v3474, %v3470
  %v3933 = vpack.c.bf16 %v3475, %v3471
  %v3934 = vpack.c.bf16 %v3476, %v3472
  %v3935 = vpack.c.bf16 %v3477, %v3473
  %v3936 = vpack.c.bf16 %v3482, %v3478
  %v3937 = vpack.c.bf16 %v3483, %v3479
  %v3938 = vpack.c.bf16 %v3484, %v3480
  %v3939 = vpack.c.bf16 %v3485, %v3481
  %v3940 = vpack.c.bf16 %v3560, %v3556
  %v3941 = vpack.c.bf16 %v3561, %v3557
  %v3942 = vpack.c.bf16 %v3562, %v3558
  %v3943 = vpack.c.bf16 %v3563, %v3559
  %v3944 = vpack.c.bf16 %v3568, %v3564
  %v3945 = vpack.c.bf16 %v3569, %v3565
  %v3946 = vpack.c.bf16 %v3570, %v3566
  %v3947 = vpack.c.bf16 %v3571, %v3567
  %v3948 = vpack.c.bf16 %v2418, %v2414
  %v3949 = vpack.c.bf16 %v2419, %v2415
  %v3950 = vpack.c.bf16 %v2420, %v2416
  %v3951 = vpack.c.bf16 %v2421, %v2417
  %v3952 = vpack.c.bf16 %v2426, %v2422
  %v3953 = vpack.c.bf16 %v2427, %v2423
  %v3954 = vpack.c.bf16 %v2428, %v2424
  %v3955 = vpack.c.bf16 %v2429, %v2425
  %v3956 = vpack.c.bf16 %v3646, %v3642
  %v3957 = vpack.c.bf16 %v3647, %v3643
  %v3958 = vpack.c.bf16 %v3648, %v3644
  %v3959 = vpack.c.bf16 %v3649, %v3645
  %v3960 = vpack.c.bf16 %v3654, %v3650
  %v3961 = vpack.c.bf16 %v3655, %v3651
  %v3962 = vpack.c.bf16 %v3656, %v3652
  %v3963 = vpack.c.bf16 %v3657, %v3653
  %v3964 = vpack.c.bf16 %v3732, %v3728
  %v3965 = vpack.c.bf16 %v3733, %v3729
  %v3966 = vpack.c.bf16 %v3734, %v3730
  %v3967 = vpack.c.bf16 %v3735, %v3731
  %v3968 = vpack.c.bf16 %v3740, %v3736
  %v3969 = vpack.c.bf16 %v3741, %v3737
  %v3970 = vpack.c.bf16 %v3742, %v3738
  %v3971 = vpack.c.bf16 %v3743, %v3739
  %v3972 = vpack.c.bf16 %v3818, %v3814
  %v3973 = vpack.c.bf16 %v3819, %v3815
  %v3974 = vpack.c.bf16 %v3820, %v3816
  %v3975 = vpack.c.bf16 %v3821, %v3817
  %v3976 = vpack.c.bf16 %v3826, %v3822
  %v3977 = vpack.c.bf16 %v3827, %v3823
  %v3978 = vpack.c.bf16 %v3828, %v3824
  %v3979 = vpack.c.bf16 %v3829, %v3825
  %v3980 = vpack.c.bf16 %v3904, %v3900
  %v3981 = vpack.c.bf16 %v3905, %v3901
  %v3982 = vpack.c.bf16 %v3906, %v3902
  %v3983 = vpack.c.bf16 %v3907, %v3903
  %v3984 = vpack.c.bf16 %v3912, %v3908
  %v3985 = vpack.c.bf16 %v3913, %v3909
  %v3986 = vpack.c.bf16 %v3914, %v3910
  %v3987 = vpack.c.bf16 %v3915, %v3911
  %v3988 = vld [vmem:[%s10] sm:$0xff]
  %v3989 = vld [vmem:[%s10 + $0x8] sm:$0xf]
  %v3990 = vld [vmem:[%s10 + $0xc] sm:$0xff]
  %v3991 = vld [vmem:[%s10 + $0x14] sm:$0xf]
  %v3992 = vld [vmem:[%s10 + $0x18] sm:$0xff]
  %v3993 = vld [vmem:[%s10 + $0x20] sm:$0xf]
  %v3994 = vld [vmem:[%s11] sm:$0xff]
  %v3995 = vld [vmem:[%s11 + $0x8] sm:$0xff]
  %v3996 = vld [vmem:[%s11 + $0x10] sm:$0xff]
  %3998 = vset.pattern.permute.xlu0 0
  %3999 = vperm.xlu0 %3998, %v3994
  %v4000 = vpop.permute.xlu0 %3999
  %4003 = vset.pattern.permute.xlu0 0
  %4004 = vperm.xlu0 %4003, %v3995
  %v4005 = vpop.permute.xlu0 %4004
  %4008 = vset.pattern.permute.xlu0 0
  %4009 = vperm.xlu0 %4008, %v3996
  %v4010 = vpop.permute.xlu0 %4009
  %v4018 = vunpack.c.l.b16 %v3988
  %v4019 = vunpack.c.h.b16 %v3988
  %v4020 = vunpack.c.l.b16 %v3989
  %v4021 = vunpack.c.l.b16 %v3990
  %v4022 = vunpack.c.h.b16 %v3990
  %v4023 = vunpack.c.l.b16 %v3991
  %v4024 = vunpack.c.l.b16 %v3992
  %v4025 = vunpack.c.h.b16 %v3992
  %v4026 = vunpack.c.l.b16 %v3993
  %v4027 = vpack.c.b16 %v4021, %v4018
  %v4028 = vpack.c.b16 %v4022, %v4019
  %v4029 = vpack.c.b16 %v4023, %v4020
  %v4030 = vpack.c.b16 %v4024, %v4024
  %v4031 = vpack.c.b16 %v4025, %v4025
  %v4032 = vpack.c.b16 %v4026, %v4026
  %v4038 = vsel %vm1315, %v4029, 0
  %v4041 = vsel %vm1315, %v4032, 0
  %4043 = vmatprep.subr.bf16.mxu0 %v3917
  %4044 = vmatpush1.bf16.msra.mxu0 %v3916
  %4045 = vmatprep.subr.bf16.mxu0 %v3921
  %4046 = vmatpush1.bf16.msra.mxu0 %v3920
  %4047 = vmatprep.subr.bf16.mxu0 %v3925
  %4048 = vmatpush1.bf16.msra.mxu0 %v3924
  %4049 = vmatprep.subr.bf16.mxu0 %v3929
  %4050 = vmatpush1.bf16.msra.mxu0 %v3928
  %4051 = vmatprep.subr.bf16.mxu0 %v3933
  %4052 = vmatpush1.bf16.msra.mxu0 %v3932
  %4053 = vmatprep.subr.bf16.mxu0 %v3937
  %4054 = vmatpush1.bf16.msra.mxu0 %v3936
  %4055 = vmatprep.subr.bf16.mxu0 %v3941
  %4056 = vmatpush1.bf16.msra.mxu0 %v3940
  %4057 = vmatprep.subr.bf16.mxu0 %v3945
  %4058 = vmatpush1.bf16.msra.mxu0 %v3944
  %4059 = vmatprep.subr.bf16.mxu0 %v3949
  %4060 = vmatpush1.bf16.msra.mxu0 %v3948
  %4061 = vmatprep.subr.bf16.mxu0 %v3953
  %4062 = vmatpush1.bf16.msra.mxu0 %v3952
  %4063 = vmatprep.subr.bf16.mxu0 %v3957
  %4064 = vmatpush1.bf16.msra.mxu0 %v3956
  %4065 = vmatprep.subr.bf16.mxu0 %v3961
  %4066 = vmatpush1.bf16.msra.mxu0 %v3960
  %4067 = vmatprep.subr.bf16.mxu0 %v3965
  %4068 = vmatpush1.bf16.msra.mxu0 %v3964
  %4069 = vmatprep.subr.bf16.mxu0 %v3969
  %4070 = vmatpush1.bf16.msra.mxu0 %v3968
  %4071 = vmatprep.subr.bf16.mxu0 %v3973
  %4072 = vmatpush1.bf16.msra.mxu0 %v3972
  %4073 = vmatprep.subr.bf16.mxu0 %v3977
  %4074 = vmatpush1.bf16.msra.mxu0 %v3976
  %4075 = vmatprep.mubr.bf16.mxu0 %v4028
  %4076 = vmatmul.mubr.bf16.gmra.mrb[0].mxu0 %v4027
  %v4077 = vpop.f32.mrb[0].mxu0
  %v4078 = vadd.f32 %v4000, %v4077
  %v4079 = vpop.f32.mrb[0].mxu0
  %v4080 = vadd.f32 %v4000, %v4079
  %v4081 = vpop.f32.mrb[0].mxu0
  %v4082 = vadd.f32 %v4005, %v4081
  %v4083 = vpop.f32.mrb[0].mxu0
  %v4084 = vadd.f32 %v4005, %v4083
  %4085 = vmatprep.mubr.bf16.mxu0 %v4031
  %4086 = vmatmul.mubr.bf16.gmra.mrb[0].mxu0 %v4030
  %v4087 = vpop.f32.mrb[0].mxu0
  %v4088 = vadd.f32 %v4010, %v4087
  %v4089 = vpop.f32.mrb[0].mxu0
  %v4090 = vadd.f32 %v4010, %v4089
  %v4091 = vpop.f32.mrb[0].mxu0
  %v4092 = vpop.f32.mrb[0].mxu0
  %4093 = vdwg.mxu0
  %4094 = vmatprep.subr.bf16.mxu0 %v3981
  %4095 = vmatpush1.bf16.msra.mxu0 %v3980
  %4096 = vmatprep.subr.bf16.mxu0 %v3985
  %4097 = vmatpush1.bf16.msra.mxu0 %v3984
  %4098 = vmatprep.subr.bf16.mxu0 0
  %4099 = vmatpush1.bf16.msra.mxu0 0
  %4100 = vmatprep.subr.bf16.mxu0 0
  %4101 = vmatpush1.bf16.msra.mxu0 0
  %4102 = vmatprep.subr.bf16.mxu0 0
  %4103 = vmatpush1.bf16.msra.mxu0 0
  %4104 = vmatprep.subr.bf16.mxu0 0
  %4105 = vmatpush1.bf16.msra.mxu0 0
  %4106 = vmatprep.subr.bf16.mxu0 0
  %4107 = vmatpush1.bf16.msra.mxu0 0
  %4108 = vmatprep.subr.bf16.mxu0 0
  %4109 = vmatpush1.bf16.msra.mxu0 0
  %4110 = vmatprep.subr.bf16.mxu0 0
  %4111 = vmatpush1.bf16.msra.mxu0 0
  %4112 = vmatprep.subr.bf16.mxu0 0
  %4113 = vmatpush1.bf16.msra.mxu0 0
  %4114 = vmatprep.subr.bf16.mxu0 0
  %4115 = vmatpush1.bf16.msra.mxu0 0
  %4116 = vmatprep.subr.bf16.mxu0 0
  %4117 = vmatpush1.bf16.msra.mxu0 0
  %4118 = vmatprep.subr.bf16.mxu0 0
  %4119 = vmatpush1.bf16.msra.mxu0 0
  %4120 = vmatprep.subr.bf16.mxu0 0
  %4121 = vmatpush1.bf16.msra.mxu0 0
  %4122 = vmatprep.subr.bf16.mxu0 0
  %4123 = vmatpush1.bf16.msra.mxu0 0
  %4124 = vmatprep.subr.bf16.mxu0 0
  %4125 = vmatpush1.bf16.msra.mxu0 0
  %4126 = vmatprep.mubr.bf16.mxu0 0
  %4127 = vmatmul.mubr.bf16.gmra.mrb[0].mxu0 %v4038
  %v4128 = vpop.f32.mrb[0].mxu0
  %v4129 = vadd.f32 %v4078, %v4128
  %v4130 = vpop.f32.mrb[0].mxu0
  %v4131 = vadd.f32 %v4080, %v4130
  %v4132 = vpop.f32.mrb[0].mxu0
  %v4133 = vadd.f32 %v4082, %v4132
  %v4134 = vpop.f32.mrb[0].mxu0
  %v4135 = vadd.f32 %v4084, %v4134
  %4136 = vmatprep.mubr.bf16.mxu0 0
  %4137 = vmatmul.mubr.bf16.gmra.mrb[0].mxu0 %v4041
  %v4138 = vpop.f32.mrb[0].mxu0
  %v4139 = vadd.f32 %v4088, %v4138
  %v4140 = vpop.f32.mrb[0].mxu0
  %v4141 = vadd.f32 %v4090, %v4140
  %v4142 = vpop.f32.mrb[0].mxu0
  %v4143 = vpop.f32.mrb[0].mxu0
  %4144 = vdwg.mxu0
  %4145 = vmatprep.subr.bf16.mxu0 %v3919
  %4146 = vmatpush1.bf16.msra.mxu0 %v3918
  %4147 = vmatprep.subr.bf16.mxu0 %v3923
  %4148 = vmatpush1.bf16.msra.mxu0 %v3922
  %4149 = vmatprep.subr.bf16.mxu0 %v3927
  %4150 = vmatpush1.bf16.msra.mxu0 %v3926
  %4151 = vmatprep.subr.bf16.mxu0 %v3931
  %4152 = vmatpush1.bf16.msra.mxu0 %v3930
  %4153 = vmatprep.subr.bf16.mxu0 %v3935
  %4154 = vmatpush1.bf16.msra.mxu0 %v3934
  %4155 = vmatprep.subr.bf16.mxu0 %v3939
  %4156 = vmatpush1.bf16.msra.mxu0 %v3938
  %4157 = vmatprep.subr.bf16.mxu0 %v3943
  %4158 = vmatpush1.bf16.msra.mxu0 %v3942
  %4159 = vmatprep.subr.bf16.mxu0 %v3947
  %4160 = vmatpush1.bf16.msra.mxu0 %v3946
  %4161 = vmatprep.subr.bf16.mxu0 %v3951
  %4162 = vmatpush1.bf16.msra.mxu0 %v3950
  %4163 = vmatprep.subr.bf16.mxu0 %v3955
  %4164 = vmatpush1.bf16.msra.mxu0 %v3954
  %4165 = vmatprep.subr.bf16.mxu0 %v3959
  %4166 = vmatpush1.bf16.msra.mxu0 %v3958
  %4167 = vmatprep.subr.bf16.mxu0 %v3963
  %4168 = vmatpush1.bf16.msra.mxu0 %v3962
  %4169 = vmatprep.subr.bf16.mxu0 %v3967
  %4170 = vmatpush1.bf16.msra.mxu0 %v3966
  %4171 = vmatprep.subr.bf16.mxu0 %v3971
  %4172 = vmatpush1.bf16.msra.mxu0 %v3970
  %4173 = vmatprep.subr.bf16.mxu0 %v3975
  %4174 = vmatpush1.bf16.msra.mxu0 %v3974
  %4175 = vmatprep.subr.bf16.mxu0 %v3979
  %4176 = vmatpush1.bf16.msra.mxu0 %v3978
  %4177 = vmatprep.mubr.bf16.mxu0 %v4028
  %4178 = vmatmul.mubr.bf16.gmra.mrb[0].mxu0 %v4027
  %v4179 = vpop.f32.mrb[0].mxu0
  %v4180 = vadd.f32 %v4000, %v4179
  %v4181 = vpop.f32.mrb[0].mxu0
  %v4182 = vadd.f32 %v4000, %v4181
  %v4183 = vpop.f32.mrb[0].mxu0
  %v4184 = vadd.f32 %v4005, %v4183
  %v4185 = vpop.f32.mrb[0].mxu0
  %v4186 = vadd.f32 %v4005, %v4185
  %4187 = vmatprep.mubr.bf16.mxu0 %v4031
  %4188 = vmatmul.mubr.bf16.gmra.mrb[0].mxu0 %v4030
  %v4189 = vpop.f32.mrb[0].mxu0
  %v4190 = vadd.f32 %v4010, %v4189
  %v4191 = vpop.f32.mrb[0].mxu0
  %v4192 = vadd.f32 %v4010, %v4191
  %v4193 = vpop.f32.mrb[0].mxu0
  %v4194 = vpop.f32.mrb[0].mxu0
  %4195 = vdwg.mxu0
  %4196 = vmatprep.subr.bf16.mxu0 %v3983
  %4197 = vmatpush1.bf16.msra.mxu0 %v3982
  %4198 = vmatprep.subr.bf16.mxu0 %v3987
  %4199 = vmatpush1.bf16.msra.mxu0 %v3986
  %4200 = vmatprep.subr.bf16.mxu0 0
  %4201 = vmatpush1.bf16.msra.mxu0 0
  %4202 = vmatprep.subr.bf16.mxu0 0
  %4203 = vmatpush1.bf16.msra.mxu0 0
  %4204 = vmatprep.subr.bf16.mxu0 0
  %4205 = vmatpush1.bf16.msra.mxu0 0
  %4206 = vmatprep.subr.bf16.mxu0 0
  %4207 = vmatpush1.bf16.msra.mxu0 0
  %4208 = vmatprep.subr.bf16.mxu0 0
  %4209 = vmatpush1.bf16.msra.mxu0 0
  %4210 = vmatprep.subr.bf16.mxu0 0
  %4211 = vmatpush1.bf16.msra.mxu0 0
  %4212 = vmatprep.subr.bf16.mxu0 0
  %4213 = vmatpush1.bf16.msra.mxu0 0
  %4214 = vmatprep.subr.bf16.mxu0 0
  %4215 = vmatpush1.bf16.msra.mxu0 0
  %4216 = vmatprep.subr.bf16.mxu0 0
  %4217 = vmatpush1.bf16.msra.mxu0 0
  %4218 = vmatprep.subr.bf16.mxu0 0
  %4219 = vmatpush1.bf16.msra.mxu0 0
  %4220 = vmatprep.subr.bf16.mxu0 0
  %4221 = vmatpush1.bf16.msra.mxu0 0
  %4222 = vmatprep.subr.bf16.mxu0 0
  %4223 = vmatpush1.bf16.msra.mxu0 0
  %4224 = vmatprep.subr.bf16.mxu0 0
  %4225 = vmatpush1.bf16.msra.mxu0 0
  %4226 = vmatprep.subr.bf16.mxu0 0
  %4227 = vmatpush1.bf16.msra.mxu0 0
  %4228 = vmatprep.mubr.bf16.mxu0 0
  %4229 = vmatmul.mubr.bf16.gmra.mrb[0].mxu0 %v4038
  %v4230 = vpop.f32.mrb[0].mxu0
  %v4231 = vadd.f32 %v4180, %v4230
  %v4232 = vpop.f32.mrb[0].mxu0
  %v4233 = vadd.f32 %v4182, %v4232
  %v4234 = vpop.f32.mrb[0].mxu0
  %v4235 = vadd.f32 %v4184, %v4234
  %v4236 = vpop.f32.mrb[0].mxu0
  %v4237 = vadd.f32 %v4186, %v4236
  %4238 = vmatprep.mubr.bf16.mxu0 0
  %4239 = vmatmul.mubr.bf16.gmra.mrb[0].mxu0 %v4041
  %v4240 = vpop.f32.mrb[0].mxu0
  %v4241 = vadd.f32 %v4190, %v4240
  %v4242 = vpop.f32.mrb[0].mxu0
  %v4243 = vadd.f32 %v4192, %v4242
  %v4244 = vpop.f32.mrb[0].mxu0
  %v4245 = vpop.f32.mrb[0].mxu0
  %4246 = vdwg.mxu0
  %v4247 = vxor.u32 %v4129, 2147483648
  %v4248 = vxor.u32 %v4131, 2147483648
  %v4249 = vxor.u32 %v4231, 2147483648
  %v4250 = vxor.u32 %v4233, 2147483648
  %v4251 = vxor.u32 %v4133, 2147483648
  %v4252 = vxor.u32 %v4135, 2147483648
  %v4253 = vxor.u32 %v4235, 2147483648
  %v4254 = vxor.u32 %v4237, 2147483648
  %v4255 = vxor.u32 %v4139, 2147483648
  %v4256 = vxor.u32 %v4141, 2147483648
  %v4257 = vxor.u32 %v4241, 2147483648
  %v4258 = vxor.u32 %v4243, 2147483648
  %v4259 = vmul.f32 %v4247, 1.442695
  %v4260 = vpow.pop %v4259
  %v4261 = vmul.f32 %v4248, 1.442695
  %v4262 = vpow.pop %v4261
  %v4263 = vmul.f32 %v4249, 1.442695
  %v4264 = vpow.pop %v4263
  %v4265 = vmul.f32 %v4250, 1.442695
  %v4266 = vpow.pop %v4265
  %v4267 = vmul.f32 %v4251, 1.442695
  %v4268 = vpow.pop %v4267
  %v4269 = vmul.f32 %v4252, 1.442695
  %v4270 = vpow.pop %v4269
  %v4271 = vmul.f32 %v4253, 1.442695
  %v4272 = vpow.pop %v4271
  %v4273 = vmul.f32 %v4254, 1.442695
  %v4274 = vpow.pop %v4273
  %v4275 = vmul.f32 %v4255, 1.442695
  %v4276 = vpow.pop %v4275
  %v4277 = vmul.f32 %v4256, 1.442695
  %v4278 = vpow.pop %v4277
  %v4279 = vmul.f32 %v4257, 1.442695
  %v4280 = vpow.pop %v4279
  %v4281 = vmul.f32 %v4258, 1.442695
  %v4282 = vpow.pop %v4281
  %v4283 = vadd.f32 %v4260, 1.0
  %v4284 = vadd.f32 %v4262, 1.0
  %v4285 = vadd.f32 %v4264, 1.0
  %v4286 = vadd.f32 %v4266, 1.0
  %v4287 = vadd.f32 %v4268, 1.0
  %v4288 = vadd.f32 %v4270, 1.0
  %v4289 = vadd.f32 %v4272, 1.0
  %v4290 = vadd.f32 %v4274, 1.0
  %v4291 = vadd.f32 %v4276, 1.0
  %v4292 = vadd.f32 %v4278, 1.0
  %v4293 = vadd.f32 %v4280, 1.0
  %v4294 = vadd.f32 %v4282, 1.0
  %v4295 = vrcp.pop %v4283
  %v4296 = vmul.f32 1.0, %v4295
  %v4297 = vrcp.pop %v4284
  %v4298 = vmul.f32 1.0, %v4297
  %v4299 = vrcp.pop %v4285
  %v4300 = vmul.f32 1.0, %v4299
  %v4301 = vrcp.pop %v4286
  %v4302 = vmul.f32 1.0, %v4301
  %v4303 = vrcp.pop %v4287
  %v4304 = vmul.f32 1.0, %v4303
  %v4305 = vrcp.pop %v4288
  %v4306 = vmul.f32 1.0, %v4305
  %v4307 = vrcp.pop %v4289
  %v4308 = vmul.f32 1.0, %v4307
  %v4309 = vrcp.pop %v4290
  %v4310 = vmul.f32 1.0, %v4309
  %v4311 = vrcp.pop %v4291
  %v4312 = vmul.f32 1.0, %v4311
  %v4313 = vrcp.pop %v4292
  %v4314 = vmul.f32 1.0, %v4313
  %v4315 = vrcp.pop %v4293
  %v4316 = vmul.f32 1.0, %v4315
  %v4317 = vrcp.pop %v4294
  %v4318 = vmul.f32 1.0, %v4317
  %4319 = vst [vmem:[%s13] sm:$0xff] %v4296
  %4320 = vst [vmem:[%s13 + $0x8] sm:$0xff] %v4298
  %4321 = vst [vmem:[%s13 + $0x10] sm:$0xff] %v4300
  %4322 = vst [vmem:[%s13 + $0x18] sm:$0xff] %v4302
  %4323 = vst [vmem:[%s13 + $0x20] sm:$0xff] %v4304
  %4324 = vst [vmem:[%s13 + $0x28] sm:$0xff] %v4306
  %4325 = vst [vmem:[%s13 + $0x30] sm:$0xff] %v4308
  %4326 = vst [vmem:[%s13 + $0x38] sm:$0xff] %v4310
  %4327 = vst [vmem:[%s13 + $0x40] sm:$0xff] %v4312
  %4328 = vst [vmem:[%s13 + $0x48] sm:$0xff] %v4314
  %4329 = vst [vmem:[%s13 + $0x50] sm:$0xff] %v4316
  %4330 = vst [vmem:[%s13 + $0x58] sm:$0xff] %v4318
  // Predicated region
  $region50: #{test_head_forward.1} parent=0 // pred_check
    _
  $region51: #{test_head_forward.1} parent=0 // pred_check_branch
    %4332 = sbr.rel (0) target = $region53
  $region52: #{test_head_forward.1} parent=0 // pred_region
    _
  $region53: #{test_head_forward.1} parent=0 // pred_fallthru
    _
  // Predicated region
  $region54: #{test_head_forward.1} parent=0 // pred_check
    _
  $region55: #{test_head_forward.1} parent=0 // pred_check_branch
    %4334 = sbr.rel (0) target = $region57
  $region56: #{test_head_forward.1} parent=0 // pred_region
    _
  $region57: #{test_head_forward.1} parent=0 // pred_fallthru
    _
  // Predicated region
  $region58: #{test_head_forward.1} parent=0 // pred_check
    _
  $region59: #{test_head_forward.1} parent=0 // pred_check_branch
    %4336 = sbr.rel (0) target = $region61
  $region60: #{test_head_forward.1} parent=0 // pred_region
    _
  $region61: #{test_head_forward.1} parent=0 // pred_fallthru
    _
  // Predicated region
  $region62: #{test_head_forward.1} parent=0 // pred_check
    _
  $region63: #{test_head_forward.1} parent=0 // pred_check_branch
    %4338 = sbr.rel (0) target = $region65
  $region64: #{test_head_forward.1} parent=0 // pred_region
    _
  $region65: #{test_head_forward.1} parent=0 // pred_fallthru
    _

</llo_original>
